<compile_context>
chip_gen: v7x
topology: tpu7x:2x2x1
jax: 0.10.0
libtpu: 0.0.40
codegen_flags: <defaults>
</compile_context>

<pallas_src>
import functools

import jax
import jax.numpy as jnp
from jax.experimental import pallas as pl
from jax.experimental.pallas import tpu as pltpu

# --- small GPT-2 config (consistent with the PyTorch module's cfg dict) ---
CFG = dict(
    vocab_size=64,
    context_length=16,
    emb_dim=32,
    n_heads=4,
    n_layers=2,
    drop_rate=0.0,   # dropout is identity at inference
    qkv_bias=False,
)

LANE = 128
NEG_BIG = -1e30  # large finite negative instead of -inf (robust additive mask)


def _layernorm(x, g, b, eps=1e-5):
    # PyTorch LayerNorm: biased variance over the last dim (f32 math).
    mu = jnp.mean(x, axis=-1, keepdims=True)
    var = jnp.mean((x - mu) ** 2, axis=-1, keepdims=True)
    return (x - mu) * jax.lax.rsqrt(var + eps) * g + b


def _gelu_exact(x):
    # nn.GELU() default: exact erf-based GELU.
    return 0.5 * x * (1.0 + jax.lax.erf(x * jnp.float32(0.7071067811865476)))


def gpt2_kernel(
    x_ref,        # (B*S, E)   f32  activations (tok+pos embeddings)
    wqkv_ref,     # (L, E, 3E) bf16 fused QKV projection
    wo_ref,       # (L, E, E)  bf16 attention output projection
    w1_ref,       # (L, E, 4E) bf16 FF up-projection
    w2_ref,       # (L, 4E, E) bf16 FF down-projection
    vecs_ref,     # (L, 6, E)  f32  [ln1g, ln1b, ln2g, ln2b, bo, b2]
    b1_ref,       # (L, 1, 4E) f32  FF up bias
    lnf_ref,      # (2, E)     f32  [final ln gamma, beta]
    wout_ref,     # (E, VP)    bf16 LM head, V padded to lane width
    out_ref,      # (B*S, VP)  f32  logits (lane-dense store)
    *, n_layers, n_heads, batch, seq,
):
    x = x_ref[...]                              # (BS, E) f32
    BS, E = x.shape
    B, S, H = batch, seq, n_heads
    Dh = E // H
    scale = jnp.float32(1.0 / (Dh ** 0.5))

    # Additive causal mask, built once and reused across layers/heads.
    row = jax.lax.broadcasted_iota(jnp.int32, (B, S, S), 1)
    col = jax.lax.broadcasted_iota(jnp.int32, (B, S, S), 2)
    amask = jnp.where(col > row, jnp.float32(NEG_BIG), jnp.float32(0.0))

    for l in range(n_layers):
        vl = vecs_ref[l]                        # (6, E) f32
        ln1g, ln1b = vl[0:1], vl[1:2]
        ln2g, ln2b = vl[2:3], vl[3:4]
        bo, b2 = vl[4:5], vl[5:6]

        # ---- multi-head attention sublayer ----
        h = _layernorm(x, ln1g, ln1b).astype(jnp.bfloat16)
        qkv = jnp.dot(h, wqkv_ref[l], preferred_element_type=jnp.float32)  # (BS, 3E)

        # split q/k/v (static lane slices of the fused output), fold scale into q
        q = (qkv[:, 0 * E:1 * E] * scale).reshape(B, S, E).astype(jnp.bfloat16)
        k = qkv[:, 1 * E:2 * E].reshape(B, S, E).astype(jnp.bfloat16)
        v = qkv[:, 2 * E:3 * E].reshape(B, S, E).astype(jnp.bfloat16)

        wo_l = wo_ref[l]                        # (E, E) bf16
        attn = jnp.zeros((BS, E), jnp.float32)
        for hh in range(n_heads):               # static unroll, H=4
            sl = slice(hh * Dh, (hh + 1) * Dh)
            qh, kh, vh = q[:, :, sl], k[:, :, sl], v[:, :, sl]   # (B, S, Dh) bf16
            s = jnp.einsum("bqd,bkd->bqk", qh, kh,
                           preferred_element_type=jnp.float32) + amask
            s = s - jnp.max(s, axis=-1, keepdims=True)
            p = jnp.exp(s)
            p = p * pl.reciprocal(jnp.sum(p, axis=-1, keepdims=True), approx=True)
            ch = jnp.einsum("bqk,bkd->bqd", p.astype(jnp.bfloat16), vh,
                            preferred_element_type=jnp.float32)  # (B, S, Dh)
            # output projection accumulated per head: avoids lane-axis concat.
            attn = attn + jnp.dot(ch.reshape(BS, Dh).astype(jnp.bfloat16),
                                  wo_l[sl, :],
                                  preferred_element_type=jnp.float32)
        x = x + attn + bo                        # residual (+ out_proj bias)

        # ---- feed-forward sublayer ----
        h = _layernorm(x, ln2g, ln2b).astype(jnp.bfloat16)
        a = jnp.dot(h, w1_ref[l], preferred_element_type=jnp.float32) + b1_ref[l]
        a = _gelu_exact(a)
        f = jnp.dot(a.astype(jnp.bfloat16), w2_ref[l],
                    preferred_element_type=jnp.float32) + b2
        x = x + f                                # residual

    # ---- final norm + LM head (lane-dense, V padded to 128) ----
    lnf = lnf_ref[...]
    xf = _layernorm(x, lnf[0:1], lnf[1:2]).astype(jnp.bfloat16)
    out_ref[...] = jnp.dot(xf, wout_ref[...], preferred_element_type=jnp.float32)


def init_params(key, cfg):
    E = cfg["emb_dim"]
    L = cfg["n_layers"]
    V = cfg["vocab_size"]
    C = cfg["context_length"]
    ks = jax.random.split(key, 12)
    s = 0.02
    f32, bf16 = jnp.float32, jnp.bfloat16

    wq = s * jax.random.normal(ks[2], (L, E, E), f32)
    wk = s * jax.random.normal(ks[3], (L, E, E), f32)
    wv = s * jax.random.normal(ks[4], (L, E, E), f32)
    wqkv = jnp.concatenate([wq, wk, wv], axis=-1)            # (L, E, 3E)

    bo = s * jax.random.normal(ks[6], (L, E), f32)
    b2 = s * jax.random.normal(ks[10], (L, E), f32)
    vecs = jnp.stack(
        [jnp.ones((L, E), f32), jnp.zeros((L, E), f32),       # ln1 gamma/beta
         jnp.ones((L, E), f32), jnp.zeros((L, E), f32),       # ln2 gamma/beta
         bo, b2], axis=1)                                     # (L, 6, E)

    wout = s * jax.random.normal(ks[11], (E, V), f32)
    VP = max(LANE, ((V + LANE - 1) // LANE) * LANE)
    wout_p = jnp.zeros((E, VP), f32).at[:, :V].set(wout)      # lane-dense LM head

    return {
        "tok_emb": s * jax.random.normal(ks[0], (V, E), f32),
        "pos_emb": s * jax.random.normal(ks[1], (C, E), f32),
        "wqkv": wqkv.astype(bf16),
        "wo": (s * jax.random.normal(ks[5], (L, E, E), f32)).astype(bf16),
        "w1": (s * jax.random.normal(ks[7], (L, E, 4 * E), f32)).astype(bf16),
        "w2": (s * jax.random.normal(ks[9], (L, 4 * E, E), f32)).astype(bf16),
        "vecs": vecs,
        "b1": (s * jax.random.normal(ks[8], (L, 4 * E), f32)).reshape(L, 1, 4 * E),
        "lnf": jnp.stack([jnp.ones((E,), f32), jnp.zeros((E,), f32)], axis=0),
        "wout_p": wout_p.astype(bf16),
    }


@functools.partial(jax.jit, static_argnames=("cfg_tuple",))
def gpt2_forward(token_ids, params, cfg_tuple):
    cfg = dict(cfg_tuple)
    B, S = token_ids.shape
    E = cfg["emb_dim"]
    V = cfg["vocab_size"]
    L = cfg["n_layers"]
    H = cfg["n_heads"]
    VP = params["wout_p"].shape[1]

    # glue: embedding gather + positional add (dropout is identity), fold batch
    x = params["tok_emb"][token_ids] + params["pos_emb"][:S][None, :, :]
    x = x.reshape(B * S, E).astype(jnp.float32)               # (B*S, E)

    def full(arr):  # full-array block, constant index
        return pl.BlockSpec(arr.shape, lambda i, _n=arr.ndim: (0,) * _n)

    weight_names = ("wqkv", "wo", "w1", "w2", "vecs", "b1", "lnf", "wout_p")
    weights = [params[n] for n in weight_names]

    kernel = functools.partial(gpt2_kernel, n_layers=L, n_heads=H, batch=B, seq=S)

    out = pl.pallas_call(
        kernel,
        out_shape=jax.ShapeDtypeStruct((B * S, VP), jnp.float32),
        grid_spec=pltpu.PrefetchScalarGridSpec(
            num_scalar_prefetch=0,
            grid=(1,),
            in_specs=[full(x)] + [full(w) for w in weights],
            out_specs=pl.BlockSpec((B * S, VP), lambda i: (0, 0)),
        ),
        compiler_params=pltpu.CompilerParams(
            dimension_semantics=("arbitrary",),
        ),
    )(x, *weights)

    return out.reshape(B, S, VP)[:, :, :V]


def gpt2_reference(token_ids, params, cfg):
    """Pure-JAX f32 reference (mirrors the PyTorch forward) using the same
    (bf16-quantized) weights as the kernel."""
    B, S = token_ids.shape
    E, H, L, V = cfg["emb_dim"], cfg["n_heads"], cfg["n_layers"], cfg["vocab_size"]
    Dh = E // H
    f32 = jnp.float32
    wqkv = params["wqkv"].astype(f32)
    wo = params["wo"].astype(f32)
    w1 = params["w1"].astype(f32)
    w2 = params["w2"].astype(f32)
    wout = params["wout_p"].astype(f32)[:, :V]
    vecs = params["vecs"]
    b1 = params["b1"].reshape(L, 4 * E)
    lnf = params["lnf"]

    x = params["tok_emb"][token_ids] + params["pos_emb"][:S][None, :, :]
    causal = jnp.arange(S)[None, :] > jnp.arange(S)[:, None]
    for l in range(L):
        ln1g, ln1b, ln2g, ln2b, bo, b2 = (vecs[l, i] for i in range(6))
        h = _layernorm(x, ln1g, ln1b)
        q = h @ wqkv[l, :, 0 * E:1 * E]
        k = h @ wqkv[l, :, 1 * E:2 * E]
        v = h @ wqkv[l, :, 2 * E:3 * E]
        qh = q.reshape(B, S, H, Dh).transpose(0, 2, 1, 3)
        kh = k.reshape(B, S, H, Dh).transpose(0, 2, 1, 3)
        vh = v.reshape(B, S, H, Dh).transpose(0, 2, 1, 3)
        sc = jnp.einsum("bhqd,bhkd->bhqk", qh, kh) / (Dh ** 0.5)
        sc = jnp.where(causal[None, None], -jnp.inf, sc)
        w = jax.nn.softmax(sc, axis=-1)
        o = jnp.einsum("bhqk,bhkd->bhqd", w, vh).transpose(0, 2, 1, 3).reshape(B, S, E)
        x = x + (o @ wo[l] + bo)
        h = _layernorm(x, ln2g, ln2b)
        h = _gelu_exact(h @ w1[l] + b1[l])
        x = x + (h @ w2[l] + b2)
    x = _layernorm(x, lnf[0], lnf[1])
    return x @ wout


if __name__ == "__main__":
    key = jax.random.PRNGKey(0)
    k_tok, k_params = jax.random.split(key)

    B, S = 2, 8
    token_ids = jax.random.randint(k_tok, (B, S), 0, CFG["vocab_size"], dtype=jnp.int32)
    params = init_params(k_params, CFG)

    cfg_tuple = tuple(sorted(CFG.items()))
    logits = gpt2_forward(token_ids, params, cfg_tuple)
    logits = jax.block_until_ready(logits)

    ref = gpt2_reference(token_ids, params, CFG)
    assert logits.shape == (B, S, CFG["vocab_size"])
    max_err = float(jnp.max(jnp.abs(logits - ref)))
    assert jnp.allclose(logits, ref, atol=1e-2, rtol=1e-2), (
        f"Pallas kernel mismatch vs reference (max abs err {max_err:.3e})")

    print("KERNEL_OK")
</pallas_src>

<mosaic_0001>
module attributes {stable_mosaic.version = 11 : i64} {
  func.func @gpt2_kernel(%arg0: i32, %arg1: memref<16x32xf32, #tpu.memory_space<vmem>>, %arg2: memref<2x32x96xbf16, #tpu.memory_space<vmem>>, %arg3: memref<2x32x32xbf16, #tpu.memory_space<vmem>>, %arg4: memref<2x32x128xbf16, #tpu.memory_space<vmem>>, %arg5: memref<2x128x32xbf16, #tpu.memory_space<vmem>>, %arg6: memref<2x6x32xf32, #tpu.memory_space<vmem>>, %arg7: memref<2x1x128xf32, #tpu.memory_space<vmem>>, %arg8: memref<2x32xf32, #tpu.memory_space<vmem>>, %arg9: memref<32x128xbf16, #tpu.memory_space<vmem>>, %arg10: memref<16x128xf32, #tpu.memory_space<vmem>>) attributes {dimension_semantics = [#tpu.dimension_semantics<arbitrary>], iteration_bounds = array<i64: 1>, scalar_prefetch = 0 : i64, scratch_operands = 0 : i64, tpu.core_type = #tpu.core_type<tc>, window_params = [{pipeline_mode = #tpu.pipeline_mode<synchronous>, transform_indices = @transform_0, window_bounds = array<i64: 16, 32>}, {pipeline_mode = #tpu.pipeline_mode<synchronous>, transform_indices = @transform_1, window_bounds = array<i64: 2, 32, 96>}, {pipeline_mode = #tpu.pipeline_mode<synchronous>, transform_indices = @transform_2, window_bounds = array<i64: 2, 32, 32>}, {pipeline_mode = #tpu.pipeline_mode<synchronous>, transform_indices = @transform_3, window_bounds = array<i64: 2, 32, 128>}, {pipeline_mode = #tpu.pipeline_mode<synchronous>, transform_indices = @transform_4, window_bounds = array<i64: 2, 128, 32>}, {pipeline_mode = #tpu.pipeline_mode<synchronous>, transform_indices = @transform_5, window_bounds = array<i64: 2, 6, 32>}, {pipeline_mode = #tpu.pipeline_mode<synchronous>, transform_indices = @transform_6, window_bounds = array<i64: 2, 1, 128>}, {pipeline_mode = #tpu.pipeline_mode<synchronous>, transform_indices = @transform_7, window_bounds = array<i64: 2, 32>}, {pipeline_mode = #tpu.pipeline_mode<synchronous>, transform_indices = @transform_8, window_bounds = array<i64: 32, 128>}, {pipeline_mode = #tpu.pipeline_mode<synchronous>, transform_indices = @transform_9, window_bounds = array<i64: 16, 128>}]} {
    %c0 = arith.constant 0 : index
    %c0_0 = arith.constant 0 : index
    %0 = vector.load %arg1[%c0, %c0_0] : memref<16x32xf32, #tpu.memory_space<vmem>>, vector<16x32xf32>
    %1 = tpu.iota {dimensions = array<i32: 1>} : vector<2x8x8xi32>
    %2 = tpu.iota {dimensions = array<i32: 2>} : vector<2x8x8xi32>
    %3 = arith.cmpi sgt, %2, %1 : vector<2x8x8xi32>
    %cst = arith.constant -1.000000e+30 : f32
    %cst_1 = arith.constant 0.000000e+00 : f32
    %4 = vector.broadcast %cst : f32 to vector<2x8x8xf32>
    %5 = vector.broadcast %cst_1 : f32 to vector<2x8x8xf32>
    %6 = arith.select %3, %4, %5 : vector<2x8x8xi1>, vector<2x8x8xf32>
    %c0_2 = arith.constant 0 : index
    %c0_3 = arith.constant 0 : index
    %c0_4 = arith.constant 0 : index
    %7 = vector.load %arg6[%c0_2, %c0_3, %c0_4] : memref<2x6x32xf32, #tpu.memory_space<vmem>>, vector<1x6x32xf32>
    %8 = vector.shape_cast %7 : vector<1x6x32xf32> to vector<6x32xf32>
    %9 = vector.extract_strided_slice %8 {offsets = [0, 0], sizes = [1, 32], strides = [1, 1]} : vector<6x32xf32> to vector<1x32xf32>
    %10 = vector.extract_strided_slice %8 {offsets = [1, 0], sizes = [1, 32], strides = [1, 1]} : vector<6x32xf32> to vector<1x32xf32>
    %11 = vector.extract_strided_slice %8 {offsets = [2, 0], sizes = [1, 32], strides = [1, 1]} : vector<6x32xf32> to vector<1x32xf32>
    %12 = vector.extract_strided_slice %8 {offsets = [3, 0], sizes = [1, 32], strides = [1, 1]} : vector<6x32xf32> to vector<1x32xf32>
    %13 = vector.extract_strided_slice %8 {offsets = [4, 0], sizes = [1, 32], strides = [1, 1]} : vector<6x32xf32> to vector<1x32xf32>
    %14 = vector.extract_strided_slice %8 {offsets = [5, 0], sizes = [1, 32], strides = [1, 1]} : vector<6x32xf32> to vector<1x32xf32>
    %cst_5 = arith.constant dense<0.000000e+00> : vector<16xf32>
    %15 = vector.multi_reduction <add>, %0, %cst_5 [1] : vector<16x32xf32> to vector<16xf32>
    %16 = vector.shape_cast %15 : vector<16xf32> to vector<16x1xf32>
    %cst_6 = arith.constant 3.200000e+01 : f32
    %17 = vector.broadcast %cst_6 : f32 to vector<16x1xf32>
    %18 = arith.divf %16, %17 : vector<16x1xf32>
    %19 = vector.broadcast %18 : vector<16x1xf32> to vector<16x32xf32>
    %20 = arith.subf %0, %19 : vector<16x32xf32>
    %21 = arith.mulf %20, %20 : vector<16x32xf32>
    %cst_7 = arith.constant dense<0.000000e+00> : vector<16xf32>
    %22 = vector.multi_reduction <add>, %21, %cst_7 [1] : vector<16x32xf32> to vector<16xf32>
    %23 = vector.shape_cast %22 : vector<16xf32> to vector<16x1xf32>
    %cst_8 = arith.constant 3.200000e+01 : f32
    %24 = vector.broadcast %cst_8 : f32 to vector<16x1xf32>
    %25 = arith.divf %23, %24 : vector<16x1xf32>
    %26 = vector.broadcast %18 : vector<16x1xf32> to vector<16x32xf32>
    %27 = arith.subf %0, %26 : vector<16x32xf32>
    %cst_9 = arith.constant 9.99999974E-6 : f32
    %28 = vector.broadcast %cst_9 : f32 to vector<16x1xf32>
    %29 = arith.addf %25, %28 : vector<16x1xf32>
    %30 = math.rsqrt %29 : vector<16x1xf32>
    %31 = vector.broadcast %30 : vector<16x1xf32> to vector<16x32xf32>
    %32 = arith.mulf %27, %31 : vector<16x32xf32>
    %33 = vector.broadcast %9 : vector<1x32xf32> to vector<16x32xf32>
    %34 = arith.mulf %32, %33 : vector<16x32xf32>
    %35 = vector.broadcast %10 : vector<1x32xf32> to vector<16x32xf32>
    %36 = arith.addf %34, %35 : vector<16x32xf32>
    %37 = arith.truncf %36 : vector<16x32xf32> to vector<16x32xbf16>
    %c0_10 = arith.constant 0 : index
    %c0_11 = arith.constant 0 : index
    %c0_12 = arith.constant 0 : index
    %38 = vector.load %arg2[%c0_10, %c0_11, %c0_12] : memref<2x32x96xbf16, #tpu.memory_space<vmem>>, vector<1x32x96xbf16>
    %39 = vector.shape_cast %38 : vector<1x32x96xbf16> to vector<32x96xbf16>
    %cst_13 = arith.constant dense<0.000000e+00> : vector<16x96xf32>
    %40 = tpu.matmul %37, %39, %cst_13 {dimension_numbers = #tpu.dot_dimension_numbers<[1], [0], [0], [1], [0, 0, 1, 1], [], []>} : vector<16x32xbf16>, vector<32x96xbf16>, vector<16x96xf32> -> vector<16x96xf32>
    %41 = vector.extract_strided_slice %40 {offsets = [0, 0], sizes = [16, 32], strides = [1, 1]} : vector<16x96xf32> to vector<16x32xf32>
    %cst_14 = arith.constant 0.353553385 : f32
    %42 = vector.broadcast %cst_14 : f32 to vector<16x32xf32>
    %43 = arith.mulf %41, %42 : vector<16x32xf32>
    %44 = vector.shape_cast %43 : vector<16x32xf32> to vector<2x8x32xf32>
    %45 = arith.truncf %44 : vector<2x8x32xf32> to vector<2x8x32xbf16>
    %46 = vector.extract_strided_slice %40 {offsets = [0, 32], sizes = [16, 32], strides = [1, 1]} : vector<16x96xf32> to vector<16x32xf32>
    %47 = vector.shape_cast %46 : vector<16x32xf32> to vector<2x8x32xf32>
    %48 = arith.truncf %47 : vector<2x8x32xf32> to vector<2x8x32xbf16>
    %49 = vector.extract_strided_slice %40 {offsets = [0, 64], sizes = [16, 32], strides = [1, 1]} : vector<16x96xf32> to vector<16x32xf32>
    %50 = vector.shape_cast %49 : vector<16x32xf32> to vector<2x8x32xf32>
    %51 = arith.truncf %50 : vector<2x8x32xf32> to vector<2x8x32xbf16>
    %c0_15 = arith.constant 0 : index
    %c0_16 = arith.constant 0 : index
    %c0_17 = arith.constant 0 : index
    %52 = vector.load %arg3[%c0_15, %c0_16, %c0_17] : memref<2x32x32xbf16, #tpu.memory_space<vmem>>, vector<1x32x32xbf16>
    %53 = vector.shape_cast %52 : vector<1x32x32xbf16> to vector<32x32xbf16>
    %cst_18 = arith.constant 0.000000e+00 : f32
    %54 = vector.broadcast %cst_18 : f32 to vector<16x32xf32>
    %55 = vector.extract_strided_slice %45 {offsets = [0, 0, 0], sizes = [2, 8, 8], strides = [1, 1, 1]} : vector<2x8x32xbf16> to vector<2x8x8xbf16>
    %56 = vector.extract_strided_slice %48 {offsets = [0, 0, 0], sizes = [2, 8, 8], strides = [1, 1, 1]} : vector<2x8x32xbf16> to vector<2x8x8xbf16>
    %57 = vector.extract_strided_slice %51 {offsets = [0, 0, 0], sizes = [2, 8, 8], strides = [1, 1, 1]} : vector<2x8x32xbf16> to vector<2x8x8xbf16>
    "tpu.trace_start"() <{level = 10 : i32, message = "bqd,bkd->bqk"}> : () -> ()
    %cst_19 = arith.constant dense<0.000000e+00> : vector<2x8x8xf32>
    %58 = tpu.matmul %55, %56, %cst_19 {dimension_numbers = #tpu.dot_dimension_numbers<[2], [2], [1], [1], [0, 0, 0, 1, 1, 1], [0], [0]>} : vector<2x8x8xbf16>, vector<2x8x8xbf16>, vector<2x8x8xf32> -> vector<2x8x8xf32>
    "tpu.trace_stop"() : () -> ()
    %59 = arith.addf %58, %6 : vector<2x8x8xf32>
    %cst_20 = arith.constant dense<0xFF800000> : vector<2x8xf32>
    %60 = vector.multi_reduction <maximumf>, %59, %cst_20 [2] : vector<2x8x8xf32> to vector<2x8xf32>
    %61 = vector.shape_cast %60 : vector<2x8xf32> to vector<2x8x1xf32>
    %62 = vector.broadcast %61 : vector<2x8x1xf32> to vector<2x8x8xf32>
    %63 = arith.subf %59, %62 : vector<2x8x8xf32>
    %64 = math.exp %63 : vector<2x8x8xf32>
    %cst_21 = arith.constant dense<0.000000e+00> : vector<2x8xf32>
    %65 = vector.multi_reduction <add>, %64, %cst_21 [2] : vector<2x8x8xf32> to vector<2x8xf32>
    %66 = vector.shape_cast %65 : vector<2x8xf32> to vector<2x8x1xf32>
    %67 = tpu.reciprocal %66 {approx = true} : vector<2x8x1xf32> -> vector<2x8x1xf32>
    %68 = vector.broadcast %67 : vector<2x8x1xf32> to vector<2x8x8xf32>
    %69 = arith.mulf %64, %68 : vector<2x8x8xf32>
    %70 = arith.truncf %69 : vector<2x8x8xf32> to vector<2x8x8xbf16>
    "tpu.trace_start"() <{level = 10 : i32, message = "bqk,bkd->bqd"}> : () -> ()
    %cst_22 = arith.constant dense<0.000000e+00> : vector<2x8x8xf32>
    %71 = tpu.matmul %70, %57, %cst_22 {dimension_numbers = #tpu.dot_dimension_numbers<[2], [1], [1], [2], [0, 0, 0, 1, 1, 2], [0], [0]>} : vector<2x8x8xbf16>, vector<2x8x8xbf16>, vector<2x8x8xf32> -> vector<2x8x8xf32>
    "tpu.trace_stop"() : () -> ()
    %72 = vector.shape_cast %71 : vector<2x8x8xf32> to vector<16x8xf32>
    %73 = arith.truncf %72 : vector<16x8xf32> to vector<16x8xbf16>
    %74 = vector.extract_strided_slice %53 {offsets = [0, 0], sizes = [8, 32], strides = [1, 1]} : vector<32x32xbf16> to vector<8x32xbf16>
    %cst_23 = arith.constant dense<0.000000e+00> : vector<16x32xf32>
    %75 = tpu.matmul %73, %74, %cst_23 {dimension_numbers = #tpu.dot_dimension_numbers<[1], [0], [0], [1], [0, 0, 1, 1], [], []>} : vector<16x8xbf16>, vector<8x32xbf16>, vector<16x32xf32> -> vector<16x32xf32>
    %76 = arith.addf %54, %75 : vector<16x32xf32>
    %77 = vector.extract_strided_slice %45 {offsets = [0, 0, 8], sizes = [2, 8, 8], strides = [1, 1, 1]} : vector<2x8x32xbf16> to vector<2x8x8xbf16>
    %78 = vector.extract_strided_slice %48 {offsets = [0, 0, 8], sizes = [2, 8, 8], strides = [1, 1, 1]} : vector<2x8x32xbf16> to vector<2x8x8xbf16>
    %79 = vector.extract_strided_slice %51 {offsets = [0, 0, 8], sizes = [2, 8, 8], strides = [1, 1, 1]} : vector<2x8x32xbf16> to vector<2x8x8xbf16>
    "tpu.trace_start"() <{level = 10 : i32, message = "bqd,bkd->bqk"}> : () -> ()
    %cst_24 = arith.constant dense<0.000000e+00> : vector<2x8x8xf32>
    %80 = tpu.matmul %77, %78, %cst_24 {dimension_numbers = #tpu.dot_dimension_numbers<[2], [2], [1], [1], [0, 0, 0, 1, 1, 1], [0], [0]>} : vector<2x8x8xbf16>, vector<2x8x8xbf16>, vector<2x8x8xf32> -> vector<2x8x8xf32>
    "tpu.trace_stop"() : () -> ()
    %81 = arith.addf %80, %6 : vector<2x8x8xf32>
    %cst_25 = arith.constant dense<0xFF800000> : vector<2x8xf32>
    %82 = vector.multi_reduction <maximumf>, %81, %cst_25 [2] : vector<2x8x8xf32> to vector<2x8xf32>
    %83 = vector.shape_cast %82 : vector<2x8xf32> to vector<2x8x1xf32>
    %84 = vector.broadcast %83 : vector<2x8x1xf32> to vector<2x8x8xf32>
    %85 = arith.subf %81, %84 : vector<2x8x8xf32>
    %86 = math.exp %85 : vector<2x8x8xf32>
    %cst_26 = arith.constant dense<0.000000e+00> : vector<2x8xf32>
    %87 = vector.multi_reduction <add>, %86, %cst_26 [2] : vector<2x8x8xf32> to vector<2x8xf32>
    %88 = vector.shape_cast %87 : vector<2x8xf32> to vector<2x8x1xf32>
    %89 = tpu.reciprocal %88 {approx = true} : vector<2x8x1xf32> -> vector<2x8x1xf32>
    %90 = vector.broadcast %89 : vector<2x8x1xf32> to vector<2x8x8xf32>
    %91 = arith.mulf %86, %90 : vector<2x8x8xf32>
    %92 = arith.truncf %91 : vector<2x8x8xf32> to vector<2x8x8xbf16>
    "tpu.trace_start"() <{level = 10 : i32, message = "bqk,bkd->bqd"}> : () -> ()
    %cst_27 = arith.constant dense<0.000000e+00> : vector<2x8x8xf32>
    %93 = tpu.matmul %92, %79, %cst_27 {dimension_numbers = #tpu.dot_dimension_numbers<[2], [1], [1], [2], [0, 0, 0, 1, 1, 2], [0], [0]>} : vector<2x8x8xbf16>, vector<2x8x8xbf16>, vector<2x8x8xf32> -> vector<2x8x8xf32>
    "tpu.trace_stop"() : () -> ()
    %94 = vector.shape_cast %93 : vector<2x8x8xf32> to vector<16x8xf32>
    %95 = arith.truncf %94 : vector<16x8xf32> to vector<16x8xbf16>
    %96 = vector.extract_strided_slice %53 {offsets = [8, 0], sizes = [8, 32], strides = [1, 1]} : vector<32x32xbf16> to vector<8x32xbf16>
    %cst_28 = arith.constant dense<0.000000e+00> : vector<16x32xf32>
    %97 = tpu.matmul %95, %96, %cst_28 {dimension_numbers = #tpu.dot_dimension_numbers<[1], [0], [0], [1], [0, 0, 1, 1], [], []>} : vector<16x8xbf16>, vector<8x32xbf16>, vector<16x32xf32> -> vector<16x32xf32>
    %98 = arith.addf %76, %97 : vector<16x32xf32>
    %99 = vector.extract_strided_slice %45 {offsets = [0, 0, 16], sizes = [2, 8, 8], strides = [1, 1, 1]} : vector<2x8x32xbf16> to vector<2x8x8xbf16>
    %100 = vector.extract_strided_slice %48 {offsets = [0, 0, 16], sizes = [2, 8, 8], strides = [1, 1, 1]} : vector<2x8x32xbf16> to vector<2x8x8xbf16>
    %101 = vector.extract_strided_slice %51 {offsets = [0, 0, 16], sizes = [2, 8, 8], strides = [1, 1, 1]} : vector<2x8x32xbf16> to vector<2x8x8xbf16>
    "tpu.trace_start"() <{level = 10 : i32, message = "bqd,bkd->bqk"}> : () -> ()
    %cst_29 = arith.constant dense<0.000000e+00> : vector<2x8x8xf32>
    %102 = tpu.matmul %99, %100, %cst_29 {dimension_numbers = #tpu.dot_dimension_numbers<[2], [2], [1], [1], [0, 0, 0, 1, 1, 1], [0], [0]>} : vector<2x8x8xbf16>, vector<2x8x8xbf16>, vector<2x8x8xf32> -> vector<2x8x8xf32>
    "tpu.trace_stop"() : () -> ()
    %103 = arith.addf %102, %6 : vector<2x8x8xf32>
    %cst_30 = arith.constant dense<0xFF800000> : vector<2x8xf32>
    %104 = vector.multi_reduction <maximumf>, %103, %cst_30 [2] : vector<2x8x8xf32> to vector<2x8xf32>
    %105 = vector.shape_cast %104 : vector<2x8xf32> to vector<2x8x1xf32>
    %106 = vector.broadcast %105 : vector<2x8x1xf32> to vector<2x8x8xf32>
    %107 = arith.subf %103, %106 : vector<2x8x8xf32>
    %108 = math.exp %107 : vector<2x8x8xf32>
    %cst_31 = arith.constant dense<0.000000e+00> : vector<2x8xf32>
    %109 = vector.multi_reduction <add>, %108, %cst_31 [2] : vector<2x8x8xf32> to vector<2x8xf32>
    %110 = vector.shape_cast %109 : vector<2x8xf32> to vector<2x8x1xf32>
    %111 = tpu.reciprocal %110 {approx = true} : vector<2x8x1xf32> -> vector<2x8x1xf32>
    %112 = vector.broadcast %111 : vector<2x8x1xf32> to vector<2x8x8xf32>
    %113 = arith.mulf %108, %112 : vector<2x8x8xf32>
    %114 = arith.truncf %113 : vector<2x8x8xf32> to vector<2x8x8xbf16>
    "tpu.trace_start"() <{level = 10 : i32, message = "bqk,bkd->bqd"}> : () -> ()
    %cst_32 = arith.constant dense<0.000000e+00> : vector<2x8x8xf32>
    %115 = tpu.matmul %114, %101, %cst_32 {dimension_numbers = #tpu.dot_dimension_numbers<[2], [1], [1], [2], [0, 0, 0, 1, 1, 2], [0], [0]>} : vector<2x8x8xbf16>, vector<2x8x8xbf16>, vector<2x8x8xf32> -> vector<2x8x8xf32>
    "tpu.trace_stop"() : () -> ()
    %116 = vector.shape_cast %115 : vector<2x8x8xf32> to vector<16x8xf32>
    %117 = arith.truncf %116 : vector<16x8xf32> to vector<16x8xbf16>
    %118 = vector.extract_strided_slice %53 {offsets = [16, 0], sizes = [8, 32], strides = [1, 1]} : vector<32x32xbf16> to vector<8x32xbf16>
    %cst_33 = arith.constant dense<0.000000e+00> : vector<16x32xf32>
    %119 = tpu.matmul %117, %118, %cst_33 {dimension_numbers = #tpu.dot_dimension_numbers<[1], [0], [0], [1], [0, 0, 1, 1], [], []>} : vector<16x8xbf16>, vector<8x32xbf16>, vector<16x32xf32> -> vector<16x32xf32>
    %120 = arith.addf %98, %119 : vector<16x32xf32>
    %121 = vector.extract_strided_slice %45 {offsets = [0, 0, 24], sizes = [2, 8, 8], strides = [1, 1, 1]} : vector<2x8x32xbf16> to vector<2x8x8xbf16>
    %122 = vector.extract_strided_slice %48 {offsets = [0, 0, 24], sizes = [2, 8, 8], strides = [1, 1, 1]} : vector<2x8x32xbf16> to vector<2x8x8xbf16>
    %123 = vector.extract_strided_slice %51 {offsets = [0, 0, 24], sizes = [2, 8, 8], strides = [1, 1, 1]} : vector<2x8x32xbf16> to vector<2x8x8xbf16>
    "tpu.trace_start"() <{level = 10 : i32, message = "bqd,bkd->bqk"}> : () -> ()
    %cst_34 = arith.constant dense<0.000000e+00> : vector<2x8x8xf32>
    %124 = tpu.matmul %121, %122, %cst_34 {dimension_numbers = #tpu.dot_dimension_numbers<[2], [2], [1], [1], [0, 0, 0, 1, 1, 1], [0], [0]>} : vector<2x8x8xbf16>, vector<2x8x8xbf16>, vector<2x8x8xf32> -> vector<2x8x8xf32>
    "tpu.trace_stop"() : () -> ()
    %125 = arith.addf %124, %6 : vector<2x8x8xf32>
    %cst_35 = arith.constant dense<0xFF800000> : vector<2x8xf32>
    %126 = vector.multi_reduction <maximumf>, %125, %cst_35 [2] : vector<2x8x8xf32> to vector<2x8xf32>
    %127 = vector.shape_cast %126 : vector<2x8xf32> to vector<2x8x1xf32>
    %128 = vector.broadcast %127 : vector<2x8x1xf32> to vector<2x8x8xf32>
    %129 = arith.subf %125, %128 : vector<2x8x8xf32>
    %130 = math.exp %129 : vector<2x8x8xf32>
    %cst_36 = arith.constant dense<0.000000e+00> : vector<2x8xf32>
    %131 = vector.multi_reduction <add>, %130, %cst_36 [2] : vector<2x8x8xf32> to vector<2x8xf32>
    %132 = vector.shape_cast %131 : vector<2x8xf32> to vector<2x8x1xf32>
    %133 = tpu.reciprocal %132 {approx = true} : vector<2x8x1xf32> -> vector<2x8x1xf32>
    %134 = vector.broadcast %133 : vector<2x8x1xf32> to vector<2x8x8xf32>
    %135 = arith.mulf %130, %134 : vector<2x8x8xf32>
    %136 = arith.truncf %135 : vector<2x8x8xf32> to vector<2x8x8xbf16>
    "tpu.trace_start"() <{level = 10 : i32, message = "bqk,bkd->bqd"}> : () -> ()
    %cst_37 = arith.constant dense<0.000000e+00> : vector<2x8x8xf32>
    %137 = tpu.matmul %136, %123, %cst_37 {dimension_numbers = #tpu.dot_dimension_numbers<[2], [1], [1], [2], [0, 0, 0, 1, 1, 2], [0], [0]>} : vector<2x8x8xbf16>, vector<2x8x8xbf16>, vector<2x8x8xf32> -> vector<2x8x8xf32>
    "tpu.trace_stop"() : () -> ()
    %138 = vector.shape_cast %137 : vector<2x8x8xf32> to vector<16x8xf32>
    %139 = arith.truncf %138 : vector<16x8xf32> to vector<16x8xbf16>
    %140 = vector.extract_strided_slice %53 {offsets = [24, 0], sizes = [8, 32], strides = [1, 1]} : vector<32x32xbf16> to vector<8x32xbf16>
    %cst_38 = arith.constant dense<0.000000e+00> : vector<16x32xf32>
    %141 = tpu.matmul %139, %140, %cst_38 {dimension_numbers = #tpu.dot_dimension_numbers<[1], [0], [0], [1], [0, 0, 1, 1], [], []>} : vector<16x8xbf16>, vector<8x32xbf16>, vector<16x32xf32> -> vector<16x32xf32>
    %142 = arith.addf %120, %141 : vector<16x32xf32>
    %143 = arith.addf %0, %142 : vector<16x32xf32>
    %144 = vector.broadcast %13 : vector<1x32xf32> to vector<16x32xf32>
    %145 = arith.addf %143, %144 : vector<16x32xf32>
    %cst_39 = arith.constant dense<0.000000e+00> : vector<16xf32>
    %146 = vector.multi_reduction <add>, %145, %cst_39 [1] : vector<16x32xf32> to vector<16xf32>
    %147 = vector.shape_cast %146 : vector<16xf32> to vector<16x1xf32>
    %cst_40 = arith.constant 3.200000e+01 : f32
    %148 = vector.broadcast %cst_40 : f32 to vector<16x1xf32>
    %149 = arith.divf %147, %148 : vector<16x1xf32>
    %150 = vector.broadcast %149 : vector<16x1xf32> to vector<16x32xf32>
    %151 = arith.subf %145, %150 : vector<16x32xf32>
    %152 = arith.mulf %151, %151 : vector<16x32xf32>
    %cst_41 = arith.constant dense<0.000000e+00> : vector<16xf32>
    %153 = vector.multi_reduction <add>, %152, %cst_41 [1] : vector<16x32xf32> to vector<16xf32>
    %154 = vector.shape_cast %153 : vector<16xf32> to vector<16x1xf32>
    %cst_42 = arith.constant 3.200000e+01 : f32
    %155 = vector.broadcast %cst_42 : f32 to vector<16x1xf32>
    %156 = arith.divf %154, %155 : vector<16x1xf32>
    %157 = vector.broadcast %149 : vector<16x1xf32> to vector<16x32xf32>
    %158 = arith.subf %145, %157 : vector<16x32xf32>
    %cst_43 = arith.constant 9.99999974E-6 : f32
    %159 = vector.broadcast %cst_43 : f32 to vector<16x1xf32>
    %160 = arith.addf %156, %159 : vector<16x1xf32>
    %161 = math.rsqrt %160 : vector<16x1xf32>
    %162 = vector.broadcast %161 : vector<16x1xf32> to vector<16x32xf32>
    %163 = arith.mulf %158, %162 : vector<16x32xf32>
    %164 = vector.broadcast %11 : vector<1x32xf32> to vector<16x32xf32>
    %165 = arith.mulf %163, %164 : vector<16x32xf32>
    %166 = vector.broadcast %12 : vector<1x32xf32> to vector<16x32xf32>
    %167 = arith.addf %165, %166 : vector<16x32xf32>
    %168 = arith.truncf %167 : vector<16x32xf32> to vector<16x32xbf16>
    %c0_44 = arith.constant 0 : index
    %c0_45 = arith.constant 0 : index
    %c0_46 = arith.constant 0 : index
    %169 = vector.load %arg4[%c0_44, %c0_45, %c0_46] : memref<2x32x128xbf16, #tpu.memory_space<vmem>>, vector<1x32x128xbf16>
    %170 = vector.shape_cast %169 : vector<1x32x128xbf16> to vector<32x128xbf16>
    %cst_47 = arith.constant dense<0.000000e+00> : vector<16x128xf32>
    %171 = tpu.matmul %168, %170, %cst_47 {dimension_numbers = #tpu.dot_dimension_numbers<[1], [0], [0], [1], [0, 0, 1, 1], [], []>} : vector<16x32xbf16>, vector<32x128xbf16>, vector<16x128xf32> -> vector<16x128xf32>
    %c0_48 = arith.constant 0 : index
    %c0_49 = arith.constant 0 : index
    %c0_50 = arith.constant 0 : index
    %172 = vector.load %arg7[%c0_48, %c0_49, %c0_50] : memref<2x1x128xf32, #tpu.memory_space<vmem>>, vector<1x1x128xf32>
    %173 = vector.shape_cast %172 : vector<1x1x128xf32> to vector<1x128xf32>
    %174 = vector.broadcast %173 : vector<1x128xf32> to vector<16x128xf32>
    %175 = arith.addf %171, %174 : vector<16x128xf32>
    %cst_51 = arith.constant 5.000000e-01 : f32
    %176 = vector.broadcast %cst_51 : f32 to vector<16x128xf32>
    %177 = arith.mulf %176, %175 : vector<16x128xf32>
    %cst_52 = arith.constant 0.707106769 : f32
    %178 = vector.broadcast %cst_52 : f32 to vector<16x128xf32>
    %179 = arith.mulf %175, %178 : vector<16x128xf32>
    %180 = math.erf %179 : vector<16x128xf32>
    %cst_53 = arith.constant 1.000000e+00 : f32
    %181 = vector.broadcast %cst_53 : f32 to vector<16x128xf32>
    %182 = arith.addf %181, %180 : vector<16x128xf32>
    %183 = arith.mulf %177, %182 : vector<16x128xf32>
    %184 = arith.truncf %183 : vector<16x128xf32> to vector<16x128xbf16>
    %c0_54 = arith.constant 0 : index
    %c0_55 = arith.constant 0 : index
    %c0_56 = arith.constant 0 : index
    %185 = vector.load %arg5[%c0_54, %c0_55, %c0_56] : memref<2x128x32xbf16, #tpu.memory_space<vmem>>, vector<1x128x32xbf16>
    %186 = vector.shape_cast %185 : vector<1x128x32xbf16> to vector<128x32xbf16>
    %cst_57 = arith.constant dense<0.000000e+00> : vector<16x32xf32>
    %187 = tpu.matmul %184, %186, %cst_57 {dimension_numbers = #tpu.dot_dimension_numbers<[1], [0], [0], [1], [0, 0, 1, 1], [], []>} : vector<16x128xbf16>, vector<128x32xbf16>, vector<16x32xf32> -> vector<16x32xf32>
    %188 = vector.broadcast %14 : vector<1x32xf32> to vector<16x32xf32>
    %189 = arith.addf %187, %188 : vector<16x32xf32>
    %190 = arith.addf %145, %189 : vector<16x32xf32>
    %c1 = arith.constant 1 : index
    %c0_58 = arith.constant 0 : index
    %c0_59 = arith.constant 0 : index
    %191 = vector.load %arg6[%c1, %c0_58, %c0_59] : memref<2x6x32xf32, #tpu.memory_space<vmem>>, vector<1x6x32xf32>
    %192 = vector.shape_cast %191 : vector<1x6x32xf32> to vector<6x32xf32>
    %193 = vector.extract_strided_slice %192 {offsets = [0, 0], sizes = [1, 32], strides = [1, 1]} : vector<6x32xf32> to vector<1x32xf32>
    %194 = vector.extract_strided_slice %192 {offsets = [1, 0], sizes = [1, 32], strides = [1, 1]} : vector<6x32xf32> to vector<1x32xf32>
    %195 = vector.extract_strided_slice %192 {offsets = [2, 0], sizes = [1, 32], strides = [1, 1]} : vector<6x32xf32> to vector<1x32xf32>
    %196 = vector.extract_strided_slice %192 {offsets = [3, 0], sizes = [1, 32], strides = [1, 1]} : vector<6x32xf32> to vector<1x32xf32>
    %197 = vector.extract_strided_slice %192 {offsets = [4, 0], sizes = [1, 32], strides = [1, 1]} : vector<6x32xf32> to vector<1x32xf32>
    %198 = vector.extract_strided_slice %192 {offsets = [5, 0], sizes = [1, 32], strides = [1, 1]} : vector<6x32xf32> to vector<1x32xf32>
    %cst_60 = arith.constant dense<0.000000e+00> : vector<16xf32>
    %199 = vector.multi_reduction <add>, %190, %cst_60 [1] : vector<16x32xf32> to vector<16xf32>
    %200 = vector.shape_cast %199 : vector<16xf32> to vector<16x1xf32>
    %cst_61 = arith.constant 3.200000e+01 : f32
    %201 = vector.broadcast %cst_61 : f32 to vector<16x1xf32>
    %202 = arith.divf %200, %201 : vector<16x1xf32>
    %203 = vector.broadcast %202 : vector<16x1xf32> to vector<16x32xf32>
    %204 = arith.subf %190, %203 : vector<16x32xf32>
    %205 = arith.mulf %204, %204 : vector<16x32xf32>
    %cst_62 = arith.constant dense<0.000000e+00> : vector<16xf32>
    %206 = vector.multi_reduction <add>, %205, %cst_62 [1] : vector<16x32xf32> to vector<16xf32>
    %207 = vector.shape_cast %206 : vector<16xf32> to vector<16x1xf32>
    %cst_63 = arith.constant 3.200000e+01 : f32
    %208 = vector.broadcast %cst_63 : f32 to vector<16x1xf32>
    %209 = arith.divf %207, %208 : vector<16x1xf32>
    %210 = vector.broadcast %202 : vector<16x1xf32> to vector<16x32xf32>
    %211 = arith.subf %190, %210 : vector<16x32xf32>
    %cst_64 = arith.constant 9.99999974E-6 : f32
    %212 = vector.broadcast %cst_64 : f32 to vector<16x1xf32>
    %213 = arith.addf %209, %212 : vector<16x1xf32>
    %214 = math.rsqrt %213 : vector<16x1xf32>
    %215 = vector.broadcast %214 : vector<16x1xf32> to vector<16x32xf32>
    %216 = arith.mulf %211, %215 : vector<16x32xf32>
    %217 = vector.broadcast %193 : vector<1x32xf32> to vector<16x32xf32>
    %218 = arith.mulf %216, %217 : vector<16x32xf32>
    %219 = vector.broadcast %194 : vector<1x32xf32> to vector<16x32xf32>
    %220 = arith.addf %218, %219 : vector<16x32xf32>
    %221 = arith.truncf %220 : vector<16x32xf32> to vector<16x32xbf16>
    %c1_65 = arith.constant 1 : index
    %c0_66 = arith.constant 0 : index
    %c0_67 = arith.constant 0 : index
    %222 = vector.load %arg2[%c1_65, %c0_66, %c0_67] : memref<2x32x96xbf16, #tpu.memory_space<vmem>>, vector<1x32x96xbf16>
    %223 = vector.shape_cast %222 : vector<1x32x96xbf16> to vector<32x96xbf16>
    %cst_68 = arith.constant dense<0.000000e+00> : vector<16x96xf32>
    %224 = tpu.matmul %221, %223, %cst_68 {dimension_numbers = #tpu.dot_dimension_numbers<[1], [0], [0], [1], [0, 0, 1, 1], [], []>} : vector<16x32xbf16>, vector<32x96xbf16>, vector<16x96xf32> -> vector<16x96xf32>
    %225 = vector.extract_strided_slice %224 {offsets = [0, 0], sizes = [16, 32], strides = [1, 1]} : vector<16x96xf32> to vector<16x32xf32>
    %cst_69 = arith.constant 0.353553385 : f32
    %226 = vector.broadcast %cst_69 : f32 to vector<16x32xf32>
    %227 = arith.mulf %225, %226 : vector<16x32xf32>
    %228 = vector.shape_cast %227 : vector<16x32xf32> to vector<2x8x32xf32>
    %229 = arith.truncf %228 : vector<2x8x32xf32> to vector<2x8x32xbf16>
    %230 = vector.extract_strided_slice %224 {offsets = [0, 32], sizes = [16, 32], strides = [1, 1]} : vector<16x96xf32> to vector<16x32xf32>
    %231 = vector.shape_cast %230 : vector<16x32xf32> to vector<2x8x32xf32>
    %232 = arith.truncf %231 : vector<2x8x32xf32> to vector<2x8x32xbf16>
    %233 = vector.extract_strided_slice %224 {offsets = [0, 64], sizes = [16, 32], strides = [1, 1]} : vector<16x96xf32> to vector<16x32xf32>
    %234 = vector.shape_cast %233 : vector<16x32xf32> to vector<2x8x32xf32>
    %235 = arith.truncf %234 : vector<2x8x32xf32> to vector<2x8x32xbf16>
    %c1_70 = arith.constant 1 : index
    %c0_71 = arith.constant 0 : index
    %c0_72 = arith.constant 0 : index
    %236 = vector.load %arg3[%c1_70, %c0_71, %c0_72] : memref<2x32x32xbf16, #tpu.memory_space<vmem>>, vector<1x32x32xbf16>
    %237 = vector.shape_cast %236 : vector<1x32x32xbf16> to vector<32x32xbf16>
    %cst_73 = arith.constant 0.000000e+00 : f32
    %238 = vector.broadcast %cst_73 : f32 to vector<16x32xf32>
    %239 = vector.extract_strided_slice %229 {offsets = [0, 0, 0], sizes = [2, 8, 8], strides = [1, 1, 1]} : vector<2x8x32xbf16> to vector<2x8x8xbf16>
    %240 = vector.extract_strided_slice %232 {offsets = [0, 0, 0], sizes = [2, 8, 8], strides = [1, 1, 1]} : vector<2x8x32xbf16> to vector<2x8x8xbf16>
    %241 = vector.extract_strided_slice %235 {offsets = [0, 0, 0], sizes = [2, 8, 8], strides = [1, 1, 1]} : vector<2x8x32xbf16> to vector<2x8x8xbf16>
    "tpu.trace_start"() <{level = 10 : i32, message = "bqd,bkd->bqk"}> : () -> ()
    %cst_74 = arith.constant dense<0.000000e+00> : vector<2x8x8xf32>
    %242 = tpu.matmul %239, %240, %cst_74 {dimension_numbers = #tpu.dot_dimension_numbers<[2], [2], [1], [1], [0, 0, 0, 1, 1, 1], [0], [0]>} : vector<2x8x8xbf16>, vector<2x8x8xbf16>, vector<2x8x8xf32> -> vector<2x8x8xf32>
    "tpu.trace_stop"() : () -> ()
    %243 = arith.addf %242, %6 : vector<2x8x8xf32>
    %cst_75 = arith.constant dense<0xFF800000> : vector<2x8xf32>
    %244 = vector.multi_reduction <maximumf>, %243, %cst_75 [2] : vector<2x8x8xf32> to vector<2x8xf32>
    %245 = vector.shape_cast %244 : vector<2x8xf32> to vector<2x8x1xf32>
    %246 = vector.broadcast %245 : vector<2x8x1xf32> to vector<2x8x8xf32>
    %247 = arith.subf %243, %246 : vector<2x8x8xf32>
    %248 = math.exp %247 : vector<2x8x8xf32>
    %cst_76 = arith.constant dense<0.000000e+00> : vector<2x8xf32>
    %249 = vector.multi_reduction <add>, %248, %cst_76 [2] : vector<2x8x8xf32> to vector<2x8xf32>
    %250 = vector.shape_cast %249 : vector<2x8xf32> to vector<2x8x1xf32>
    %251 = tpu.reciprocal %250 {approx = true} : vector<2x8x1xf32> -> vector<2x8x1xf32>
    %252 = vector.broadcast %251 : vector<2x8x1xf32> to vector<2x8x8xf32>
    %253 = arith.mulf %248, %252 : vector<2x8x8xf32>
    %254 = arith.truncf %253 : vector<2x8x8xf32> to vector<2x8x8xbf16>
    "tpu.trace_start"() <{level = 10 : i32, message = "bqk,bkd->bqd"}> : () -> ()
    %cst_77 = arith.constant dense<0.000000e+00> : vector<2x8x8xf32>
    %255 = tpu.matmul %254, %241, %cst_77 {dimension_numbers = #tpu.dot_dimension_numbers<[2], [1], [1], [2], [0, 0, 0, 1, 1, 2], [0], [0]>} : vector<2x8x8xbf16>, vector<2x8x8xbf16>, vector<2x8x8xf32> -> vector<2x8x8xf32>
    "tpu.trace_stop"() : () -> ()
    %256 = vector.shape_cast %255 : vector<2x8x8xf32> to vector<16x8xf32>
    %257 = arith.truncf %256 : vector<16x8xf32> to vector<16x8xbf16>
    %258 = vector.extract_strided_slice %237 {offsets = [0, 0], sizes = [8, 32], strides = [1, 1]} : vector<32x32xbf16> to vector<8x32xbf16>
    %cst_78 = arith.constant dense<0.000000e+00> : vector<16x32xf32>
    %259 = tpu.matmul %257, %258, %cst_78 {dimension_numbers = #tpu.dot_dimension_numbers<[1], [0], [0], [1], [0, 0, 1, 1], [], []>} : vector<16x8xbf16>, vector<8x32xbf16>, vector<16x32xf32> -> vector<16x32xf32>
    %260 = arith.addf %238, %259 : vector<16x32xf32>
    %261 = vector.extract_strided_slice %229 {offsets = [0, 0, 8], sizes = [2, 8, 8], strides = [1, 1, 1]} : vector<2x8x32xbf16> to vector<2x8x8xbf16>
    %262 = vector.extract_strided_slice %232 {offsets = [0, 0, 8], sizes = [2, 8, 8], strides = [1, 1, 1]} : vector<2x8x32xbf16> to vector<2x8x8xbf16>
    %263 = vector.extract_strided_slice %235 {offsets = [0, 0, 8], sizes = [2, 8, 8], strides = [1, 1, 1]} : vector<2x8x32xbf16> to vector<2x8x8xbf16>
    "tpu.trace_start"() <{level = 10 : i32, message = "bqd,bkd->bqk"}> : () -> ()
    %cst_79 = arith.constant dense<0.000000e+00> : vector<2x8x8xf32>
    %264 = tpu.matmul %261, %262, %cst_79 {dimension_numbers = #tpu.dot_dimension_numbers<[2], [2], [1], [1], [0, 0, 0, 1, 1, 1], [0], [0]>} : vector<2x8x8xbf16>, vector<2x8x8xbf16>, vector<2x8x8xf32> -> vector<2x8x8xf32>
    "tpu.trace_stop"() : () -> ()
    %265 = arith.addf %264, %6 : vector<2x8x8xf32>
    %cst_80 = arith.constant dense<0xFF800000> : vector<2x8xf32>
    %266 = vector.multi_reduction <maximumf>, %265, %cst_80 [2] : vector<2x8x8xf32> to vector<2x8xf32>
    %267 = vector.shape_cast %266 : vector<2x8xf32> to vector<2x8x1xf32>
    %268 = vector.broadcast %267 : vector<2x8x1xf32> to vector<2x8x8xf32>
    %269 = arith.subf %265, %268 : vector<2x8x8xf32>
    %270 = math.exp %269 : vector<2x8x8xf32>
    %cst_81 = arith.constant dense<0.000000e+00> : vector<2x8xf32>
    %271 = vector.multi_reduction <add>, %270, %cst_81 [2] : vector<2x8x8xf32> to vector<2x8xf32>
    %272 = vector.shape_cast %271 : vector<2x8xf32> to vector<2x8x1xf32>
    %273 = tpu.reciprocal %272 {approx = true} : vector<2x8x1xf32> -> vector<2x8x1xf32>
    %274 = vector.broadcast %273 : vector<2x8x1xf32> to vector<2x8x8xf32>
    %275 = arith.mulf %270, %274 : vector<2x8x8xf32>
    %276 = arith.truncf %275 : vector<2x8x8xf32> to vector<2x8x8xbf16>
    "tpu.trace_start"() <{level = 10 : i32, message = "bqk,bkd->bqd"}> : () -> ()
    %cst_82 = arith.constant dense<0.000000e+00> : vector<2x8x8xf32>
    %277 = tpu.matmul %276, %263, %cst_82 {dimension_numbers = #tpu.dot_dimension_numbers<[2], [1], [1], [2], [0, 0, 0, 1, 1, 2], [0], [0]>} : vector<2x8x8xbf16>, vector<2x8x8xbf16>, vector<2x8x8xf32> -> vector<2x8x8xf32>
    "tpu.trace_stop"() : () -> ()
    %278 = vector.shape_cast %277 : vector<2x8x8xf32> to vector<16x8xf32>
    %279 = arith.truncf %278 : vector<16x8xf32> to vector<16x8xbf16>
    %280 = vector.extract_strided_slice %237 {offsets = [8, 0], sizes = [8, 32], strides = [1, 1]} : vector<32x32xbf16> to vector<8x32xbf16>
    %cst_83 = arith.constant dense<0.000000e+00> : vector<16x32xf32>
    %281 = tpu.matmul %279, %280, %cst_83 {dimension_numbers = #tpu.dot_dimension_numbers<[1], [0], [0], [1], [0, 0, 1, 1], [], []>} : vector<16x8xbf16>, vector<8x32xbf16>, vector<16x32xf32> -> vector<16x32xf32>
    %282 = arith.addf %260, %281 : vector<16x32xf32>
    %283 = vector.extract_strided_slice %229 {offsets = [0, 0, 16], sizes = [2, 8, 8], strides = [1, 1, 1]} : vector<2x8x32xbf16> to vector<2x8x8xbf16>
    %284 = vector.extract_strided_slice %232 {offsets = [0, 0, 16], sizes = [2, 8, 8], strides = [1, 1, 1]} : vector<2x8x32xbf16> to vector<2x8x8xbf16>
    %285 = vector.extract_strided_slice %235 {offsets = [0, 0, 16], sizes = [2, 8, 8], strides = [1, 1, 1]} : vector<2x8x32xbf16> to vector<2x8x8xbf16>
    "tpu.trace_start"() <{level = 10 : i32, message = "bqd,bkd->bqk"}> : () -> ()
    %cst_84 = arith.constant dense<0.000000e+00> : vector<2x8x8xf32>
    %286 = tpu.matmul %283, %284, %cst_84 {dimension_numbers = #tpu.dot_dimension_numbers<[2], [2], [1], [1], [0, 0, 0, 1, 1, 1], [0], [0]>} : vector<2x8x8xbf16>, vector<2x8x8xbf16>, vector<2x8x8xf32> -> vector<2x8x8xf32>
    "tpu.trace_stop"() : () -> ()
    %287 = arith.addf %286, %6 : vector<2x8x8xf32>
    %cst_85 = arith.constant dense<0xFF800000> : vector<2x8xf32>
    %288 = vector.multi_reduction <maximumf>, %287, %cst_85 [2] : vector<2x8x8xf32> to vector<2x8xf32>
    %289 = vector.shape_cast %288 : vector<2x8xf32> to vector<2x8x1xf32>
    %290 = vector.broadcast %289 : vector<2x8x1xf32> to vector<2x8x8xf32>
    %291 = arith.subf %287, %290 : vector<2x8x8xf32>
    %292 = math.exp %291 : vector<2x8x8xf32>
    %cst_86 = arith.constant dense<0.000000e+00> : vector<2x8xf32>
    %293 = vector.multi_reduction <add>, %292, %cst_86 [2] : vector<2x8x8xf32> to vector<2x8xf32>
    %294 = vector.shape_cast %293 : vector<2x8xf32> to vector<2x8x1xf32>
    %295 = tpu.reciprocal %294 {approx = true} : vector<2x8x1xf32> -> vector<2x8x1xf32>
    %296 = vector.broadcast %295 : vector<2x8x1xf32> to vector<2x8x8xf32>
    %297 = arith.mulf %292, %296 : vector<2x8x8xf32>
    %298 = arith.truncf %297 : vector<2x8x8xf32> to vector<2x8x8xbf16>
    "tpu.trace_start"() <{level = 10 : i32, message = "bqk,bkd->bqd"}> : () -> ()
    %cst_87 = arith.constant dense<0.000000e+00> : vector<2x8x8xf32>
    %299 = tpu.matmul %298, %285, %cst_87 {dimension_numbers = #tpu.dot_dimension_numbers<[2], [1], [1], [2], [0, 0, 0, 1, 1, 2], [0], [0]>} : vector<2x8x8xbf16>, vector<2x8x8xbf16>, vector<2x8x8xf32> -> vector<2x8x8xf32>
    "tpu.trace_stop"() : () -> ()
    %300 = vector.shape_cast %299 : vector<2x8x8xf32> to vector<16x8xf32>
    %301 = arith.truncf %300 : vector<16x8xf32> to vector<16x8xbf16>
    %302 = vector.extract_strided_slice %237 {offsets = [16, 0], sizes = [8, 32], strides = [1, 1]} : vector<32x32xbf16> to vector<8x32xbf16>
    %cst_88 = arith.constant dense<0.000000e+00> : vector<16x32xf32>
    %303 = tpu.matmul %301, %302, %cst_88 {dimension_numbers = #tpu.dot_dimension_numbers<[1], [0], [0], [1], [0, 0, 1, 1], [], []>} : vector<16x8xbf16>, vector<8x32xbf16>, vector<16x32xf32> -> vector<16x32xf32>
    %304 = arith.addf %282, %303 : vector<16x32xf32>
    %305 = vector.extract_strided_slice %229 {offsets = [0, 0, 24], sizes = [2, 8, 8], strides = [1, 1, 1]} : vector<2x8x32xbf16> to vector<2x8x8xbf16>
    %306 = vector.extract_strided_slice %232 {offsets = [0, 0, 24], sizes = [2, 8, 8], strides = [1, 1, 1]} : vector<2x8x32xbf16> to vector<2x8x8xbf16>
    %307 = vector.extract_strided_slice %235 {offsets = [0, 0, 24], sizes = [2, 8, 8], strides = [1, 1, 1]} : vector<2x8x32xbf16> to vector<2x8x8xbf16>
    "tpu.trace_start"() <{level = 10 : i32, message = "bqd,bkd->bqk"}> : () -> ()
    %cst_89 = arith.constant dense<0.000000e+00> : vector<2x8x8xf32>
    %308 = tpu.matmul %305, %306, %cst_89 {dimension_numbers = #tpu.dot_dimension_numbers<[2], [2], [1], [1], [0, 0, 0, 1, 1, 1], [0], [0]>} : vector<2x8x8xbf16>, vector<2x8x8xbf16>, vector<2x8x8xf32> -> vector<2x8x8xf32>
    "tpu.trace_stop"() : () -> ()
    %309 = arith.addf %308, %6 : vector<2x8x8xf32>
    %cst_90 = arith.constant dense<0xFF800000> : vector<2x8xf32>
    %310 = vector.multi_reduction <maximumf>, %309, %cst_90 [2] : vector<2x8x8xf32> to vector<2x8xf32>
    %311 = vector.shape_cast %310 : vector<2x8xf32> to vector<2x8x1xf32>
    %312 = vector.broadcast %311 : vector<2x8x1xf32> to vector<2x8x8xf32>
    %313 = arith.subf %309, %312 : vector<2x8x8xf32>
    %314 = math.exp %313 : vector<2x8x8xf32>
    %cst_91 = arith.constant dense<0.000000e+00> : vector<2x8xf32>
    %315 = vector.multi_reduction <add>, %314, %cst_91 [2] : vector<2x8x8xf32> to vector<2x8xf32>
    %316 = vector.shape_cast %315 : vector<2x8xf32> to vector<2x8x1xf32>
    %317 = tpu.reciprocal %316 {approx = true} : vector<2x8x1xf32> -> vector<2x8x1xf32>
    %318 = vector.broadcast %317 : vector<2x8x1xf32> to vector<2x8x8xf32>
    %319 = arith.mulf %314, %318 : vector<2x8x8xf32>
    %320 = arith.truncf %319 : vector<2x8x8xf32> to vector<2x8x8xbf16>
    "tpu.trace_start"() <{level = 10 : i32, message = "bqk,bkd->bqd"}> : () -> ()
    %cst_92 = arith.constant dense<0.000000e+00> : vector<2x8x8xf32>
    %321 = tpu.matmul %320, %307, %cst_92 {dimension_numbers = #tpu.dot_dimension_numbers<[2], [1], [1], [2], [0, 0, 0, 1, 1, 2], [0], [0]>} : vector<2x8x8xbf16>, vector<2x8x8xbf16>, vector<2x8x8xf32> -> vector<2x8x8xf32>
    "tpu.trace_stop"() : () -> ()
    %322 = vector.shape_cast %321 : vector<2x8x8xf32> to vector<16x8xf32>
    %323 = arith.truncf %322 : vector<16x8xf32> to vector<16x8xbf16>
    %324 = vector.extract_strided_slice %237 {offsets = [24, 0], sizes = [8, 32], strides = [1, 1]} : vector<32x32xbf16> to vector<8x32xbf16>
    %cst_93 = arith.constant dense<0.000000e+00> : vector<16x32xf32>
    %325 = tpu.matmul %323, %324, %cst_93 {dimension_numbers = #tpu.dot_dimension_numbers<[1], [0], [0], [1], [0, 0, 1, 1], [], []>} : vector<16x8xbf16>, vector<8x32xbf16>, vector<16x32xf32> -> vector<16x32xf32>
    %326 = arith.addf %304, %325 : vector<16x32xf32>
    %327 = arith.addf %190, %326 : vector<16x32xf32>
    %328 = vector.broadcast %197 : vector<1x32xf32> to vector<16x32xf32>
    %329 = arith.addf %327, %328 : vector<16x32xf32>
    %cst_94 = arith.constant dense<0.000000e+00> : vector<16xf32>
    %330 = vector.multi_reduction <add>, %329, %cst_94 [1] : vector<16x32xf32> to vector<16xf32>
    %331 = vector.shape_cast %330 : vector<16xf32> to vector<16x1xf32>
    %cst_95 = arith.constant 3.200000e+01 : f32
    %332 = vector.broadcast %cst_95 : f32 to vector<16x1xf32>
    %333 = arith.divf %331, %332 : vector<16x1xf32>
    %334 = vector.broadcast %333 : vector<16x1xf32> to vector<16x32xf32>
    %335 = arith.subf %329, %334 : vector<16x32xf32>
    %336 = arith.mulf %335, %335 : vector<16x32xf32>
    %cst_96 = arith.constant dense<0.000000e+00> : vector<16xf32>
    %337 = vector.multi_reduction <add>, %336, %cst_96 [1] : vector<16x32xf32> to vector<16xf32>
    %338 = vector.shape_cast %337 : vector<16xf32> to vector<16x1xf32>
    %cst_97 = arith.constant 3.200000e+01 : f32
    %339 = vector.broadcast %cst_97 : f32 to vector<16x1xf32>
    %340 = arith.divf %338, %339 : vector<16x1xf32>
    %341 = vector.broadcast %333 : vector<16x1xf32> to vector<16x32xf32>
    %342 = arith.subf %329, %341 : vector<16x32xf32>
    %cst_98 = arith.constant 9.99999974E-6 : f32
    %343 = vector.broadcast %cst_98 : f32 to vector<16x1xf32>
    %344 = arith.addf %340, %343 : vector<16x1xf32>
    %345 = math.rsqrt %344 : vector<16x1xf32>
    %346 = vector.broadcast %345 : vector<16x1xf32> to vector<16x32xf32>
    %347 = arith.mulf %342, %346 : vector<16x32xf32>
    %348 = vector.broadcast %195 : vector<1x32xf32> to vector<16x32xf32>
    %349 = arith.mulf %347, %348 : vector<16x32xf32>
    %350 = vector.broadcast %196 : vector<1x32xf32> to vector<16x32xf32>
    %351 = arith.addf %349, %350 : vector<16x32xf32>
    %352 = arith.truncf %351 : vector<16x32xf32> to vector<16x32xbf16>
    %c1_99 = arith.constant 1 : index
    %c0_100 = arith.constant 0 : index
    %c0_101 = arith.constant 0 : index
    %353 = vector.load %arg4[%c1_99, %c0_100, %c0_101] : memref<2x32x128xbf16, #tpu.memory_space<vmem>>, vector<1x32x128xbf16>
    %354 = vector.shape_cast %353 : vector<1x32x128xbf16> to vector<32x128xbf16>
    %cst_102 = arith.constant dense<0.000000e+00> : vector<16x128xf32>
    %355 = tpu.matmul %352, %354, %cst_102 {dimension_numbers = #tpu.dot_dimension_numbers<[1], [0], [0], [1], [0, 0, 1, 1], [], []>} : vector<16x32xbf16>, vector<32x128xbf16>, vector<16x128xf32> -> vector<16x128xf32>
    %c1_103 = arith.constant 1 : index
    %c0_104 = arith.constant 0 : index
    %c0_105 = arith.constant 0 : index
    %356 = vector.load %arg7[%c1_103, %c0_104, %c0_105] : memref<2x1x128xf32, #tpu.memory_space<vmem>>, vector<1x1x128xf32>
    %357 = vector.shape_cast %356 : vector<1x1x128xf32> to vector<1x128xf32>
    %358 = vector.broadcast %357 : vector<1x128xf32> to vector<16x128xf32>
    %359 = arith.addf %355, %358 : vector<16x128xf32>
    %cst_106 = arith.constant 5.000000e-01 : f32
    %360 = vector.broadcast %cst_106 : f32 to vector<16x128xf32>
    %361 = arith.mulf %360, %359 : vector<16x128xf32>
    %cst_107 = arith.constant 0.707106769 : f32
    %362 = vector.broadcast %cst_107 : f32 to vector<16x128xf32>
    %363 = arith.mulf %359, %362 : vector<16x128xf32>
    %364 = math.erf %363 : vector<16x128xf32>
    %cst_108 = arith.constant 1.000000e+00 : f32
    %365 = vector.broadcast %cst_108 : f32 to vector<16x128xf32>
    %366 = arith.addf %365, %364 : vector<16x128xf32>
    %367 = arith.mulf %361, %366 : vector<16x128xf32>
    %368 = arith.truncf %367 : vector<16x128xf32> to vector<16x128xbf16>
    %c1_109 = arith.constant 1 : index
    %c0_110 = arith.constant 0 : index
    %c0_111 = arith.constant 0 : index
    %369 = vector.load %arg5[%c1_109, %c0_110, %c0_111] : memref<2x128x32xbf16, #tpu.memory_space<vmem>>, vector<1x128x32xbf16>
    %370 = vector.shape_cast %369 : vector<1x128x32xbf16> to vector<128x32xbf16>
    %cst_112 = arith.constant dense<0.000000e+00> : vector<16x32xf32>
    %371 = tpu.matmul %368, %370, %cst_112 {dimension_numbers = #tpu.dot_dimension_numbers<[1], [0], [0], [1], [0, 0, 1, 1], [], []>} : vector<16x128xbf16>, vector<128x32xbf16>, vector<16x32xf32> -> vector<16x32xf32>
    %372 = vector.broadcast %198 : vector<1x32xf32> to vector<16x32xf32>
    %373 = arith.addf %371, %372 : vector<16x32xf32>
    %374 = arith.addf %329, %373 : vector<16x32xf32>
    %c0_113 = arith.constant 0 : index
    %c0_114 = arith.constant 0 : index
    %375 = vector.load %arg8[%c0_113, %c0_114] : memref<2x32xf32, #tpu.memory_space<vmem>>, vector<2x32xf32>
    %376 = vector.extract_strided_slice %375 {offsets = [0, 0], sizes = [1, 32], strides = [1, 1]} : vector<2x32xf32> to vector<1x32xf32>
    %377 = vector.extract_strided_slice %375 {offsets = [1, 0], sizes = [1, 32], strides = [1, 1]} : vector<2x32xf32> to vector<1x32xf32>
    %cst_115 = arith.constant dense<0.000000e+00> : vector<16xf32>
    %378 = vector.multi_reduction <add>, %374, %cst_115 [1] : vector<16x32xf32> to vector<16xf32>
    %379 = vector.shape_cast %378 : vector<16xf32> to vector<16x1xf32>
    %cst_116 = arith.constant 3.200000e+01 : f32
    %380 = vector.broadcast %cst_116 : f32 to vector<16x1xf32>
    %381 = arith.divf %379, %380 : vector<16x1xf32>
    %382 = vector.broadcast %381 : vector<16x1xf32> to vector<16x32xf32>
    %383 = arith.subf %374, %382 : vector<16x32xf32>
    %384 = arith.mulf %383, %383 : vector<16x32xf32>
    %cst_117 = arith.constant dense<0.000000e+00> : vector<16xf32>
    %385 = vector.multi_reduction <add>, %384, %cst_117 [1] : vector<16x32xf32> to vector<16xf32>
    %386 = vector.shape_cast %385 : vector<16xf32> to vector<16x1xf32>
    %cst_118 = arith.constant 3.200000e+01 : f32
    %387 = vector.broadcast %cst_118 : f32 to vector<16x1xf32>
    %388 = arith.divf %386, %387 : vector<16x1xf32>
    %389 = vector.broadcast %381 : vector<16x1xf32> to vector<16x32xf32>
    %390 = arith.subf %374, %389 : vector<16x32xf32>
    %cst_119 = arith.constant 9.99999974E-6 : f32
    %391 = vector.broadcast %cst_119 : f32 to vector<16x1xf32>
    %392 = arith.addf %388, %391 : vector<16x1xf32>
    %393 = math.rsqrt %392 : vector<16x1xf32>
    %394 = vector.broadcast %393 : vector<16x1xf32> to vector<16x32xf32>
    %395 = arith.mulf %390, %394 : vector<16x32xf32>
    %396 = vector.broadcast %376 : vector<1x32xf32> to vector<16x32xf32>
    %397 = arith.mulf %395, %396 : vector<16x32xf32>
    %398 = vector.broadcast %377 : vector<1x32xf32> to vector<16x32xf32>
    %399 = arith.addf %397, %398 : vector<16x32xf32>
    %400 = arith.truncf %399 : vector<16x32xf32> to vector<16x32xbf16>
    %c0_120 = arith.constant 0 : index
    %c0_121 = arith.constant 0 : index
    %401 = vector.load %arg9[%c0_120, %c0_121] : memref<32x128xbf16, #tpu.memory_space<vmem>>, vector<32x128xbf16>
    %cst_122 = arith.constant dense<0.000000e+00> : vector<16x128xf32>
    %402 = tpu.matmul %400, %401, %cst_122 {dimension_numbers = #tpu.dot_dimension_numbers<[1], [0], [0], [1], [0, 0, 1, 1], [], []>} : vector<16x32xbf16>, vector<32x128xbf16>, vector<16x128xf32> -> vector<16x128xf32>
    %c0_123 = arith.constant 0 : index
    %c0_124 = arith.constant 0 : index
    %403 = vector.load %arg10[%c0_123, %c0_124] : memref<16x128xf32, #tpu.memory_space<vmem>>, vector<16x128xf32>
    tpu.vector_store %arg10[%c0_123, %c0_124], %402 {strides = array<i32>} : memref<16x128xf32, #tpu.memory_space<vmem>>, vector<16x128xf32>,
    return
  }
  func.func @transform_0(%arg0: i32) -> (i32, i32) {
    %c0_i32 = arith.constant 0 : i32
    %c0_i32_0 = arith.constant 0 : i32
    %c0_i32_1 = arith.constant 0 : i32
    return %c0_i32, %c0_i32_0 : i32, i32
  }
  func.func @transform_1(%arg0: i32) -> (i32, i32, i32) {
    %c0_i32 = arith.constant 0 : i32
    %c0_i32_0 = arith.constant 0 : i32
    %c0_i32_1 = arith.constant 0 : i32
    %c0_i32_2 = arith.constant 0 : i32
    return %c0_i32, %c0_i32_0, %c0_i32_1 : i32, i32, i32
  }
  func.func @transform_2(%arg0: i32) -> (i32, i32, i32) {
    %c0_i32 = arith.constant 0 : i32
    %c0_i32_0 = arith.constant 0 : i32
    %c0_i32_1 = arith.constant 0 : i32
    %c0_i32_2 = arith.constant 0 : i32
    return %c0_i32, %c0_i32_0, %c0_i32_1 : i32, i32, i32
  }
  func.func @transform_3(%arg0: i32) -> (i32, i32, i32) {
    %c0_i32 = arith.constant 0 : i32
    %c0_i32_0 = arith.constant 0 : i32
    %c0_i32_1 = arith.constant 0 : i32
    %c0_i32_2 = arith.constant 0 : i32
    return %c0_i32, %c0_i32_0, %c0_i32_1 : i32, i32, i32
  }
  func.func @transform_4(%arg0: i32) -> (i32, i32, i32) {
    %c0_i32 = arith.constant 0 : i32
    %c0_i32_0 = arith.constant 0 : i32
    %c0_i32_1 = arith.constant 0 : i32
    %c0_i32_2 = arith.constant 0 : i32
    return %c0_i32, %c0_i32_0, %c0_i32_1 : i32, i32, i32
  }
  func.func @transform_5(%arg0: i32) -> (i32, i32, i32) {
    %c0_i32 = arith.constant 0 : i32
    %c0_i32_0 = arith.constant 0 : i32
    %c0_i32_1 = arith.constant 0 : i32
    %c0_i32_2 = arith.constant 0 : i32
    return %c0_i32, %c0_i32_0, %c0_i32_1 : i32, i32, i32
  }
  func.func @transform_6(%arg0: i32) -> (i32, i32, i32) {
    %c0_i32 = arith.constant 0 : i32
    %c0_i32_0 = arith.constant 0 : i32
    %c0_i32_1 = arith.constant 0 : i32
    %c0_i32_2 = arith.constant 0 : i32
    return %c0_i32, %c0_i32_0, %c0_i32_1 : i32, i32, i32
  }
  func.func @transform_7(%arg0: i32) -> (i32, i32) {
    %c0_i32 = arith.constant 0 : i32
    %c0_i32_0 = arith.constant 0 : i32
    %c0_i32_1 = arith.constant 0 : i32
    return %c0_i32, %c0_i32_0 : i32, i32
  }
  func.func @transform_8(%arg0: i32) -> (i32, i32) {
    %c0_i32 = arith.constant 0 : i32
    %c0_i32_0 = arith.constant 0 : i32
    %c0_i32_1 = arith.constant 0 : i32
    return %c0_i32, %c0_i32_0 : i32, i32
  }
  func.func @transform_9(%arg0: i32) -> (i32, i32) {
    %c0_i32 = arith.constant 0 : i32
    %c0_i32_0 = arith.constant 0 : i32
    %c0_i32_1 = arith.constant 0 : i32
    return %c0_i32, %c0_i32_0 : i32, i32
  }
}

</mosaic_0001>

<llo_original>
// kernel: gpt2_forward.1
$region0: #{gpt2_forward.1}
  #allocation0 [shape = 'u32[]', space=smem, size = 0x4, offset = 0x4, fixed_abs, tag = 'smem constant byte address 0x4 - core index']
  #allocation1 [shape = 'u32[144,128]{1,0:T(1,128)}', space=vmem, size = 0x12000, scoped, tag = 'internal scratch']
  %s0 = inlined_call_operand.vmem [shape: f32[16,32], index: 0, kind: input, shape index: {}]
  %s1 = inlined_call_operand.vmem [shape: bf16[2,32,96], index: 1, kind: input, shape index: {}]
  %s2 = inlined_call_operand.vmem [shape: bf16[2,32,32], index: 2, kind: input, shape index: {}]
  %s3 = inlined_call_operand.vmem [shape: bf16[2,32,128], index: 3, kind: input, shape index: {}]
  %s4 = inlined_call_operand.vmem [shape: bf16[2,128,32], index: 4, kind: input, shape index: {}]
  %s5 = inlined_call_operand.vmem [shape: f32[2,6,32], index: 5, kind: input, shape index: {}]
  %s6 = inlined_call_operand.vmem [shape: f32[2,1,128], index: 6, kind: input, shape index: {}]
  %s7 = inlined_call_operand.vmem [shape: f32[2,32], index: 7, kind: input, shape index: {}]
  %s8 = inlined_call_operand.vmem [shape: bf16[32,128], index: 8, kind: input, shape index: {}]
  %s9 = inlined_call_operand.hbm [shape: f32[16,128], index: 9, kind: output, shape index: {}]
  %s10 = sld [smem:[#allocation0]]
  $region46: #{gpt2_forward.1} parent=0
    _
  %s12 = ssub.s32 1, %s10
  %s13 = scalar_select 0, %s12, %s10
  $region1: #{gpt2_forward.1} parent=0
    #allocation2 [shape = 'u8[8192]{0}', space=vmem, size = 0x2000, scoped, tag = 'output window, operand 0, single buffered']
    #allocation3 [shape = 's32[1]{0}', space=sflag, size = 0x4, scoped, tag = 'scoped memory for gpt2_forward.1']
    %14 = vsyncpa [#allocation3], 0
    // Predicated region
    $region2: #{gpt2_forward.1} parent=1 // pred_check
      _
    $region3: #{gpt2_forward.1} parent=1 // pred_check_branch
      %16 = sbr.rel (0) target = $region5
    $region4: #{gpt2_forward.1} parent=1 // pred_region
      _
    $region5: #{gpt2_forward.1} parent=1 // pred_fallthru
      _
    // Predicated region
    $region6: #{gpt2_forward.1} parent=1 // pred_check
      _
    $region7: #{gpt2_forward.1} parent=1 // pred_check_branch
      %18 = sbr.rel (0) target = $region9
    $region8: #{gpt2_forward.1} parent=1 // pred_region
      _
    $region9: #{gpt2_forward.1} parent=1 // pred_fallthru
      _
    // Predicated region
    $region10: #{gpt2_forward.1} parent=1 // pred_check
      _
    $region11: #{gpt2_forward.1} parent=1 // pred_check_branch
      %20 = sbr.rel (0) target = $region13
    $region12: #{gpt2_forward.1} parent=1 // pred_region
      _
    $region13: #{gpt2_forward.1} parent=1 // pred_fallthru
      _
    // Predicated region
    $region14: #{gpt2_forward.1} parent=1 // pred_check
      _
    $region15: #{gpt2_forward.1} parent=1 // pred_check_branch
      %22 = sbr.rel (0) target = $region17
    $region16: #{gpt2_forward.1} parent=1 // pred_region
      _
    $region17: #{gpt2_forward.1} parent=1 // pred_fallthru
      _
    // Predicated region
    $region18: #{gpt2_forward.1} parent=1 // pred_check
      _
    $region19: #{gpt2_forward.1} parent=1 // pred_check_branch
      %24 = sbr.rel (0) target = $region21
    $region20: #{gpt2_forward.1} parent=1 // pred_region
      _
    $region21: #{gpt2_forward.1} parent=1 // pred_fallthru
      _
    // Predicated region
    $region22: #{gpt2_forward.1} parent=1 // pred_check
      _
    $region23: #{gpt2_forward.1} parent=1 // pred_check_branch
      %26 = sbr.rel (0) target = $region25
    $region24: #{gpt2_forward.1} parent=1 // pred_region
      _
    $region25: #{gpt2_forward.1} parent=1 // pred_fallthru
      _
    // Predicated region
    $region26: #{gpt2_forward.1} parent=1 // pred_check
      _
    $region27: #{gpt2_forward.1} parent=1 // pred_check_branch
      %28 = sbr.rel (0) target = $region29
    $region28: #{gpt2_forward.1} parent=1 // pred_region
      _
    $region29: #{gpt2_forward.1} parent=1 // pred_fallthru
      _
    // Predicated region
    $region30: #{gpt2_forward.1} parent=1 // pred_check
      _
    $region31: #{gpt2_forward.1} parent=1 // pred_check_branch
      %30 = sbr.rel (0) target = $region33
    $region32: #{gpt2_forward.1} parent=1 // pred_region
      _
    $region33: #{gpt2_forward.1} parent=1 // pred_fallthru
      _
    // Predicated region
    $region34: #{gpt2_forward.1} parent=1 // pred_check
      _
    $region35: #{gpt2_forward.1} parent=1 // pred_check_branch
      %32 = sbr.rel (0) target = $region37
    $region36: #{gpt2_forward.1} parent=1 // pred_region
      _
    $region37: #{gpt2_forward.1} parent=1 // pred_fallthru
      _
    %v34 = vld [vmem:[%s0] sm:$0xff]
    %v35 = vld [vmem:[%s0 + $0x8] sm:$0xff]
    %v36 = vlaneseq
    %v37 = vshrl.u32 %v36, 7
    %v38 = vlaneseq
    %v39 = vand.u32 %v38, 127
    %vm40 = vcmp.gt.s32.totalorder %v39, %v37
    %v41 = vsel %vm40, -1e+30, 0.0
    %v42 = vld [vmem:[%s5] sm:$0x3f]
    %vm43 = vcmask 261120
    %v44 = vsel %vm43, %v34, 0.0
    %45 = vadd.xlane.f32.xlu0 %v44
    %v46 = vpop.xlane.xlu0 %45
    %v47 = vsel %vm43, %v35, 0.0
    %48 = vadd.xlane.f32.xlu0 %v47
    %v49 = vpop.xlane.xlu0 %48
    %v50 = vrcp.pop 32.0
    %v51 = vmul.f32 %v46, %v50
    %v52 = vmul.f32 %v49, %v50
    %v53 = vsub.f32 %v34, %v51
    %v54 = vsub.f32 %v35, %v52
    %v55 = vmul.f32 %v53, %v53
    %v56 = vmul.f32 %v54, %v54
    %v57 = vsel %vm43, %v55, 0.0
    %58 = vadd.xlane.f32.xlu0 %v57
    %v59 = vpop.xlane.xlu0 %58
    %v60 = vsel %vm43, %v56, 0.0
    %61 = vadd.xlane.f32.xlu0 %v60
    %v62 = vpop.xlane.xlu0 %61
    %v63 = vmul.f32 %v59, %v50
    %v64 = vmul.f32 %v62, %v50
    %v65 = vadd.f32 %v63, 1e-05
    %v66 = vadd.f32 %v64, 1e-05
    %v67 = vrsqrt.pop %v65
    %v68 = vrsqrt.pop %v66
    %v69 = vmul.f32 %v53, %v67
    %v70 = vmul.f32 %v54, %v68
    %v71 = vlaneseq
    %v72 = vshrl.u32 %v71, 7
    %v73 = vsub.s32 0, %v72
    %v74 = vrot.slane %v42, %v73
    %v75 = vmul.f32 %v69, %v74
    %v76 = vmul.f32 %v70, %v74
    %v77 = vlaneseq
    %v78 = vshrl.u32 %v77, 7
    %v79 = vsub.s32 1, %v78
    %v80 = vrot.slane %v42, %v79
    %v81 = vadd.f32 %v75, %v80
    %v82 = vadd.f32 %v76, %v80
    %v83 = vpack.c.bf16 %v82, %v81
    %v84 = vld [vmem:[%s1] sm:$0xf]
    %v85 = vld [vmem:[%s1 + $0x4] sm:$0xf]
    %v86 = vld [vmem:[%s1 + $0x8] sm:$0xf]
    %v87 = vld [vmem:[%s1 + $0xc] sm:$0xf]
    %v92 = vunpack.c.l.b16 %v84
    %v93 = vunpack.c.l.b16 %v85
    %v94 = vunpack.c.l.b16 %v86
    %v95 = vunpack.c.l.b16 %v87
    %v96 = vpack.c.b16 %v93, %v92
    %v97 = vpack.c.b16 %v95, %v94
    %v101 = vsel %vm43, %v83, 0
    %103 = vmatprep.subr.bf16.mxu0 0
    %104 = vmatpush1.bf16.msra.mxu0 %v96
    %105 = vmatprep.subr.bf16.mxu0 0
    %106 = vmatpush1.bf16.msra.mxu0 %v97
    %107 = vmatprep.subr.bf16.mxu0 0
    %108 = vmatpush1.bf16.msra.mxu0 0
    %109 = vmatprep.subr.bf16.mxu0 0
    %110 = vmatpush1.bf16.msra.mxu0 0
    %111 = vmatprep.subr.bf16.mxu0 0
    %112 = vmatpush1.bf16.msra.mxu0 0
    %113 = vmatprep.subr.bf16.mxu0 0
    %114 = vmatpush1.bf16.msra.mxu0 0
    %115 = vmatprep.subr.bf16.mxu0 0
    %116 = vmatpush1.bf16.msra.mxu0 0
    %117 = vmatprep.subr.bf16.mxu0 0
    %118 = vmatpush1.bf16.msra.mxu0 0
    %119 = vmatprep.subr.bf16.mxu0 0
    %120 = vmatpush1.bf16.msra.mxu0 0
    %121 = vmatprep.subr.bf16.mxu0 0
    %122 = vmatpush1.bf16.msra.mxu0 0
    %123 = vmatprep.subr.bf16.mxu0 0
    %124 = vmatpush1.bf16.msra.mxu0 0
    %125 = vmatprep.subr.bf16.mxu0 0
    %126 = vmatpush1.bf16.msra.mxu0 0
    %127 = vmatprep.subr.bf16.mxu0 0
    %128 = vmatpush1.bf16.msra.mxu0 0
    %129 = vmatprep.subr.bf16.mxu0 0
    %130 = vmatpush1.bf16.msra.mxu0 0
    %131 = vmatprep.subr.bf16.mxu0 0
    %132 = vmatpush1.bf16.msra.mxu0 0
    %133 = vmatprep.subr.bf16.mxu0 0
    %134 = vmatpush1.bf16.msra.mxu0 0
    %135 = vmatprep.mubr.bf16.mxu0 0
    %136 = vmatmul.mubr.bf16.gmra.mrb[0].mxu0 %v101
    %v137 = vpop.f32.mrb[0].mxu0
    %v138 = vadd.f32 0.0, %v137
    %v139 = vpop.f32.mrb[0].mxu0
    %v140 = vpop.f32.mrb[0].mxu0
    %v141 = vadd.f32 0.0, %v140
    %v142 = vpop.f32.mrb[0].mxu0
    %143 = vdwg.mxu0
    %v144 = vmul.f32 %v138, 0.35355338
    %v145 = vmul.f32 %v141, 0.35355338
    %v146 = vpack.c.bf16 %v144, %v144
    %v147 = vpack.c.bf16 %v145, %v145
    %v148 = vpack.c.bf16 %v138, %v138
    %v149 = vpack.c.bf16 %v141, %v141
    %v150 = vld [vmem:[%s2] sm:$0xf]
    %v151 = vld [vmem:[%s2 + $0x4] sm:$0xf]
    %v152 = vld [vmem:[%s2 + $0x8] sm:$0xf]
    %v153 = vld [vmem:[%s2 + $0xc] sm:$0xf]
    %155 = vrot.lane.b32.xlu0 %v148, 96
    %v156 = vpop.permute.xlu0 %155
    %vm157 = vcmask 64512
    %v159 = vsel %vm157, %v146, 0
    %v162 = vsel %vm157, %v156, 0
    %164 = vmatprep.subr.bf16.mxu0 0
    %165 = vmatpush1.bf16.xpose.msra.mxu0 %v162
    %166 = vmatprep.subr.bf16.mxu0 0
    %167 = vmatpush1.bf16.xpose.msra.mxu0 0
    %168 = vmatprep.subr.bf16.mxu0 0
    %169 = vmatpush1.bf16.xpose.msra.mxu0 0
    %170 = vmatprep.subr.bf16.mxu0 0
    %171 = vmatpush1.bf16.xpose.msra.mxu0 0
    %172 = vmatprep.subr.bf16.mxu0 0
    %173 = vmatpush1.bf16.xpose.msra.mxu0 0
    %174 = vmatprep.subr.bf16.mxu0 0
    %175 = vmatpush1.bf16.xpose.msra.mxu0 0
    %176 = vmatprep.subr.bf16.mxu0 0
    %177 = vmatpush1.bf16.xpose.msra.mxu0 0
    %178 = vmatprep.subr.bf16.mxu0 0
    %179 = vmatpush1.bf16.xpose.msra.mxu0 0
    %180 = vmatprep.subr.bf16.mxu0 0
    %181 = vmatpush1.bf16.xpose.msra.mxu0 0
    %182 = vmatprep.subr.bf16.mxu0 0
    %183 = vmatpush1.bf16.xpose.msra.mxu0 0
    %184 = vmatprep.subr.bf16.mxu0 0
    %185 = vmatpush1.bf16.xpose.msra.mxu0 0
    %186 = vmatprep.subr.bf16.mxu0 0
    %187 = vmatpush1.bf16.xpose.msra.mxu0 0
    %188 = vmatprep.subr.bf16.mxu0 0
    %189 = vmatpush1.bf16.xpose.msra.mxu0 0
    %190 = vmatprep.subr.bf16.mxu0 0
    %191 = vmatpush1.bf16.xpose.msra.mxu0 0
    %192 = vmatprep.subr.bf16.mxu0 0
    %193 = vmatpush1.bf16.xpose.msra.mxu0 0
    %194 = vmatprep.subr.bf16.mxu0 0
    %195 = vmatpush1.bf16.xpose.msra.mxu0 0
    %196 = vmatprep.mubr.bf16.mxu0 0
    %197 = vmatmul.mubr.bf16.gmra.mrb[0].mxu0 %v159
    %v198 = vpop.f32.mrb[0].mxu0
    %v199 = vadd.f32 %v41, %v198
    %v200 = vpop.f32.mrb[0].mxu0
    %v201 = vpop.f32.mrb[0].mxu0
    %v202 = vpop.f32.mrb[0].mxu0
    %203 = vdwg.mxu0
    %205 = vrot.lane.b32.xlu0 %v149, 96
    %v206 = vpop.permute.xlu0 %205
    %v208 = vsel %vm157, %v147, 0
    %v211 = vsel %vm157, %v206, 0
    %213 = vmatprep.subr.bf16.mxu0 0
    %214 = vmatpush1.bf16.xpose.msra.mxu0 %v211
    %215 = vmatprep.subr.bf16.mxu0 0
    %216 = vmatpush1.bf16.xpose.msra.mxu0 0
    %217 = vmatprep.subr.bf16.mxu0 0
    %218 = vmatpush1.bf16.xpose.msra.mxu0 0
    %219 = vmatprep.subr.bf16.mxu0 0
    %220 = vmatpush1.bf16.xpose.msra.mxu0 0
    %221 = vmatprep.subr.bf16.mxu0 0
    %222 = vmatpush1.bf16.xpose.msra.mxu0 0
    %223 = vmatprep.subr.bf16.mxu0 0
    %224 = vmatpush1.bf16.xpose.msra.mxu0 0
    %225 = vmatprep.subr.bf16.mxu0 0
    %226 = vmatpush1.bf16.xpose.msra.mxu0 0
    %227 = vmatprep.subr.bf16.mxu0 0
    %228 = vmatpush1.bf16.xpose.msra.mxu0 0
    %229 = vmatprep.subr.bf16.mxu0 0
    %230 = vmatpush1.bf16.xpose.msra.mxu0 0
    %231 = vmatprep.subr.bf16.mxu0 0
    %232 = vmatpush1.bf16.xpose.msra.mxu0 0
    %233 = vmatprep.subr.bf16.mxu0 0
    %234 = vmatpush1.bf16.xpose.msra.mxu0 0
    %235 = vmatprep.subr.bf16.mxu0 0
    %236 = vmatpush1.bf16.xpose.msra.mxu0 0
    %237 = vmatprep.subr.bf16.mxu0 0
    %238 = vmatpush1.bf16.xpose.msra.mxu0 0
    %239 = vmatprep.subr.bf16.mxu0 0
    %240 = vmatpush1.bf16.xpose.msra.mxu0 0
    %241 = vmatprep.subr.bf16.mxu0 0
    %242 = vmatpush1.bf16.xpose.msra.mxu0 0
    %243 = vmatprep.subr.bf16.mxu0 0
    %244 = vmatpush1.bf16.xpose.msra.mxu0 0
    %245 = vmatprep.mubr.bf16.mxu0 0
    %246 = vmatmul.mubr.bf16.gmra.mrb[0].mxu0 %v208
    %v247 = vpop.f32.mrb[0].mxu0
    %v248 = vadd.f32 %v41, %v247
    %v249 = vpop.f32.mrb[0].mxu0
    %v250 = vpop.f32.mrb[0].mxu0
    %v251 = vpop.f32.mrb[0].mxu0
    %252 = vdwg.mxu0
    %v253 = vsel %vm157, %v199, -inf
    %254 = vmax.xlane.f32.xlu0 %v253
    %v255 = vpop.xlane.xlu0 %254
    %v256 = vsel %vm157, %v248, -inf
    %257 = vmax.xlane.f32.xlu0 %v256
    %v258 = vpop.xlane.xlu0 %257
    %v259 = vsub.f32 %v199, %v255
    %v260 = vsub.f32 %v248, %v258
    %v261 = vmul.f32 %v259, 1.442695
    %v262 = vpow.pop %v261
    %v263 = vmul.f32 %v260, 1.442695
    %v264 = vpow.pop %v263
    %v265 = vsel %vm157, %v262, 0.0
    %266 = vadd.xlane.f32.xlu0 %v265
    %v267 = vpop.xlane.xlu0 %266
    %v268 = vsel %vm157, %v264, 0.0
    %269 = vadd.xlane.f32.xlu0 %v268
    %v270 = vpop.xlane.xlu0 %269
    %v271 = vrcp.pop %v267
    %v272 = vrcp.pop %v270
    %v273 = vmul.f32 %v262, %v271
    %v274 = vmul.f32 %v264, %v272
    %v275 = vpack.c.bf16 %v273, %v273
    %v276 = vpack.c.bf16 %v274, %v274
    %277 = vrot.lane.b32.xlu0 %v148, 64
    %v278 = vpop.permute.xlu0 %277
    %v280 = vsel %vm157, %v275, 0
    %vm282 = vcmask 1043456
    %v284 = vsel %vm282, %v278, 0
    %286 = vmatprep.subr.bf16.mxu0 0
    %287 = vmatpush1.bf16.msra.mxu0 %v284
    %288 = vmatprep.subr.bf16.mxu0 0
    %289 = vmatpush1.bf16.msra.mxu0 0
    %290 = vmatprep.subr.bf16.mxu0 0
    %291 = vmatpush1.bf16.msra.mxu0 0
    %292 = vmatprep.subr.bf16.mxu0 0
    %293 = vmatpush1.bf16.msra.mxu0 0
    %294 = vmatprep.subr.bf16.mxu0 0
    %295 = vmatpush1.bf16.msra.mxu0 0
    %296 = vmatprep.subr.bf16.mxu0 0
    %297 = vmatpush1.bf16.msra.mxu0 0
    %298 = vmatprep.subr.bf16.mxu0 0
    %299 = vmatpush1.bf16.msra.mxu0 0
    %300 = vmatprep.subr.bf16.mxu0 0
    %301 = vmatpush1.bf16.msra.mxu0 0
    %302 = vmatprep.subr.bf16.mxu0 0
    %303 = vmatpush1.bf16.msra.mxu0 0
    %304 = vmatprep.subr.bf16.mxu0 0
    %305 = vmatpush1.bf16.msra.mxu0 0
    %306 = vmatprep.subr.bf16.mxu0 0
    %307 = vmatpush1.bf16.msra.mxu0 0
    %308 = vmatprep.subr.bf16.mxu0 0
    %309 = vmatpush1.bf16.msra.mxu0 0
    %310 = vmatprep.subr.bf16.mxu0 0
    %311 = vmatpush1.bf16.msra.mxu0 0
    %312 = vmatprep.subr.bf16.mxu0 0
    %313 = vmatpush1.bf16.msra.mxu0 0
    %314 = vmatprep.subr.bf16.mxu0 0
    %315 = vmatpush1.bf16.msra.mxu0 0
    %316 = vmatprep.subr.bf16.mxu0 0
    %317 = vmatpush1.bf16.msra.mxu0 0
    %318 = vmatprep.mubr.bf16.mxu0 0
    %319 = vmatmul.mubr.bf16.gmra.mrb[0].mxu0 %v280
    %v320 = vpop.f32.mrb[0].mxu0
    %v321 = vadd.f32 0.0, %v320
    %v322 = vpop.f32.mrb[0].mxu0
    %v323 = vpop.f32.mrb[0].mxu0
    %v324 = vpop.f32.mrb[0].mxu0
    %325 = vdwg.mxu0
    %326 = vrot.lane.b32.xlu0 %v149, 64
    %v327 = vpop.permute.xlu0 %326
    %v329 = vsel %vm157, %v276, 0
    %v332 = vsel %vm282, %v327, 0
    %334 = vmatprep.subr.bf16.mxu0 0
    %335 = vmatpush1.bf16.msra.mxu0 %v332
    %336 = vmatprep.subr.bf16.mxu0 0
    %337 = vmatpush1.bf16.msra.mxu0 0
    %338 = vmatprep.subr.bf16.mxu0 0
    %339 = vmatpush1.bf16.msra.mxu0 0
    %340 = vmatprep.subr.bf16.mxu0 0
    %341 = vmatpush1.bf16.msra.mxu0 0
    %342 = vmatprep.subr.bf16.mxu0 0
    %343 = vmatpush1.bf16.msra.mxu0 0
    %344 = vmatprep.subr.bf16.mxu0 0
    %345 = vmatpush1.bf16.msra.mxu0 0
    %346 = vmatprep.subr.bf16.mxu0 0
    %347 = vmatpush1.bf16.msra.mxu0 0
    %348 = vmatprep.subr.bf16.mxu0 0
    %349 = vmatpush1.bf16.msra.mxu0 0
    %350 = vmatprep.subr.bf16.mxu0 0
    %351 = vmatpush1.bf16.msra.mxu0 0
    %352 = vmatprep.subr.bf16.mxu0 0
    %353 = vmatpush1.bf16.msra.mxu0 0
    %354 = vmatprep.subr.bf16.mxu0 0
    %355 = vmatpush1.bf16.msra.mxu0 0
    %356 = vmatprep.subr.bf16.mxu0 0
    %357 = vmatpush1.bf16.msra.mxu0 0
    %358 = vmatprep.subr.bf16.mxu0 0
    %359 = vmatpush1.bf16.msra.mxu0 0
    %360 = vmatprep.subr.bf16.mxu0 0
    %361 = vmatpush1.bf16.msra.mxu0 0
    %362 = vmatprep.subr.bf16.mxu0 0
    %363 = vmatpush1.bf16.msra.mxu0 0
    %364 = vmatprep.subr.bf16.mxu0 0
    %365 = vmatpush1.bf16.msra.mxu0 0
    %366 = vmatprep.mubr.bf16.mxu0 0
    %367 = vmatmul.mubr.bf16.gmra.mrb[0].mxu0 %v329
    %v368 = vpop.f32.mrb[0].mxu0
    %v369 = vadd.f32 0.0, %v368
    %v370 = vpop.f32.mrb[0].mxu0
    %v371 = vpop.f32.mrb[0].mxu0
    %v372 = vpop.f32.mrb[0].mxu0
    %373 = vdwg.mxu0
    %v374 = vpack.c.bf16 %v369, %v321
    %376 = vrot.lane.b32.xlu0 %v146, 120
    %v377 = vpop.permute.xlu0 %376
    %378 = vrot.lane.b32.xlu0 %v148, 88
    %v379 = vpop.permute.xlu0 %378
    %v381 = vsel %vm157, %v377, 0
    %v384 = vsel %vm157, %v379, 0
    %386 = vmatprep.subr.bf16.mxu0 0
    %387 = vmatpush1.bf16.xpose.msra.mxu0 %v384
    %388 = vmatprep.subr.bf16.mxu0 0
    %389 = vmatpush1.bf16.xpose.msra.mxu0 0
    %390 = vmatprep.subr.bf16.mxu0 0
    %391 = vmatpush1.bf16.xpose.msra.mxu0 0
    %392 = vmatprep.subr.bf16.mxu0 0
    %393 = vmatpush1.bf16.xpose.msra.mxu0 0
    %394 = vmatprep.subr.bf16.mxu0 0
    %395 = vmatpush1.bf16.xpose.msra.mxu0 0
    %396 = vmatprep.subr.bf16.mxu0 0
    %397 = vmatpush1.bf16.xpose.msra.mxu0 0
    %398 = vmatprep.subr.bf16.mxu0 0
    %399 = vmatpush1.bf16.xpose.msra.mxu0 0
    %400 = vmatprep.subr.bf16.mxu0 0
    %401 = vmatpush1.bf16.xpose.msra.mxu0 0
    %402 = vmatprep.subr.bf16.mxu0 0
    %403 = vmatpush1.bf16.xpose.msra.mxu0 0
    %404 = vmatprep.subr.bf16.mxu0 0
    %405 = vmatpush1.bf16.xpose.msra.mxu0 0
    %406 = vmatprep.subr.bf16.mxu0 0
    %407 = vmatpush1.bf16.xpose.msra.mxu0 0
    %408 = vmatprep.subr.bf16.mxu0 0
    %409 = vmatpush1.bf16.xpose.msra.mxu0 0
    %410 = vmatprep.subr.bf16.mxu0 0
    %411 = vmatpush1.bf16.xpose.msra.mxu0 0
    %412 = vmatprep.subr.bf16.mxu0 0
    %413 = vmatpush1.bf16.xpose.msra.mxu0 0
    %414 = vmatprep.subr.bf16.mxu0 0
    %415 = vmatpush1.bf16.xpose.msra.mxu0 0
    %416 = vmatprep.subr.bf16.mxu0 0
    %417 = vmatpush1.bf16.xpose.msra.mxu0 0
    %418 = vmatprep.mubr.bf16.mxu0 0
    %419 = vmatmul.mubr.bf16.gmra.mrb[0].mxu0 %v381
    %v420 = vpop.f32.mrb[0].mxu0
    %v421 = vadd.f32 %v41, %v420
    %v422 = vpop.f32.mrb[0].mxu0
    %v423 = vpop.f32.mrb[0].mxu0
    %v424 = vpop.f32.mrb[0].mxu0
    %425 = vdwg.mxu0
    %427 = vrot.lane.b32.xlu0 %v147, 120
    %v428 = vpop.permute.xlu0 %427
    %429 = vrot.lane.b32.xlu0 %v149, 88
    %v430 = vpop.permute.xlu0 %429
    %v432 = vsel %vm157, %v428, 0
    %v435 = vsel %vm157, %v430, 0
    %437 = vmatprep.subr.bf16.mxu0 0
    %438 = vmatpush1.bf16.xpose.msra.mxu0 %v435
    %439 = vmatprep.subr.bf16.mxu0 0
    %440 = vmatpush1.bf16.xpose.msra.mxu0 0
    %441 = vmatprep.subr.bf16.mxu0 0
    %442 = vmatpush1.bf16.xpose.msra.mxu0 0
    %443 = vmatprep.subr.bf16.mxu0 0
    %444 = vmatpush1.bf16.xpose.msra.mxu0 0
    %445 = vmatprep.subr.bf16.mxu0 0
    %446 = vmatpush1.bf16.xpose.msra.mxu0 0
    %447 = vmatprep.subr.bf16.mxu0 0
    %448 = vmatpush1.bf16.xpose.msra.mxu0 0
    %449 = vmatprep.subr.bf16.mxu0 0
    %450 = vmatpush1.bf16.xpose.msra.mxu0 0
    %451 = vmatprep.subr.bf16.mxu0 0
    %452 = vmatpush1.bf16.xpose.msra.mxu0 0
    %453 = vmatprep.subr.bf16.mxu0 0
    %454 = vmatpush1.bf16.xpose.msra.mxu0 0
    %455 = vmatprep.subr.bf16.mxu0 0
    %456 = vmatpush1.bf16.xpose.msra.mxu0 0
    %457 = vmatprep.subr.bf16.mxu0 0
    %458 = vmatpush1.bf16.xpose.msra.mxu0 0
    %459 = vmatprep.subr.bf16.mxu0 0
    %460 = vmatpush1.bf16.xpose.msra.mxu0 0
    %461 = vmatprep.subr.bf16.mxu0 0
    %462 = vmatpush1.bf16.xpose.msra.mxu0 0
    %463 = vmatprep.subr.bf16.mxu0 0
    %464 = vmatpush1.bf16.xpose.msra.mxu0 0
    %465 = vmatprep.subr.bf16.mxu0 0
    %466 = vmatpush1.bf16.xpose.msra.mxu0 0
    %467 = vmatprep.subr.bf16.mxu0 0
    %468 = vmatpush1.bf16.xpose.msra.mxu0 0
    %469 = vmatprep.mubr.bf16.mxu0 0
    %470 = vmatmul.mubr.bf16.gmra.mrb[0].mxu0 %v432
    %v471 = vpop.f32.mrb[0].mxu0
    %v472 = vadd.f32 %v41, %v471
    %v473 = vpop.f32.mrb[0].mxu0
    %v474 = vpop.f32.mrb[0].mxu0
    %v475 = vpop.f32.mrb[0].mxu0
    %476 = vdwg.mxu0
    %v477 = vsel %vm157, %v421, -inf
    %478 = vmax.xlane.f32.xlu0 %v477
    %v479 = vpop.xlane.xlu0 %478
    %v480 = vsel %vm157, %v472, -inf
    %481 = vmax.xlane.f32.xlu0 %v480
    %v482 = vpop.xlane.xlu0 %481
    %v483 = vsub.f32 %v421, %v479
    %v484 = vsub.f32 %v472, %v482
    %v485 = vmul.f32 %v483, 1.442695
    %v486 = vpow.pop %v485
    %v487 = vmul.f32 %v484, 1.442695
    %v488 = vpow.pop %v487
    %v489 = vsel %vm157, %v486, 0.0
    %490 = vadd.xlane.f32.xlu0 %v489
    %v491 = vpop.xlane.xlu0 %490
    %v492 = vsel %vm157, %v488, 0.0
    %493 = vadd.xlane.f32.xlu0 %v492
    %v494 = vpop.xlane.xlu0 %493
    %v495 = vrcp.pop %v491
    %v496 = vrcp.pop %v494
    %v497 = vmul.f32 %v486, %v495
    %v498 = vmul.f32 %v488, %v496
    %v499 = vpack.c.bf16 %v497, %v497
    %v500 = vpack.c.bf16 %v498, %v498
    %501 = vrot.lane.b32.xlu0 %v148, 56
    %v502 = vpop.permute.xlu0 %501
    %v504 = vsel %vm157, %v499, 0
    %v507 = vsel %vm282, %v502, 0
    %509 = vmatprep.subr.bf16.mxu0 0
    %510 = vmatpush1.bf16.msra.mxu0 %v507
    %511 = vmatprep.subr.bf16.mxu0 0
    %512 = vmatpush1.bf16.msra.mxu0 0
    %513 = vmatprep.subr.bf16.mxu0 0
    %514 = vmatpush1.bf16.msra.mxu0 0
    %515 = vmatprep.subr.bf16.mxu0 0
    %516 = vmatpush1.bf16.msra.mxu0 0
    %517 = vmatprep.subr.bf16.mxu0 0
    %518 = vmatpush1.bf16.msra.mxu0 0
    %519 = vmatprep.subr.bf16.mxu0 0
    %520 = vmatpush1.bf16.msra.mxu0 0
    %521 = vmatprep.subr.bf16.mxu0 0
    %522 = vmatpush1.bf16.msra.mxu0 0
    %523 = vmatprep.subr.bf16.mxu0 0
    %524 = vmatpush1.bf16.msra.mxu0 0
    %525 = vmatprep.subr.bf16.mxu0 0
    %526 = vmatpush1.bf16.msra.mxu0 0
    %527 = vmatprep.subr.bf16.mxu0 0
    %528 = vmatpush1.bf16.msra.mxu0 0
    %529 = vmatprep.subr.bf16.mxu0 0
    %530 = vmatpush1.bf16.msra.mxu0 0
    %531 = vmatprep.subr.bf16.mxu0 0
    %532 = vmatpush1.bf16.msra.mxu0 0
    %533 = vmatprep.subr.bf16.mxu0 0
    %534 = vmatpush1.bf16.msra.mxu0 0
    %535 = vmatprep.subr.bf16.mxu0 0
    %536 = vmatpush1.bf16.msra.mxu0 0
    %537 = vmatprep.subr.bf16.mxu0 0
    %538 = vmatpush1.bf16.msra.mxu0 0
    %539 = vmatprep.subr.bf16.mxu0 0
    %540 = vmatpush1.bf16.msra.mxu0 0
    %541 = vmatprep.mubr.bf16.mxu0 0
    %542 = vmatmul.mubr.bf16.gmra.mrb[0].mxu0 %v504
    %v543 = vpop.f32.mrb[0].mxu0
    %v544 = vadd.f32 0.0, %v543
    %v545 = vpop.f32.mrb[0].mxu0
    %v546 = vpop.f32.mrb[0].mxu0
    %v547 = vpop.f32.mrb[0].mxu0
    %548 = vdwg.mxu0
    %549 = vrot.lane.b32.xlu0 %v149, 56
    %v550 = vpop.permute.xlu0 %549
    %v552 = vsel %vm157, %v500, 0
    %v555 = vsel %vm282, %v550, 0
    %557 = vmatprep.subr.bf16.mxu0 0
    %558 = vmatpush1.bf16.msra.mxu0 %v555
    %559 = vmatprep.subr.bf16.mxu0 0
    %560 = vmatpush1.bf16.msra.mxu0 0
    %561 = vmatprep.subr.bf16.mxu0 0
    %562 = vmatpush1.bf16.msra.mxu0 0
    %563 = vmatprep.subr.bf16.mxu0 0
    %564 = vmatpush1.bf16.msra.mxu0 0
    %565 = vmatprep.subr.bf16.mxu0 0
    %566 = vmatpush1.bf16.msra.mxu0 0
    %567 = vmatprep.subr.bf16.mxu0 0
    %568 = vmatpush1.bf16.msra.mxu0 0
    %569 = vmatprep.subr.bf16.mxu0 0
    %570 = vmatpush1.bf16.msra.mxu0 0
    %571 = vmatprep.subr.bf16.mxu0 0
    %572 = vmatpush1.bf16.msra.mxu0 0
    %573 = vmatprep.subr.bf16.mxu0 0
    %574 = vmatpush1.bf16.msra.mxu0 0
    %575 = vmatprep.subr.bf16.mxu0 0
    %576 = vmatpush1.bf16.msra.mxu0 0
    %577 = vmatprep.subr.bf16.mxu0 0
    %578 = vmatpush1.bf16.msra.mxu0 0
    %579 = vmatprep.subr.bf16.mxu0 0
    %580 = vmatpush1.bf16.msra.mxu0 0
    %581 = vmatprep.subr.bf16.mxu0 0
    %582 = vmatpush1.bf16.msra.mxu0 0
    %583 = vmatprep.subr.bf16.mxu0 0
    %584 = vmatpush1.bf16.msra.mxu0 0
    %585 = vmatprep.subr.bf16.mxu0 0
    %586 = vmatpush1.bf16.msra.mxu0 0
    %587 = vmatprep.subr.bf16.mxu0 0
    %588 = vmatpush1.bf16.msra.mxu0 0
    %589 = vmatprep.mubr.bf16.mxu0 0
    %590 = vmatmul.mubr.bf16.gmra.mrb[0].mxu0 %v552
    %v591 = vpop.f32.mrb[0].mxu0
    %v592 = vadd.f32 0.0, %v591
    %v593 = vpop.f32.mrb[0].mxu0
    %v594 = vpop.f32.mrb[0].mxu0
    %v595 = vpop.f32.mrb[0].mxu0
    %596 = vdwg.mxu0
    %v597 = vpack.c.bf16 %v592, %v544
    %v599 = vsel %vm157, %v597, 0
    %v602 = vsel %vm282, %v151, 0
    %604 = vmatprep.subr.bf16.mxu0 0
    %605 = vmatpush1.bf16.msra.mxu0 %v602
    %606 = vmatprep.subr.bf16.mxu0 0
    %607 = vmatpush1.bf16.msra.mxu0 0
    %608 = vmatprep.subr.bf16.mxu0 0
    %609 = vmatpush1.bf16.msra.mxu0 0
    %610 = vmatprep.subr.bf16.mxu0 0
    %611 = vmatpush1.bf16.msra.mxu0 0
    %612 = vmatprep.subr.bf16.mxu0 0
    %613 = vmatpush1.bf16.msra.mxu0 0
    %614 = vmatprep.subr.bf16.mxu0 0
    %615 = vmatpush1.bf16.msra.mxu0 0
    %616 = vmatprep.subr.bf16.mxu0 0
    %617 = vmatpush1.bf16.msra.mxu0 0
    %618 = vmatprep.subr.bf16.mxu0 0
    %619 = vmatpush1.bf16.msra.mxu0 0
    %620 = vmatprep.subr.bf16.mxu0 0
    %621 = vmatpush1.bf16.msra.mxu0 0
    %622 = vmatprep.subr.bf16.mxu0 0
    %623 = vmatpush1.bf16.msra.mxu0 0
    %624 = vmatprep.subr.bf16.mxu0 0
    %625 = vmatpush1.bf16.msra.mxu0 0
    %626 = vmatprep.subr.bf16.mxu0 0
    %627 = vmatpush1.bf16.msra.mxu0 0
    %628 = vmatprep.subr.bf16.mxu0 0
    %629 = vmatpush1.bf16.msra.mxu0 0
    %630 = vmatprep.subr.bf16.mxu0 0
    %631 = vmatpush1.bf16.msra.mxu0 0
    %632 = vmatprep.subr.bf16.mxu0 0
    %633 = vmatpush1.bf16.msra.mxu0 0
    %634 = vmatprep.subr.bf16.mxu0 0
    %635 = vmatpush1.bf16.msra.mxu0 0
    %636 = vmatprep.mubr.bf16.mxu0 0
    %637 = vmatmul.mubr.bf16.gmra.mrb[0].mxu0 %v599
    %v638 = vpop.f32.mrb[0].mxu0
    %v639 = vadd.f32 0.0, %v638
    %v640 = vpop.f32.mrb[0].mxu0
    %v641 = vpop.f32.mrb[0].mxu0
    %v642 = vadd.f32 0.0, %v641
    %v643 = vpop.f32.mrb[0].mxu0
    %644 = vdwg.mxu0
    %v646 = vsel %vm157, %v374, 0
    %v649 = vsel %vm282, %v150, 0
    %651 = vmatprep.subr.bf16.mxu0 0
    %652 = vmatpush1.bf16.msra.mxu0 %v649
    %653 = vmatprep.subr.bf16.mxu0 0
    %654 = vmatpush1.bf16.msra.mxu0 0
    %655 = vmatprep.subr.bf16.mxu0 0
    %656 = vmatpush1.bf16.msra.mxu0 0
    %657 = vmatprep.subr.bf16.mxu0 0
    %658 = vmatpush1.bf16.msra.mxu0 0
    %659 = vmatprep.subr.bf16.mxu0 0
    %660 = vmatpush1.bf16.msra.mxu0 0
    %661 = vmatprep.subr.bf16.mxu0 0
    %662 = vmatpush1.bf16.msra.mxu0 0
    %663 = vmatprep.subr.bf16.mxu0 0
    %664 = vmatpush1.bf16.msra.mxu0 0
    %665 = vmatprep.subr.bf16.mxu0 0
    %666 = vmatpush1.bf16.msra.mxu0 0
    %667 = vmatprep.subr.bf16.mxu0 0
    %668 = vmatpush1.bf16.msra.mxu0 0
    %669 = vmatprep.subr.bf16.mxu0 0
    %670 = vmatpush1.bf16.msra.mxu0 0
    %671 = vmatprep.subr.bf16.mxu0 0
    %672 = vmatpush1.bf16.msra.mxu0 0
    %673 = vmatprep.subr.bf16.mxu0 0
    %674 = vmatpush1.bf16.msra.mxu0 0
    %675 = vmatprep.subr.bf16.mxu0 0
    %676 = vmatpush1.bf16.msra.mxu0 0
    %677 = vmatprep.subr.bf16.mxu0 0
    %678 = vmatpush1.bf16.msra.mxu0 0
    %679 = vmatprep.subr.bf16.mxu0 0
    %680 = vmatpush1.bf16.msra.mxu0 0
    %681 = vmatprep.subr.bf16.mxu0 0
    %682 = vmatpush1.bf16.msra.mxu0 0
    %683 = vmatprep.mubr.bf16.mxu0 0
    %684 = vmatmul.mubr.bf16.gmra.mrb[0].mxu0 %v646
    %v685 = vpop.f32.mrb[0].mxu0
    %v686 = vadd.f32 %v639, %v685
    %v687 = vpop.f32.mrb[0].mxu0
    %v688 = vpop.f32.mrb[0].mxu0
    %v689 = vadd.f32 %v642, %v688
    %v690 = vpop.f32.mrb[0].mxu0
    %691 = vdwg.mxu0
    %692 = vrot.lane.b32.xlu0 %v146, 112
    %v693 = vpop.permute.xlu0 %692
    %694 = vrot.lane.b32.xlu0 %v148, 80
    %v695 = vpop.permute.xlu0 %694
    %v697 = vsel %vm157, %v693, 0
    %v700 = vsel %vm157, %v695, 0
    %702 = vmatprep.subr.bf16.mxu0 0
    %703 = vmatpush1.bf16.xpose.msra.mxu0 %v700
    %704 = vmatprep.subr.bf16.mxu0 0
    %705 = vmatpush1.bf16.xpose.msra.mxu0 0
    %706 = vmatprep.subr.bf16.mxu0 0
    %707 = vmatpush1.bf16.xpose.msra.mxu0 0
    %708 = vmatprep.subr.bf16.mxu0 0
    %709 = vmatpush1.bf16.xpose.msra.mxu0 0
    %710 = vmatprep.subr.bf16.mxu0 0
    %711 = vmatpush1.bf16.xpose.msra.mxu0 0
    %712 = vmatprep.subr.bf16.mxu0 0
    %713 = vmatpush1.bf16.xpose.msra.mxu0 0
    %714 = vmatprep.subr.bf16.mxu0 0
    %715 = vmatpush1.bf16.xpose.msra.mxu0 0
    %716 = vmatprep.subr.bf16.mxu0 0
    %717 = vmatpush1.bf16.xpose.msra.mxu0 0
    %718 = vmatprep.subr.bf16.mxu0 0
    %719 = vmatpush1.bf16.xpose.msra.mxu0 0
    %720 = vmatprep.subr.bf16.mxu0 0
    %721 = vmatpush1.bf16.xpose.msra.mxu0 0
    %722 = vmatprep.subr.bf16.mxu0 0
    %723 = vmatpush1.bf16.xpose.msra.mxu0 0
    %724 = vmatprep.subr.bf16.mxu0 0
    %725 = vmatpush1.bf16.xpose.msra.mxu0 0
    %726 = vmatprep.subr.bf16.mxu0 0
    %727 = vmatpush1.bf16.xpose.msra.mxu0 0
    %728 = vmatprep.subr.bf16.mxu0 0
    %729 = vmatpush1.bf16.xpose.msra.mxu0 0
    %730 = vmatprep.subr.bf16.mxu0 0
    %731 = vmatpush1.bf16.xpose.msra.mxu0 0
    %732 = vmatprep.subr.bf16.mxu0 0
    %733 = vmatpush1.bf16.xpose.msra.mxu0 0
    %734 = vmatprep.mubr.bf16.mxu0 0
    %735 = vmatmul.mubr.bf16.gmra.mrb[0].mxu0 %v697
    %v736 = vpop.f32.mrb[0].mxu0
    %v737 = vadd.f32 %v41, %v736
    %v738 = vpop.f32.mrb[0].mxu0
    %v739 = vpop.f32.mrb[0].mxu0
    %v740 = vpop.f32.mrb[0].mxu0
    %741 = vdwg.mxu0
    %742 = vrot.lane.b32.xlu0 %v147, 112
    %v743 = vpop.permute.xlu0 %742
    %744 = vrot.lane.b32.xlu0 %v149, 80
    %v745 = vpop.permute.xlu0 %744
    %v747 = vsel %vm157, %v743, 0
    %v750 = vsel %vm157, %v745, 0
    %752 = vmatprep.subr.bf16.mxu0 0
    %753 = vmatpush1.bf16.xpose.msra.mxu0 %v750
    %754 = vmatprep.subr.bf16.mxu0 0
    %755 = vmatpush1.bf16.xpose.msra.mxu0 0
    %756 = vmatprep.subr.bf16.mxu0 0
    %757 = vmatpush1.bf16.xpose.msra.mxu0 0
    %758 = vmatprep.subr.bf16.mxu0 0
    %759 = vmatpush1.bf16.xpose.msra.mxu0 0
    %760 = vmatprep.subr.bf16.mxu0 0
    %761 = vmatpush1.bf16.xpose.msra.mxu0 0
    %762 = vmatprep.subr.bf16.mxu0 0
    %763 = vmatpush1.bf16.xpose.msra.mxu0 0
    %764 = vmatprep.subr.bf16.mxu0 0
    %765 = vmatpush1.bf16.xpose.msra.mxu0 0
    %766 = vmatprep.subr.bf16.mxu0 0
    %767 = vmatpush1.bf16.xpose.msra.mxu0 0
    %768 = vmatprep.subr.bf16.mxu0 0
    %769 = vmatpush1.bf16.xpose.msra.mxu0 0
    %770 = vmatprep.subr.bf16.mxu0 0
    %771 = vmatpush1.bf16.xpose.msra.mxu0 0
    %772 = vmatprep.subr.bf16.mxu0 0
    %773 = vmatpush1.bf16.xpose.msra.mxu0 0
    %774 = vmatprep.subr.bf16.mxu0 0
    %775 = vmatpush1.bf16.xpose.msra.mxu0 0
    %776 = vmatprep.subr.bf16.mxu0 0
    %777 = vmatpush1.bf16.xpose.msra.mxu0 0
    %778 = vmatprep.subr.bf16.mxu0 0
    %779 = vmatpush1.bf16.xpose.msra.mxu0 0
    %780 = vmatprep.subr.bf16.mxu0 0
    %781 = vmatpush1.bf16.xpose.msra.mxu0 0
    %782 = vmatprep.subr.bf16.mxu0 0
    %783 = vmatpush1.bf16.xpose.msra.mxu0 0
    %784 = vmatprep.mubr.bf16.mxu0 0
    %785 = vmatmul.mubr.bf16.gmra.mrb[0].mxu0 %v747
    %v786 = vpop.f32.mrb[0].mxu0
    %v787 = vadd.f32 %v41, %v786
    %v788 = vpop.f32.mrb[0].mxu0
    %v789 = vpop.f32.mrb[0].mxu0
    %v790 = vpop.f32.mrb[0].mxu0
    %791 = vdwg.mxu0
    %v792 = vsel %vm157, %v737, -inf
    %793 = vmax.xlane.f32.xlu0 %v792
    %v794 = vpop.xlane.xlu0 %793
    %v795 = vsel %vm157, %v787, -inf
    %796 = vmax.xlane.f32.xlu0 %v795
    %v797 = vpop.xlane.xlu0 %796
    %v798 = vsub.f32 %v737, %v794
    %v799 = vsub.f32 %v787, %v797
    %v800 = vmul.f32 %v798, 1.442695
    %v801 = vpow.pop %v800
    %v802 = vmul.f32 %v799, 1.442695
    %v803 = vpow.pop %v802
    %v804 = vsel %vm157, %v801, 0.0
    %805 = vadd.xlane.f32.xlu0 %v804
    %v806 = vpop.xlane.xlu0 %805
    %v807 = vsel %vm157, %v803, 0.0
    %808 = vadd.xlane.f32.xlu0 %v807
    %v809 = vpop.xlane.xlu0 %808
    %v810 = vrcp.pop %v806
    %v811 = vrcp.pop %v809
    %v812 = vmul.f32 %v801, %v810
    %v813 = vmul.f32 %v803, %v811
    %v814 = vpack.c.bf16 %v812, %v812
    %v815 = vpack.c.bf16 %v813, %v813
    %816 = vrot.lane.b32.xlu0 %v148, 48
    %v817 = vpop.permute.xlu0 %816
    %v819 = vsel %vm157, %v814, 0
    %v822 = vsel %vm282, %v817, 0
    %824 = vmatprep.subr.bf16.mxu0 0
    %825 = vmatpush1.bf16.msra.mxu0 %v822
    %826 = vmatprep.subr.bf16.mxu0 0
    %827 = vmatpush1.bf16.msra.mxu0 0
    %828 = vmatprep.subr.bf16.mxu0 0
    %829 = vmatpush1.bf16.msra.mxu0 0
    %830 = vmatprep.subr.bf16.mxu0 0
    %831 = vmatpush1.bf16.msra.mxu0 0
    %832 = vmatprep.subr.bf16.mxu0 0
    %833 = vmatpush1.bf16.msra.mxu0 0
    %834 = vmatprep.subr.bf16.mxu0 0
    %835 = vmatpush1.bf16.msra.mxu0 0
    %836 = vmatprep.subr.bf16.mxu0 0
    %837 = vmatpush1.bf16.msra.mxu0 0
    %838 = vmatprep.subr.bf16.mxu0 0
    %839 = vmatpush1.bf16.msra.mxu0 0
    %840 = vmatprep.subr.bf16.mxu0 0
    %841 = vmatpush1.bf16.msra.mxu0 0
    %842 = vmatprep.subr.bf16.mxu0 0
    %843 = vmatpush1.bf16.msra.mxu0 0
    %844 = vmatprep.subr.bf16.mxu0 0
    %845 = vmatpush1.bf16.msra.mxu0 0
    %846 = vmatprep.subr.bf16.mxu0 0
    %847 = vmatpush1.bf16.msra.mxu0 0
    %848 = vmatprep.subr.bf16.mxu0 0
    %849 = vmatpush1.bf16.msra.mxu0 0
    %850 = vmatprep.subr.bf16.mxu0 0
    %851 = vmatpush1.bf16.msra.mxu0 0
    %852 = vmatprep.subr.bf16.mxu0 0
    %853 = vmatpush1.bf16.msra.mxu0 0
    %854 = vmatprep.subr.bf16.mxu0 0
    %855 = vmatpush1.bf16.msra.mxu0 0
    %856 = vmatprep.mubr.bf16.mxu0 0
    %857 = vmatmul.mubr.bf16.gmra.mrb[0].mxu0 %v819
    %v858 = vpop.f32.mrb[0].mxu0
    %v859 = vadd.f32 0.0, %v858
    %v860 = vpop.f32.mrb[0].mxu0
    %v861 = vpop.f32.mrb[0].mxu0
    %v862 = vpop.f32.mrb[0].mxu0
    %863 = vdwg.mxu0
    %864 = vrot.lane.b32.xlu0 %v149, 48
    %v865 = vpop.permute.xlu0 %864
    %v867 = vsel %vm157, %v815, 0
    %v870 = vsel %vm282, %v865, 0
    %872 = vmatprep.subr.bf16.mxu0 0
    %873 = vmatpush1.bf16.msra.mxu0 %v870
    %874 = vmatprep.subr.bf16.mxu0 0
    %875 = vmatpush1.bf16.msra.mxu0 0
    %876 = vmatprep.subr.bf16.mxu0 0
    %877 = vmatpush1.bf16.msra.mxu0 0
    %878 = vmatprep.subr.bf16.mxu0 0
    %879 = vmatpush1.bf16.msra.mxu0 0
    %880 = vmatprep.subr.bf16.mxu0 0
    %881 = vmatpush1.bf16.msra.mxu0 0
    %882 = vmatprep.subr.bf16.mxu0 0
    %883 = vmatpush1.bf16.msra.mxu0 0
    %884 = vmatprep.subr.bf16.mxu0 0
    %885 = vmatpush1.bf16.msra.mxu0 0
    %886 = vmatprep.subr.bf16.mxu0 0
    %887 = vmatpush1.bf16.msra.mxu0 0
    %888 = vmatprep.subr.bf16.mxu0 0
    %889 = vmatpush1.bf16.msra.mxu0 0
    %890 = vmatprep.subr.bf16.mxu0 0
    %891 = vmatpush1.bf16.msra.mxu0 0
    %892 = vmatprep.subr.bf16.mxu0 0
    %893 = vmatpush1.bf16.msra.mxu0 0
    %894 = vmatprep.subr.bf16.mxu0 0
    %895 = vmatpush1.bf16.msra.mxu0 0
    %896 = vmatprep.subr.bf16.mxu0 0
    %897 = vmatpush1.bf16.msra.mxu0 0
    %898 = vmatprep.subr.bf16.mxu0 0
    %899 = vmatpush1.bf16.msra.mxu0 0
    %900 = vmatprep.subr.bf16.mxu0 0
    %901 = vmatpush1.bf16.msra.mxu0 0
    %902 = vmatprep.subr.bf16.mxu0 0
    %903 = vmatpush1.bf16.msra.mxu0 0
    %904 = vmatprep.mubr.bf16.mxu0 0
    %905 = vmatmul.mubr.bf16.gmra.mrb[0].mxu0 %v867
    %v906 = vpop.f32.mrb[0].mxu0
    %v907 = vadd.f32 0.0, %v906
    %v908 = vpop.f32.mrb[0].mxu0
    %v909 = vpop.f32.mrb[0].mxu0
    %v910 = vpop.f32.mrb[0].mxu0
    %911 = vdwg.mxu0
    %v912 = vpack.c.bf16 %v907, %v859
    %v914 = vsel %vm157, %v912, 0
    %v917 = vsel %vm282, %v152, 0
    %919 = vmatprep.subr.bf16.mxu0 0
    %920 = vmatpush1.bf16.msra.mxu0 %v917
    %921 = vmatprep.subr.bf16.mxu0 0
    %922 = vmatpush1.bf16.msra.mxu0 0
    %923 = vmatprep.subr.bf16.mxu0 0
    %924 = vmatpush1.bf16.msra.mxu0 0
    %925 = vmatprep.subr.bf16.mxu0 0
    %926 = vmatpush1.bf16.msra.mxu0 0
    %927 = vmatprep.subr.bf16.mxu0 0
    %928 = vmatpush1.bf16.msra.mxu0 0
    %929 = vmatprep.subr.bf16.mxu0 0
    %930 = vmatpush1.bf16.msra.mxu0 0
    %931 = vmatprep.subr.bf16.mxu0 0
    %932 = vmatpush1.bf16.msra.mxu0 0
    %933 = vmatprep.subr.bf16.mxu0 0
    %934 = vmatpush1.bf16.msra.mxu0 0
    %935 = vmatprep.subr.bf16.mxu0 0
    %936 = vmatpush1.bf16.msra.mxu0 0
    %937 = vmatprep.subr.bf16.mxu0 0
    %938 = vmatpush1.bf16.msra.mxu0 0
    %939 = vmatprep.subr.bf16.mxu0 0
    %940 = vmatpush1.bf16.msra.mxu0 0
    %941 = vmatprep.subr.bf16.mxu0 0
    %942 = vmatpush1.bf16.msra.mxu0 0
    %943 = vmatprep.subr.bf16.mxu0 0
    %944 = vmatpush1.bf16.msra.mxu0 0
    %945 = vmatprep.subr.bf16.mxu0 0
    %946 = vmatpush1.bf16.msra.mxu0 0
    %947 = vmatprep.subr.bf16.mxu0 0
    %948 = vmatpush1.bf16.msra.mxu0 0
    %949 = vmatprep.subr.bf16.mxu0 0
    %950 = vmatpush1.bf16.msra.mxu0 0
    %951 = vmatprep.mubr.bf16.mxu0 0
    %952 = vmatmul.mubr.bf16.gmra.mrb[0].mxu0 %v914
    %v953 = vpop.f32.mrb[0].mxu0
    %v954 = vadd.f32 0.0, %v953
    %v955 = vpop.f32.mrb[0].mxu0
    %v956 = vpop.f32.mrb[0].mxu0
    %v957 = vadd.f32 0.0, %v956
    %v958 = vpop.f32.mrb[0].mxu0
    %959 = vdwg.mxu0
    %v960 = vadd.f32 %v686, %v954
    %v961 = vadd.f32 %v689, %v957
    %962 = vrot.lane.b32.xlu0 %v146, 104
    %v963 = vpop.permute.xlu0 %962
    %964 = vrot.lane.b32.xlu0 %v148, 72
    %v965 = vpop.permute.xlu0 %964
    %v967 = vsel %vm157, %v963, 0
    %v970 = vsel %vm157, %v965, 0
    %972 = vmatprep.subr.bf16.mxu0 0
    %973 = vmatpush1.bf16.xpose.msra.mxu0 %v970
    %974 = vmatprep.subr.bf16.mxu0 0
    %975 = vmatpush1.bf16.xpose.msra.mxu0 0
    %976 = vmatprep.subr.bf16.mxu0 0
    %977 = vmatpush1.bf16.xpose.msra.mxu0 0
    %978 = vmatprep.subr.bf16.mxu0 0
    %979 = vmatpush1.bf16.xpose.msra.mxu0 0
    %980 = vmatprep.subr.bf16.mxu0 0
    %981 = vmatpush1.bf16.xpose.msra.mxu0 0
    %982 = vmatprep.subr.bf16.mxu0 0
    %983 = vmatpush1.bf16.xpose.msra.mxu0 0
    %984 = vmatprep.subr.bf16.mxu0 0
    %985 = vmatpush1.bf16.xpose.msra.mxu0 0
    %986 = vmatprep.subr.bf16.mxu0 0
    %987 = vmatpush1.bf16.xpose.msra.mxu0 0
    %988 = vmatprep.subr.bf16.mxu0 0
    %989 = vmatpush1.bf16.xpose.msra.mxu0 0
    %990 = vmatprep.subr.bf16.mxu0 0
    %991 = vmatpush1.bf16.xpose.msra.mxu0 0
    %992 = vmatprep.subr.bf16.mxu0 0
    %993 = vmatpush1.bf16.xpose.msra.mxu0 0
    %994 = vmatprep.subr.bf16.mxu0 0
    %995 = vmatpush1.bf16.xpose.msra.mxu0 0
    %996 = vmatprep.subr.bf16.mxu0 0
    %997 = vmatpush1.bf16.xpose.msra.mxu0 0
    %998 = vmatprep.subr.bf16.mxu0 0
    %999 = vmatpush1.bf16.xpose.msra.mxu0 0
    %1000 = vmatprep.subr.bf16.mxu0 0
    %1001 = vmatpush1.bf16.xpose.msra.mxu0 0
    %1002 = vmatprep.subr.bf16.mxu0 0
    %1003 = vmatpush1.bf16.xpose.msra.mxu0 0
    %1004 = vmatprep.mubr.bf16.mxu0 0
    %1005 = vmatmul.mubr.bf16.gmra.mrb[0].mxu0 %v967
    %v1006 = vpop.f32.mrb[0].mxu0
    %v1007 = vadd.f32 %v41, %v1006
    %v1008 = vpop.f32.mrb[0].mxu0
    %v1009 = vpop.f32.mrb[0].mxu0
    %v1010 = vpop.f32.mrb[0].mxu0
    %1011 = vdwg.mxu0
    %1012 = vrot.lane.b32.xlu0 %v147, 104
    %v1013 = vpop.permute.xlu0 %1012
    %1014 = vrot.lane.b32.xlu0 %v149, 72
    %v1015 = vpop.permute.xlu0 %1014
    %v1017 = vsel %vm157, %v1013, 0
    %v1020 = vsel %vm157, %v1015, 0
    %1022 = vmatprep.subr.bf16.mxu0 0
    %1023 = vmatpush1.bf16.xpose.msra.mxu0 %v1020
    %1024 = vmatprep.subr.bf16.mxu0 0
    %1025 = vmatpush1.bf16.xpose.msra.mxu0 0
    %1026 = vmatprep.subr.bf16.mxu0 0
    %1027 = vmatpush1.bf16.xpose.msra.mxu0 0
    %1028 = vmatprep.subr.bf16.mxu0 0
    %1029 = vmatpush1.bf16.xpose.msra.mxu0 0
    %1030 = vmatprep.subr.bf16.mxu0 0
    %1031 = vmatpush1.bf16.xpose.msra.mxu0 0
    %1032 = vmatprep.subr.bf16.mxu0 0
    %1033 = vmatpush1.bf16.xpose.msra.mxu0 0
    %1034 = vmatprep.subr.bf16.mxu0 0
    %1035 = vmatpush1.bf16.xpose.msra.mxu0 0
    %1036 = vmatprep.subr.bf16.mxu0 0
    %1037 = vmatpush1.bf16.xpose.msra.mxu0 0
    %1038 = vmatprep.subr.bf16.mxu0 0
    %1039 = vmatpush1.bf16.xpose.msra.mxu0 0
    %1040 = vmatprep.subr.bf16.mxu0 0
    %1041 = vmatpush1.bf16.xpose.msra.mxu0 0
    %1042 = vmatprep.subr.bf16.mxu0 0
    %1043 = vmatpush1.bf16.xpose.msra.mxu0 0
    %1044 = vmatprep.subr.bf16.mxu0 0
    %1045 = vmatpush1.bf16.xpose.msra.mxu0 0
    %1046 = vmatprep.subr.bf16.mxu0 0
    %1047 = vmatpush1.bf16.xpose.msra.mxu0 0
    %1048 = vmatprep.subr.bf16.mxu0 0
    %1049 = vmatpush1.bf16.xpose.msra.mxu0 0
    %1050 = vmatprep.subr.bf16.mxu0 0
    %1051 = vmatpush1.bf16.xpose.msra.mxu0 0
    %1052 = vmatprep.subr.bf16.mxu0 0
    %1053 = vmatpush1.bf16.xpose.msra.mxu0 0
    %1054 = vmatprep.mubr.bf16.mxu0 0
    %1055 = vmatmul.mubr.bf16.gmra.mrb[0].mxu0 %v1017
    %v1056 = vpop.f32.mrb[0].mxu0
    %v1057 = vadd.f32 %v41, %v1056
    %v1058 = vpop.f32.mrb[0].mxu0
    %v1059 = vpop.f32.mrb[0].mxu0
    %v1060 = vpop.f32.mrb[0].mxu0
    %1061 = vdwg.mxu0
    %v1062 = vsel %vm157, %v1007, -inf
    %1063 = vmax.xlane.f32.xlu0 %v1062
    %v1064 = vpop.xlane.xlu0 %1063
    %v1065 = vsel %vm157, %v1057, -inf
    %1066 = vmax.xlane.f32.xlu0 %v1065
    %v1067 = vpop.xlane.xlu0 %1066
    %v1068 = vsub.f32 %v1007, %v1064
    %v1069 = vsub.f32 %v1057, %v1067
    %v1070 = vmul.f32 %v1068, 1.442695
    %v1071 = vpow.pop %v1070
    %v1072 = vmul.f32 %v1069, 1.442695
    %v1073 = vpow.pop %v1072
    %v1074 = vsel %vm157, %v1071, 0.0
    %1075 = vadd.xlane.f32.xlu0 %v1074
    %v1076 = vpop.xlane.xlu0 %1075
    %v1077 = vsel %vm157, %v1073, 0.0
    %1078 = vadd.xlane.f32.xlu0 %v1077
    %v1079 = vpop.xlane.xlu0 %1078
    %v1080 = vrcp.pop %v1076
    %v1081 = vrcp.pop %v1079
    %v1082 = vmul.f32 %v1071, %v1080
    %v1083 = vmul.f32 %v1073, %v1081
    %v1084 = vpack.c.bf16 %v1082, %v1082
    %v1085 = vpack.c.bf16 %v1083, %v1083
    %1086 = vrot.lane.b32.xlu0 %v148, 40
    %v1087 = vpop.permute.xlu0 %1086
    %v1089 = vsel %vm157, %v1084, 0
    %v1092 = vsel %vm282, %v1087, 0
    %1094 = vmatprep.subr.bf16.mxu0 0
    %1095 = vmatpush1.bf16.msra.mxu0 %v1092
    %1096 = vmatprep.subr.bf16.mxu0 0
    %1097 = vmatpush1.bf16.msra.mxu0 0
    %1098 = vmatprep.subr.bf16.mxu0 0
    %1099 = vmatpush1.bf16.msra.mxu0 0
    %1100 = vmatprep.subr.bf16.mxu0 0
    %1101 = vmatpush1.bf16.msra.mxu0 0
    %1102 = vmatprep.subr.bf16.mxu0 0
    %1103 = vmatpush1.bf16.msra.mxu0 0
    %1104 = vmatprep.subr.bf16.mxu0 0
    %1105 = vmatpush1.bf16.msra.mxu0 0
    %1106 = vmatprep.subr.bf16.mxu0 0
    %1107 = vmatpush1.bf16.msra.mxu0 0
    %1108 = vmatprep.subr.bf16.mxu0 0
    %1109 = vmatpush1.bf16.msra.mxu0 0
    %1110 = vmatprep.subr.bf16.mxu0 0
    %1111 = vmatpush1.bf16.msra.mxu0 0
    %1112 = vmatprep.subr.bf16.mxu0 0
    %1113 = vmatpush1.bf16.msra.mxu0 0
    %1114 = vmatprep.subr.bf16.mxu0 0
    %1115 = vmatpush1.bf16.msra.mxu0 0
    %1116 = vmatprep.subr.bf16.mxu0 0
    %1117 = vmatpush1.bf16.msra.mxu0 0
    %1118 = vmatprep.subr.bf16.mxu0 0
    %1119 = vmatpush1.bf16.msra.mxu0 0
    %1120 = vmatprep.subr.bf16.mxu0 0
    %1121 = vmatpush1.bf16.msra.mxu0 0
    %1122 = vmatprep.subr.bf16.mxu0 0
    %1123 = vmatpush1.bf16.msra.mxu0 0
    %1124 = vmatprep.subr.bf16.mxu0 0
    %1125 = vmatpush1.bf16.msra.mxu0 0
    %1126 = vmatprep.mubr.bf16.mxu0 0
    %1127 = vmatmul.mubr.bf16.gmra.mrb[0].mxu0 %v1089
    %v1128 = vpop.f32.mrb[0].mxu0
    %v1129 = vadd.f32 0.0, %v1128
    %v1130 = vpop.f32.mrb[0].mxu0
    %v1131 = vpop.f32.mrb[0].mxu0
    %v1132 = vpop.f32.mrb[0].mxu0
    %1133 = vdwg.mxu0
    %1134 = vrot.lane.b32.xlu0 %v149, 40
    %v1135 = vpop.permute.xlu0 %1134
    %v1137 = vsel %vm157, %v1085, 0
    %v1140 = vsel %vm282, %v1135, 0
    %1142 = vmatprep.subr.bf16.mxu0 0
    %1143 = vmatpush1.bf16.msra.mxu0 %v1140
    %1144 = vmatprep.subr.bf16.mxu0 0
    %1145 = vmatpush1.bf16.msra.mxu0 0
    %1146 = vmatprep.subr.bf16.mxu0 0
    %1147 = vmatpush1.bf16.msra.mxu0 0
    %1148 = vmatprep.subr.bf16.mxu0 0
    %1149 = vmatpush1.bf16.msra.mxu0 0
    %1150 = vmatprep.subr.bf16.mxu0 0
    %1151 = vmatpush1.bf16.msra.mxu0 0
    %1152 = vmatprep.subr.bf16.mxu0 0
    %1153 = vmatpush1.bf16.msra.mxu0 0
    %1154 = vmatprep.subr.bf16.mxu0 0
    %1155 = vmatpush1.bf16.msra.mxu0 0
    %1156 = vmatprep.subr.bf16.mxu0 0
    %1157 = vmatpush1.bf16.msra.mxu0 0
    %1158 = vmatprep.subr.bf16.mxu0 0
    %1159 = vmatpush1.bf16.msra.mxu0 0
    %1160 = vmatprep.subr.bf16.mxu0 0
    %1161 = vmatpush1.bf16.msra.mxu0 0
    %1162 = vmatprep.subr.bf16.mxu0 0
    %1163 = vmatpush1.bf16.msra.mxu0 0
    %1164 = vmatprep.subr.bf16.mxu0 0
    %1165 = vmatpush1.bf16.msra.mxu0 0
    %1166 = vmatprep.subr.bf16.mxu0 0
    %1167 = vmatpush1.bf16.msra.mxu0 0
    %1168 = vmatprep.subr.bf16.mxu0 0
    %1169 = vmatpush1.bf16.msra.mxu0 0
    %1170 = vmatprep.subr.bf16.mxu0 0
    %1171 = vmatpush1.bf16.msra.mxu0 0
    %1172 = vmatprep.subr.bf16.mxu0 0
    %1173 = vmatpush1.bf16.msra.mxu0 0
    %1174 = vmatprep.mubr.bf16.mxu0 0
    %1175 = vmatmul.mubr.bf16.gmra.mrb[0].mxu0 %v1137
    %v1176 = vpop.f32.mrb[0].mxu0
    %v1177 = vadd.f32 0.0, %v1176
    %v1178 = vpop.f32.mrb[0].mxu0
    %v1179 = vpop.f32.mrb[0].mxu0
    %v1180 = vpop.f32.mrb[0].mxu0
    %1181 = vdwg.mxu0
    %v1182 = vpack.c.bf16 %v1177, %v1129
    %v1184 = vsel %vm157, %v1182, 0
    %v1187 = vsel %vm282, %v153, 0
    %1189 = vmatprep.subr.bf16.mxu0 0
    %1190 = vmatpush1.bf16.msra.mxu0 %v1187
    %1191 = vmatprep.subr.bf16.mxu0 0
    %1192 = vmatpush1.bf16.msra.mxu0 0
    %1193 = vmatprep.subr.bf16.mxu0 0
    %1194 = vmatpush1.bf16.msra.mxu0 0
    %1195 = vmatprep.subr.bf16.mxu0 0
    %1196 = vmatpush1.bf16.msra.mxu0 0
    %1197 = vmatprep.subr.bf16.mxu0 0
    %1198 = vmatpush1.bf16.msra.mxu0 0
    %1199 = vmatprep.subr.bf16.mxu0 0
    %1200 = vmatpush1.bf16.msra.mxu0 0
    %1201 = vmatprep.subr.bf16.mxu0 0
    %1202 = vmatpush1.bf16.msra.mxu0 0
    %1203 = vmatprep.subr.bf16.mxu0 0
    %1204 = vmatpush1.bf16.msra.mxu0 0
    %1205 = vmatprep.subr.bf16.mxu0 0
    %1206 = vmatpush1.bf16.msra.mxu0 0
    %1207 = vmatprep.subr.bf16.mxu0 0
    %1208 = vmatpush1.bf16.msra.mxu0 0
    %1209 = vmatprep.subr.bf16.mxu0 0
    %1210 = vmatpush1.bf16.msra.mxu0 0
    %1211 = vmatprep.subr.bf16.mxu0 0
    %1212 = vmatpush1.bf16.msra.mxu0 0
    %1213 = vmatprep.subr.bf16.mxu0 0
    %1214 = vmatpush1.bf16.msra.mxu0 0
    %1215 = vmatprep.subr.bf16.mxu0 0
    %1216 = vmatpush1.bf16.msra.mxu0 0
    %1217 = vmatprep.subr.bf16.mxu0 0
    %1218 = vmatpush1.bf16.msra.mxu0 0
    %1219 = vmatprep.subr.bf16.mxu0 0
    %1220 = vmatpush1.bf16.msra.mxu0 0
    %1221 = vmatprep.mubr.bf16.mxu0 0
    %1222 = vmatmul.mubr.bf16.gmra.mrb[0].mxu0 %v1184
    %v1223 = vpop.f32.mrb[0].mxu0
    %v1224 = vadd.f32 0.0, %v1223
    %v1225 = vpop.f32.mrb[0].mxu0
    %v1226 = vpop.f32.mrb[0].mxu0
    %v1227 = vadd.f32 0.0, %v1226
    %v1228 = vpop.f32.mrb[0].mxu0
    %1229 = vdwg.mxu0
    %v1230 = vadd.f32 %v960, %v1224
    %v1231 = vadd.f32 %v961, %v1227
    %v1232 = vadd.f32 %v34, %v1230
    %v1233 = vadd.f32 %v35, %v1231
    %v1234 = vlaneseq
    %v1235 = vshrl.u32 %v1234, 7
    %v1236 = vsub.s32 4, %v1235
    %v1237 = vrot.slane %v42, %v1236
    %v1238 = vadd.f32 %v1232, %v1237
    %v1239 = vadd.f32 %v1233, %v1237
    %v1240 = vsel %vm43, %v1238, 0.0
    %1241 = vadd.xlane.f32.xlu0 %v1240
    %v1242 = vpop.xlane.xlu0 %1241
    %v1243 = vsel %vm43, %v1239, 0.0
    %1244 = vadd.xlane.f32.xlu0 %v1243
    %v1245 = vpop.xlane.xlu0 %1244
    %v1246 = vmul.f32 %v1242, %v50
    %v1247 = vmul.f32 %v1245, %v50
    %v1248 = vsub.f32 %v1238, %v1246
    %v1249 = vsub.f32 %v1239, %v1247
    %v1250 = vmul.f32 %v1248, %v1248
    %v1251 = vmul.f32 %v1249, %v1249
    %v1252 = vsel %vm43, %v1250, 0.0
    %1253 = vadd.xlane.f32.xlu0 %v1252
    %v1254 = vpop.xlane.xlu0 %1253
    %v1255 = vsel %vm43, %v1251, 0.0
    %1256 = vadd.xlane.f32.xlu0 %v1255
    %v1257 = vpop.xlane.xlu0 %1256
    %v1258 = vmul.f32 %v1254, %v50
    %v1259 = vmul.f32 %v1257, %v50
    %v1260 = vadd.f32 %v1258, 1e-05
    %v1261 = vadd.f32 %v1259, 1e-05
    %v1262 = vrsqrt.pop %v1260
    %v1263 = vrsqrt.pop %v1261
    %v1264 = vmul.f32 %v1248, %v1262
    %v1265 = vmul.f32 %v1249, %v1263
    %v1266 = vlaneseq
    %v1267 = vshrl.u32 %v1266, 7
    %v1268 = vsub.s32 2, %v1267
    %v1269 = vrot.slane %v42, %v1268
    %v1270 = vmul.f32 %v1264, %v1269
    %v1271 = vmul.f32 %v1265, %v1269
    %v1272 = vlaneseq
    %v1273 = vshrl.u32 %v1272, 7
    %v1274 = vsub.s32 3, %v1273
    %v1275 = vrot.slane %v42, %v1274
    %v1276 = vadd.f32 %v1270, %v1275
    %v1277 = vadd.f32 %v1271, %v1275
    %v1278 = vpack.c.bf16 %v1277, %v1276
    %v1279 = vld [vmem:[%s3] sm:$0xf]
    %v1280 = vld [vmem:[%s3 + $0x4] sm:$0xf]
    %v1281 = vld [vmem:[%s3 + $0x8] sm:$0xf]
    %v1282 = vld [vmem:[%s3 + $0xc] sm:$0xf]
    %v1283 = vld [vmem:[%s6] sm:$0x1]
    %v1285 = vlaneseq
    %v1286 = vshrl.u32 %v1285, 7
    %v1287 = vsub.s32 0, %v1286
    %v1288 = vrot.slane %v1283, %v1287
    %v1294 = vunpack.c.l.b16 %v1279
    %v1295 = vunpack.c.l.b16 %v1280
    %v1296 = vunpack.c.l.b16 %v1281
    %v1297 = vunpack.c.l.b16 %v1282
    %v1298 = vpack.c.b16 %v1295, %v1294
    %v1299 = vpack.c.b16 %v1297, %v1296
    %v1303 = vsel %vm43, %v1278, 0
    %1305 = vmatprep.subr.bf16.mxu0 0
    %1306 = vmatpush1.bf16.msra.mxu0 %v1298
    %1307 = vmatprep.subr.bf16.mxu0 0
    %1308 = vmatpush1.bf16.msra.mxu0 %v1299
    %1309 = vmatprep.subr.bf16.mxu0 0
    %1310 = vmatpush1.bf16.msra.mxu0 0
    %1311 = vmatprep.subr.bf16.mxu0 0
    %1312 = vmatpush1.bf16.msra.mxu0 0
    %1313 = vmatprep.subr.bf16.mxu0 0
    %1314 = vmatpush1.bf16.msra.mxu0 0
    %1315 = vmatprep.subr.bf16.mxu0 0
    %1316 = vmatpush1.bf16.msra.mxu0 0
    %1317 = vmatprep.subr.bf16.mxu0 0
    %1318 = vmatpush1.bf16.msra.mxu0 0
    %1319 = vmatprep.subr.bf16.mxu0 0
    %1320 = vmatpush1.bf16.msra.mxu0 0
    %1321 = vmatprep.subr.bf16.mxu0 0
    %1322 = vmatpush1.bf16.msra.mxu0 0
    %1323 = vmatprep.subr.bf16.mxu0 0
    %1324 = vmatpush1.bf16.msra.mxu0 0
    %1325 = vmatprep.subr.bf16.mxu0 0
    %1326 = vmatpush1.bf16.msra.mxu0 0
    %1327 = vmatprep.subr.bf16.mxu0 0
    %1328 = vmatpush1.bf16.msra.mxu0 0
    %1329 = vmatprep.subr.bf16.mxu0 0
    %1330 = vmatpush1.bf16.msra.mxu0 0
    %1331 = vmatprep.subr.bf16.mxu0 0
    %1332 = vmatpush1.bf16.msra.mxu0 0
    %1333 = vmatprep.subr.bf16.mxu0 0
    %1334 = vmatpush1.bf16.msra.mxu0 0
    %1335 = vmatprep.subr.bf16.mxu0 0
    %1336 = vmatpush1.bf16.msra.mxu0 0
    %1337 = vmatprep.mubr.bf16.mxu0 0
    %1338 = vmatmul.mubr.bf16.gmra.mrb[0].mxu0 %v1303
    %v1339 = vpop.f32.mrb[0].mxu0
    %v1340 = vadd.f32 %v1288, %v1339
    %v1341 = vpop.f32.mrb[0].mxu0
    %v1342 = vpop.f32.mrb[0].mxu0
    %v1343 = vadd.f32 %v1288, %v1342
    %v1344 = vpop.f32.mrb[0].mxu0
    %1345 = vdwg.mxu0
    %v1346 = vmul.f32 %v1340, 0.5
    %v1347 = vmul.f32 %v1343, 0.5
    %v1348 = vmul.f32 %v1340, 0.70710677
    %v1349 = vmul.f32 %v1343, 0.70710677
    %v1350 = verf.f32.pop %v1348
    %v1351 = verf.f32.pop %v1349
    %v1352 = vadd.f32 %v1350, 1.0
    %v1353 = vadd.f32 %v1351, 1.0
    %v1354 = vmul.f32 %v1346, %v1352
    %v1355 = vmul.f32 %v1347, %v1353
    %v1356 = vpack.c.bf16 %v1355, %v1354
    %v1357 = vld [vmem:[%s4] sm:$0xf]
    %v1358 = vld [vmem:[%s4 + $0x4] sm:$0xf]
    %v1359 = vld [vmem:[%s4 + $0x8] sm:$0xf]
    %v1360 = vld [vmem:[%s4 + $0xc] sm:$0xf]
    %v1361 = vld [vmem:[%s4 + $0x10] sm:$0xf]
    %v1362 = vld [vmem:[%s4 + $0x14] sm:$0xf]
    %v1363 = vld [vmem:[%s4 + $0x18] sm:$0xf]
    %v1364 = vld [vmem:[%s4 + $0x1c] sm:$0xf]
    %v1365 = vld [vmem:[%s4 + $0x20] sm:$0xf]
    %v1366 = vld [vmem:[%s4 + $0x24] sm:$0xf]
    %v1367 = vld [vmem:[%s4 + $0x28] sm:$0xf]
    %v1368 = vld [vmem:[%s4 + $0x2c] sm:$0xf]
    %v1369 = vld [vmem:[%s4 + $0x30] sm:$0xf]
    %v1370 = vld [vmem:[%s4 + $0x34] sm:$0xf]
    %v1371 = vld [vmem:[%s4 + $0x38] sm:$0xf]
    %v1372 = vld [vmem:[%s4 + $0x3c] sm:$0xf]
    %v1373 = vlaneseq
    %v1374 = vshrl.u32 %v1373, 7
    %v1375 = vsub.s32 5, %v1374
    %v1376 = vrot.slane %v42, %v1375
    %v1393 = vunpack.c.l.b16 %v1357
    %v1394 = vunpack.c.l.b16 %v1358
    %v1395 = vunpack.c.l.b16 %v1359
    %v1396 = vunpack.c.l.b16 %v1360
    %v1397 = vunpack.c.l.b16 %v1361
    %v1398 = vunpack.c.l.b16 %v1362
    %v1399 = vunpack.c.l.b16 %v1363
    %v1400 = vunpack.c.l.b16 %v1364
    %v1401 = vunpack.c.l.b16 %v1365
    %v1402 = vunpack.c.l.b16 %v1366
    %v1403 = vunpack.c.l.b16 %v1367
    %v1404 = vunpack.c.l.b16 %v1368
    %v1405 = vunpack.c.l.b16 %v1369
    %v1406 = vunpack.c.l.b16 %v1370
    %v1407 = vunpack.c.l.b16 %v1371
    %v1408 = vunpack.c.l.b16 %v1372
    %v1409 = vpack.c.b16 %v1394, %v1393
    %v1410 = vpack.c.b16 %v1396, %v1395
    %v1411 = vpack.c.b16 %v1398, %v1397
    %v1412 = vpack.c.b16 %v1400, %v1399
    %v1413 = vpack.c.b16 %v1402, %v1401
    %v1414 = vpack.c.b16 %v1404, %v1403
    %v1415 = vpack.c.b16 %v1406, %v1405
    %v1416 = vpack.c.b16 %v1408, %v1407
    %1425 = vmatprep.subr.bf16.mxu0 0
    %1426 = vmatpush1.bf16.msra.mxu0 %v1409
    %1427 = vmatprep.subr.bf16.mxu0 0
    %1428 = vmatpush1.bf16.msra.mxu0 %v1410
    %1429 = vmatprep.subr.bf16.mxu0 0
    %1430 = vmatpush1.bf16.msra.mxu0 %v1411
    %1431 = vmatprep.subr.bf16.mxu0 0
    %1432 = vmatpush1.bf16.msra.mxu0 %v1412
    %1433 = vmatprep.subr.bf16.mxu0 0
    %1434 = vmatpush1.bf16.msra.mxu0 %v1413
    %1435 = vmatprep.subr.bf16.mxu0 0
    %1436 = vmatpush1.bf16.msra.mxu0 %v1414
    %1437 = vmatprep.subr.bf16.mxu0 0
    %1438 = vmatpush1.bf16.msra.mxu0 %v1415
    %1439 = vmatprep.subr.bf16.mxu0 0
    %1440 = vmatpush1.bf16.msra.mxu0 %v1416
    %1441 = vmatprep.subr.bf16.mxu0 0
    %1442 = vmatpush1.bf16.msra.mxu0 0
    %1443 = vmatprep.subr.bf16.mxu0 0
    %1444 = vmatpush1.bf16.msra.mxu0 0
    %1445 = vmatprep.subr.bf16.mxu0 0
    %1446 = vmatpush1.bf16.msra.mxu0 0
    %1447 = vmatprep.subr.bf16.mxu0 0
    %1448 = vmatpush1.bf16.msra.mxu0 0
    %1449 = vmatprep.subr.bf16.mxu0 0
    %1450 = vmatpush1.bf16.msra.mxu0 0
    %1451 = vmatprep.subr.bf16.mxu0 0
    %1452 = vmatpush1.bf16.msra.mxu0 0
    %1453 = vmatprep.subr.bf16.mxu0 0
    %1454 = vmatpush1.bf16.msra.mxu0 0
    %1455 = vmatprep.subr.bf16.mxu0 0
    %1456 = vmatpush1.bf16.msra.mxu0 0
    %1457 = vmatprep.mubr.bf16.mxu0 0
    %1458 = vmatmul.mubr.bf16.gmra.mrb[0].mxu0 %v1356
    %v1459 = vpop.f32.mrb[0].mxu0
    %v1460 = vadd.f32 %v1376, %v1459
    %v1461 = vpop.f32.mrb[0].mxu0
    %v1462 = vpop.f32.mrb[0].mxu0
    %v1463 = vadd.f32 %v1376, %v1462
    %v1464 = vpop.f32.mrb[0].mxu0
    %1465 = vdwg.mxu0
    %v1466 = vadd.f32 %v1238, %v1460
    %v1467 = vadd.f32 %v1239, %v1463
    %s1468 = scalar_lea.vmem %s5, 8
    %v1469 = vld [vmem:[%s1468] sm:$0x3f]
    %v1470 = vsel %vm43, %v1466, 0.0
    %1471 = vadd.xlane.f32.xlu0 %v1470
    %v1472 = vpop.xlane.xlu0 %1471
    %v1473 = vsel %vm43, %v1467, 0.0
    %1474 = vadd.xlane.f32.xlu0 %v1473
    %v1475 = vpop.xlane.xlu0 %1474
    %v1476 = vmul.f32 %v1472, %v50
    %v1477 = vmul.f32 %v1475, %v50
    %v1478 = vsub.f32 %v1466, %v1476
    %v1479 = vsub.f32 %v1467, %v1477
    %v1480 = vmul.f32 %v1478, %v1478
    %v1481 = vmul.f32 %v1479, %v1479
    %v1482 = vsel %vm43, %v1480, 0.0
    %1483 = vadd.xlane.f32.xlu0 %v1482
    %v1484 = vpop.xlane.xlu0 %1483
    %v1485 = vsel %vm43, %v1481, 0.0
    %1486 = vadd.xlane.f32.xlu0 %v1485
    %v1487 = vpop.xlane.xlu0 %1486
    %v1488 = vmul.f32 %v1484, %v50
    %v1489 = vmul.f32 %v1487, %v50
    %v1490 = vadd.f32 %v1488, 1e-05
    %v1491 = vadd.f32 %v1489, 1e-05
    %v1492 = vrsqrt.pop %v1490
    %v1493 = vrsqrt.pop %v1491
    %v1494 = vmul.f32 %v1478, %v1492
    %v1495 = vmul.f32 %v1479, %v1493
    %v1496 = vlaneseq
    %v1497 = vshrl.u32 %v1496, 7
    %v1498 = vsub.s32 0, %v1497
    %v1499 = vrot.slane %v1469, %v1498
    %v1500 = vmul.f32 %v1494, %v1499
    %v1501 = vmul.f32 %v1495, %v1499
    %v1502 = vlaneseq
    %v1503 = vshrl.u32 %v1502, 7
    %v1504 = vsub.s32 1, %v1503
    %v1505 = vrot.slane %v1469, %v1504
    %v1506 = vadd.f32 %v1500, %v1505
    %v1507 = vadd.f32 %v1501, %v1505
    %v1508 = vpack.c.bf16 %v1507, %v1506
    %s1509 = scalar_lea.vmem %s1, 16
    %v1510 = vld [vmem:[%s1509] sm:$0xf]
    %v1511 = vld [vmem:[%s1509 + $0x4] sm:$0xf]
    %v1512 = vld [vmem:[%s1509 + $0x8] sm:$0xf]
    %v1513 = vld [vmem:[%s1509 + $0xc] sm:$0xf]
    %v1518 = vunpack.c.l.b16 %v1510
    %v1519 = vunpack.c.l.b16 %v1511
    %v1520 = vunpack.c.l.b16 %v1512
    %v1521 = vunpack.c.l.b16 %v1513
    %v1522 = vpack.c.b16 %v1519, %v1518
    %v1523 = vpack.c.b16 %v1521, %v1520
    %v1527 = vsel %vm43, %v1508, 0
    %1529 = vmatprep.subr.bf16.mxu0 0
    %1530 = vmatpush1.bf16.msra.mxu0 %v1522
    %1531 = vmatprep.subr.bf16.mxu0 0
    %1532 = vmatpush1.bf16.msra.mxu0 %v1523
    %1533 = vmatprep.subr.bf16.mxu0 0
    %1534 = vmatpush1.bf16.msra.mxu0 0
    %1535 = vmatprep.subr.bf16.mxu0 0
    %1536 = vmatpush1.bf16.msra.mxu0 0
    %1537 = vmatprep.subr.bf16.mxu0 0
    %1538 = vmatpush1.bf16.msra.mxu0 0
    %1539 = vmatprep.subr.bf16.mxu0 0
    %1540 = vmatpush1.bf16.msra.mxu0 0
    %1541 = vmatprep.subr.bf16.mxu0 0
    %1542 = vmatpush1.bf16.msra.mxu0 0
    %1543 = vmatprep.subr.bf16.mxu0 0
    %1544 = vmatpush1.bf16.msra.mxu0 0
    %1545 = vmatprep.subr.bf16.mxu0 0
    %1546 = vmatpush1.bf16.msra.mxu0 0
    %1547 = vmatprep.subr.bf16.mxu0 0
    %1548 = vmatpush1.bf16.msra.mxu0 0
    %1549 = vmatprep.subr.bf16.mxu0 0
    %1550 = vmatpush1.bf16.msra.mxu0 0
    %1551 = vmatprep.subr.bf16.mxu0 0
    %1552 = vmatpush1.bf16.msra.mxu0 0
    %1553 = vmatprep.subr.bf16.mxu0 0
    %1554 = vmatpush1.bf16.msra.mxu0 0
    %1555 = vmatprep.subr.bf16.mxu0 0
    %1556 = vmatpush1.bf16.msra.mxu0 0
    %1557 = vmatprep.subr.bf16.mxu0 0
    %1558 = vmatpush1.bf16.msra.mxu0 0
    %1559 = vmatprep.subr.bf16.mxu0 0
    %1560 = vmatpush1.bf16.msra.mxu0 0
    %1561 = vmatprep.mubr.bf16.mxu0 0
    %1562 = vmatmul.mubr.bf16.gmra.mrb[0].mxu0 %v1527
    %v1563 = vpop.f32.mrb[0].mxu0
    %v1564 = vadd.f32 0.0, %v1563
    %v1565 = vpop.f32.mrb[0].mxu0
    %v1566 = vpop.f32.mrb[0].mxu0
    %v1567 = vadd.f32 0.0, %v1566
    %v1568 = vpop.f32.mrb[0].mxu0
    %1569 = vdwg.mxu0
    %v1570 = vmul.f32 %v1564, 0.35355338
    %v1571 = vmul.f32 %v1567, 0.35355338
    %v1572 = vpack.c.bf16 %v1570, %v1570
    %v1573 = vpack.c.bf16 %v1571, %v1571
    %v1574 = vpack.c.bf16 %v1564, %v1564
    %v1575 = vpack.c.bf16 %v1567, %v1567
    %s1576 = scalar_lea.vmem %s2, 16
    %v1577 = vld [vmem:[%s1576] sm:$0xf]
    %v1578 = vld [vmem:[%s1576 + $0x4] sm:$0xf]
    %v1579 = vld [vmem:[%s1576 + $0x8] sm:$0xf]
    %v1580 = vld [vmem:[%s1576 + $0xc] sm:$0xf]
    %1582 = vrot.lane.b32.xlu0 %v1574, 96
    %v1583 = vpop.permute.xlu0 %1582
    %v1585 = vsel %vm157, %v1572, 0
    %v1588 = vsel %vm157, %v1583, 0
    %1590 = vmatprep.subr.bf16.mxu0 0
    %1591 = vmatpush1.bf16.xpose.msra.mxu0 %v1588
    %1592 = vmatprep.subr.bf16.mxu0 0
    %1593 = vmatpush1.bf16.xpose.msra.mxu0 0
    %1594 = vmatprep.subr.bf16.mxu0 0
    %1595 = vmatpush1.bf16.xpose.msra.mxu0 0
    %1596 = vmatprep.subr.bf16.mxu0 0
    %1597 = vmatpush1.bf16.xpose.msra.mxu0 0
    %1598 = vmatprep.subr.bf16.mxu0 0
    %1599 = vmatpush1.bf16.xpose.msra.mxu0 0
    %1600 = vmatprep.subr.bf16.mxu0 0
    %1601 = vmatpush1.bf16.xpose.msra.mxu0 0
    %1602 = vmatprep.subr.bf16.mxu0 0
    %1603 = vmatpush1.bf16.xpose.msra.mxu0 0
    %1604 = vmatprep.subr.bf16.mxu0 0
    %1605 = vmatpush1.bf16.xpose.msra.mxu0 0
    %1606 = vmatprep.subr.bf16.mxu0 0
    %1607 = vmatpush1.bf16.xpose.msra.mxu0 0
    %1608 = vmatprep.subr.bf16.mxu0 0
    %1609 = vmatpush1.bf16.xpose.msra.mxu0 0
    %1610 = vmatprep.subr.bf16.mxu0 0
    %1611 = vmatpush1.bf16.xpose.msra.mxu0 0
    %1612 = vmatprep.subr.bf16.mxu0 0
    %1613 = vmatpush1.bf16.xpose.msra.mxu0 0
    %1614 = vmatprep.subr.bf16.mxu0 0
    %1615 = vmatpush1.bf16.xpose.msra.mxu0 0
    %1616 = vmatprep.subr.bf16.mxu0 0
    %1617 = vmatpush1.bf16.xpose.msra.mxu0 0
    %1618 = vmatprep.subr.bf16.mxu0 0
    %1619 = vmatpush1.bf16.xpose.msra.mxu0 0
    %1620 = vmatprep.subr.bf16.mxu0 0
    %1621 = vmatpush1.bf16.xpose.msra.mxu0 0
    %1622 = vmatprep.mubr.bf16.mxu0 0
    %1623 = vmatmul.mubr.bf16.gmra.mrb[0].mxu0 %v1585
    %v1624 = vpop.f32.mrb[0].mxu0
    %v1625 = vadd.f32 %v41, %v1624
    %v1626 = vpop.f32.mrb[0].mxu0
    %v1627 = vpop.f32.mrb[0].mxu0
    %v1628 = vpop.f32.mrb[0].mxu0
    %1629 = vdwg.mxu0
    %1631 = vrot.lane.b32.xlu0 %v1575, 96
    %v1632 = vpop.permute.xlu0 %1631
    %v1634 = vsel %vm157, %v1573, 0
    %v1637 = vsel %vm157, %v1632, 0
    %1639 = vmatprep.subr.bf16.mxu0 0
    %1640 = vmatpush1.bf16.xpose.msra.mxu0 %v1637
    %1641 = vmatprep.subr.bf16.mxu0 0
    %1642 = vmatpush1.bf16.xpose.msra.mxu0 0
    %1643 = vmatprep.subr.bf16.mxu0 0
    %1644 = vmatpush1.bf16.xpose.msra.mxu0 0
    %1645 = vmatprep.subr.bf16.mxu0 0
    %1646 = vmatpush1.bf16.xpose.msra.mxu0 0
    %1647 = vmatprep.subr.bf16.mxu0 0
    %1648 = vmatpush1.bf16.xpose.msra.mxu0 0
    %1649 = vmatprep.subr.bf16.mxu0 0
    %1650 = vmatpush1.bf16.xpose.msra.mxu0 0
    %1651 = vmatprep.subr.bf16.mxu0 0
    %1652 = vmatpush1.bf16.xpose.msra.mxu0 0
    %1653 = vmatprep.subr.bf16.mxu0 0
    %1654 = vmatpush1.bf16.xpose.msra.mxu0 0
    %1655 = vmatprep.subr.bf16.mxu0 0
    %1656 = vmatpush1.bf16.xpose.msra.mxu0 0
    %1657 = vmatprep.subr.bf16.mxu0 0
    %1658 = vmatpush1.bf16.xpose.msra.mxu0 0
    %1659 = vmatprep.subr.bf16.mxu0 0
    %1660 = vmatpush1.bf16.xpose.msra.mxu0 0
    %1661 = vmatprep.subr.bf16.mxu0 0
    %1662 = vmatpush1.bf16.xpose.msra.mxu0 0
    %1663 = vmatprep.subr.bf16.mxu0 0
    %1664 = vmatpush1.bf16.xpose.msra.mxu0 0
    %1665 = vmatprep.subr.bf16.mxu0 0
    %1666 = vmatpush1.bf16.xpose.msra.mxu0 0
    %1667 = vmatprep.subr.bf16.mxu0 0
    %1668 = vmatpush1.bf16.xpose.msra.mxu0 0
    %1669 = vmatprep.subr.bf16.mxu0 0
    %1670 = vmatpush1.bf16.xpose.msra.mxu0 0
    %1671 = vmatprep.mubr.bf16.mxu0 0
    %1672 = vmatmul.mubr.bf16.gmra.mrb[0].mxu0 %v1634
    %v1673 = vpop.f32.mrb[0].mxu0
    %v1674 = vadd.f32 %v41, %v1673
    %v1675 = vpop.f32.mrb[0].mxu0
    %v1676 = vpop.f32.mrb[0].mxu0
    %v1677 = vpop.f32.mrb[0].mxu0
    %1678 = vdwg.mxu0
    %v1679 = vsel %vm157, %v1625, -inf
    %1680 = vmax.xlane.f32.xlu0 %v1679
    %v1681 = vpop.xlane.xlu0 %1680
    %v1682 = vsel %vm157, %v1674, -inf
    %1683 = vmax.xlane.f32.xlu0 %v1682
    %v1684 = vpop.xlane.xlu0 %1683
    %v1685 = vsub.f32 %v1625, %v1681
    %v1686 = vsub.f32 %v1674, %v1684
    %v1687 = vmul.f32 %v1685, 1.442695
    %v1688 = vpow.pop %v1687
    %v1689 = vmul.f32 %v1686, 1.442695
    %v1690 = vpow.pop %v1689
    %v1691 = vsel %vm157, %v1688, 0.0
    %1692 = vadd.xlane.f32.xlu0 %v1691
    %v1693 = vpop.xlane.xlu0 %1692
    %v1694 = vsel %vm157, %v1690, 0.0
    %1695 = vadd.xlane.f32.xlu0 %v1694
    %v1696 = vpop.xlane.xlu0 %1695
    %v1697 = vrcp.pop %v1693
    %v1698 = vrcp.pop %v1696
    %v1699 = vmul.f32 %v1688, %v1697
    %v1700 = vmul.f32 %v1690, %v1698
    %v1701 = vpack.c.bf16 %v1699, %v1699
    %v1702 = vpack.c.bf16 %v1700, %v1700
    %1703 = vrot.lane.b32.xlu0 %v1574, 64
    %v1704 = vpop.permute.xlu0 %1703
    %v1706 = vsel %vm157, %v1701, 0
    %v1709 = vsel %vm282, %v1704, 0
    %1711 = vmatprep.subr.bf16.mxu0 0
    %1712 = vmatpush1.bf16.msra.mxu0 %v1709
    %1713 = vmatprep.subr.bf16.mxu0 0
    %1714 = vmatpush1.bf16.msra.mxu0 0
    %1715 = vmatprep.subr.bf16.mxu0 0
    %1716 = vmatpush1.bf16.msra.mxu0 0
    %1717 = vmatprep.subr.bf16.mxu0 0
    %1718 = vmatpush1.bf16.msra.mxu0 0
    %1719 = vmatprep.subr.bf16.mxu0 0
    %1720 = vmatpush1.bf16.msra.mxu0 0
    %1721 = vmatprep.subr.bf16.mxu0 0
    %1722 = vmatpush1.bf16.msra.mxu0 0
    %1723 = vmatprep.subr.bf16.mxu0 0
    %1724 = vmatpush1.bf16.msra.mxu0 0
    %1725 = vmatprep.subr.bf16.mxu0 0
    %1726 = vmatpush1.bf16.msra.mxu0 0
    %1727 = vmatprep.subr.bf16.mxu0 0
    %1728 = vmatpush1.bf16.msra.mxu0 0
    %1729 = vmatprep.subr.bf16.mxu0 0
    %1730 = vmatpush1.bf16.msra.mxu0 0
    %1731 = vmatprep.subr.bf16.mxu0 0
    %1732 = vmatpush1.bf16.msra.mxu0 0
    %1733 = vmatprep.subr.bf16.mxu0 0
    %1734 = vmatpush1.bf16.msra.mxu0 0
    %1735 = vmatprep.subr.bf16.mxu0 0
    %1736 = vmatpush1.bf16.msra.mxu0 0
    %1737 = vmatprep.subr.bf16.mxu0 0
    %1738 = vmatpush1.bf16.msra.mxu0 0
    %1739 = vmatprep.subr.bf16.mxu0 0
    %1740 = vmatpush1.bf16.msra.mxu0 0
    %1741 = vmatprep.subr.bf16.mxu0 0
    %1742 = vmatpush1.bf16.msra.mxu0 0
    %1743 = vmatprep.mubr.bf16.mxu0 0
    %1744 = vmatmul.mubr.bf16.gmra.mrb[0].mxu0 %v1706
    %v1745 = vpop.f32.mrb[0].mxu0
    %v1746 = vadd.f32 0.0, %v1745
    %v1747 = vpop.f32.mrb[0].mxu0
    %v1748 = vpop.f32.mrb[0].mxu0
    %v1749 = vpop.f32.mrb[0].mxu0
    %1750 = vdwg.mxu0
    %1751 = vrot.lane.b32.xlu0 %v1575, 64
    %v1752 = vpop.permute.xlu0 %1751
    %v1754 = vsel %vm157, %v1702, 0
    %v1757 = vsel %vm282, %v1752, 0
    %1759 = vmatprep.subr.bf16.mxu0 0
    %1760 = vmatpush1.bf16.msra.mxu0 %v1757
    %1761 = vmatprep.subr.bf16.mxu0 0
    %1762 = vmatpush1.bf16.msra.mxu0 0
    %1763 = vmatprep.subr.bf16.mxu0 0
    %1764 = vmatpush1.bf16.msra.mxu0 0
    %1765 = vmatprep.subr.bf16.mxu0 0
    %1766 = vmatpush1.bf16.msra.mxu0 0
    %1767 = vmatprep.subr.bf16.mxu0 0
    %1768 = vmatpush1.bf16.msra.mxu0 0
    %1769 = vmatprep.subr.bf16.mxu0 0
    %1770 = vmatpush1.bf16.msra.mxu0 0
    %1771 = vmatprep.subr.bf16.mxu0 0
    %1772 = vmatpush1.bf16.msra.mxu0 0
    %1773 = vmatprep.subr.bf16.mxu0 0
    %1774 = vmatpush1.bf16.msra.mxu0 0
    %1775 = vmatprep.subr.bf16.mxu0 0
    %1776 = vmatpush1.bf16.msra.mxu0 0
    %1777 = vmatprep.subr.bf16.mxu0 0
    %1778 = vmatpush1.bf16.msra.mxu0 0
    %1779 = vmatprep.subr.bf16.mxu0 0
    %1780 = vmatpush1.bf16.msra.mxu0 0
    %1781 = vmatprep.subr.bf16.mxu0 0
    %1782 = vmatpush1.bf16.msra.mxu0 0
    %1783 = vmatprep.subr.bf16.mxu0 0
    %1784 = vmatpush1.bf16.msra.mxu0 0
    %1785 = vmatprep.subr.bf16.mxu0 0
    %1786 = vmatpush1.bf16.msra.mxu0 0
    %1787 = vmatprep.subr.bf16.mxu0 0
    %1788 = vmatpush1.bf16.msra.mxu0 0
    %1789 = vmatprep.subr.bf16.mxu0 0
    %1790 = vmatpush1.bf16.msra.mxu0 0
    %1791 = vmatprep.mubr.bf16.mxu0 0
    %1792 = vmatmul.mubr.bf16.gmra.mrb[0].mxu0 %v1754
    %v1793 = vpop.f32.mrb[0].mxu0
    %v1794 = vadd.f32 0.0, %v1793
    %v1795 = vpop.f32.mrb[0].mxu0
    %v1796 = vpop.f32.mrb[0].mxu0
    %v1797 = vpop.f32.mrb[0].mxu0
    %1798 = vdwg.mxu0
    %v1799 = vpack.c.bf16 %v1794, %v1746
    %1801 = vrot.lane.b32.xlu0 %v1572, 120
    %v1802 = vpop.permute.xlu0 %1801
    %1803 = vrot.lane.b32.xlu0 %v1574, 88
    %v1804 = vpop.permute.xlu0 %1803
    %v1806 = vsel %vm157, %v1802, 0
    %v1809 = vsel %vm157, %v1804, 0
    %1811 = vmatprep.subr.bf16.mxu0 0
    %1812 = vmatpush1.bf16.xpose.msra.mxu0 %v1809
    %1813 = vmatprep.subr.bf16.mxu0 0
    %1814 = vmatpush1.bf16.xpose.msra.mxu0 0
    %1815 = vmatprep.subr.bf16.mxu0 0
    %1816 = vmatpush1.bf16.xpose.msra.mxu0 0
    %1817 = vmatprep.subr.bf16.mxu0 0
    %1818 = vmatpush1.bf16.xpose.msra.mxu0 0
    %1819 = vmatprep.subr.bf16.mxu0 0
    %1820 = vmatpush1.bf16.xpose.msra.mxu0 0
    %1821 = vmatprep.subr.bf16.mxu0 0
    %1822 = vmatpush1.bf16.xpose.msra.mxu0 0
    %1823 = vmatprep.subr.bf16.mxu0 0
    %1824 = vmatpush1.bf16.xpose.msra.mxu0 0
    %1825 = vmatprep.subr.bf16.mxu0 0
    %1826 = vmatpush1.bf16.xpose.msra.mxu0 0
    %1827 = vmatprep.subr.bf16.mxu0 0
    %1828 = vmatpush1.bf16.xpose.msra.mxu0 0
    %1829 = vmatprep.subr.bf16.mxu0 0
    %1830 = vmatpush1.bf16.xpose.msra.mxu0 0
    %1831 = vmatprep.subr.bf16.mxu0 0
    %1832 = vmatpush1.bf16.xpose.msra.mxu0 0
    %1833 = vmatprep.subr.bf16.mxu0 0
    %1834 = vmatpush1.bf16.xpose.msra.mxu0 0
    %1835 = vmatprep.subr.bf16.mxu0 0
    %1836 = vmatpush1.bf16.xpose.msra.mxu0 0
    %1837 = vmatprep.subr.bf16.mxu0 0
    %1838 = vmatpush1.bf16.xpose.msra.mxu0 0
    %1839 = vmatprep.subr.bf16.mxu0 0
    %1840 = vmatpush1.bf16.xpose.msra.mxu0 0
    %1841 = vmatprep.subr.bf16.mxu0 0
    %1842 = vmatpush1.bf16.xpose.msra.mxu0 0
    %1843 = vmatprep.mubr.bf16.mxu0 0
    %1844 = vmatmul.mubr.bf16.gmra.mrb[0].mxu0 %v1806
    %v1845 = vpop.f32.mrb[0].mxu0
    %v1846 = vadd.f32 %v41, %v1845
    %v1847 = vpop.f32.mrb[0].mxu0
    %v1848 = vpop.f32.mrb[0].mxu0
    %v1849 = vpop.f32.mrb[0].mxu0
    %1850 = vdwg.mxu0
    %1852 = vrot.lane.b32.xlu0 %v1573, 120
    %v1853 = vpop.permute.xlu0 %1852
    %1854 = vrot.lane.b32.xlu0 %v1575, 88
    %v1855 = vpop.permute.xlu0 %1854
    %v1857 = vsel %vm157, %v1853, 0
    %v1860 = vsel %vm157, %v1855, 0
    %1862 = vmatprep.subr.bf16.mxu0 0
    %1863 = vmatpush1.bf16.xpose.msra.mxu0 %v1860
    %1864 = vmatprep.subr.bf16.mxu0 0
    %1865 = vmatpush1.bf16.xpose.msra.mxu0 0
    %1866 = vmatprep.subr.bf16.mxu0 0
    %1867 = vmatpush1.bf16.xpose.msra.mxu0 0
    %1868 = vmatprep.subr.bf16.mxu0 0
    %1869 = vmatpush1.bf16.xpose.msra.mxu0 0
    %1870 = vmatprep.subr.bf16.mxu0 0
    %1871 = vmatpush1.bf16.xpose.msra.mxu0 0
    %1872 = vmatprep.subr.bf16.mxu0 0
    %1873 = vmatpush1.bf16.xpose.msra.mxu0 0
    %1874 = vmatprep.subr.bf16.mxu0 0
    %1875 = vmatpush1.bf16.xpose.msra.mxu0 0
    %1876 = vmatprep.subr.bf16.mxu0 0
    %1877 = vmatpush1.bf16.xpose.msra.mxu0 0
    %1878 = vmatprep.subr.bf16.mxu0 0
    %1879 = vmatpush1.bf16.xpose.msra.mxu0 0
    %1880 = vmatprep.subr.bf16.mxu0 0
    %1881 = vmatpush1.bf16.xpose.msra.mxu0 0
    %1882 = vmatprep.subr.bf16.mxu0 0
    %1883 = vmatpush1.bf16.xpose.msra.mxu0 0
    %1884 = vmatprep.subr.bf16.mxu0 0
    %1885 = vmatpush1.bf16.xpose.msra.mxu0 0
    %1886 = vmatprep.subr.bf16.mxu0 0
    %1887 = vmatpush1.bf16.xpose.msra.mxu0 0
    %1888 = vmatprep.subr.bf16.mxu0 0
    %1889 = vmatpush1.bf16.xpose.msra.mxu0 0
    %1890 = vmatprep.subr.bf16.mxu0 0
    %1891 = vmatpush1.bf16.xpose.msra.mxu0 0
    %1892 = vmatprep.subr.bf16.mxu0 0
    %1893 = vmatpush1.bf16.xpose.msra.mxu0 0
    %1894 = vmatprep.mubr.bf16.mxu0 0
    %1895 = vmatmul.mubr.bf16.gmra.mrb[0].mxu0 %v1857
    %v1896 = vpop.f32.mrb[0].mxu0
    %v1897 = vadd.f32 %v41, %v1896
    %v1898 = vpop.f32.mrb[0].mxu0
    %v1899 = vpop.f32.mrb[0].mxu0
    %v1900 = vpop.f32.mrb[0].mxu0
    %1901 = vdwg.mxu0
    %v1902 = vsel %vm157, %v1846, -inf
    %1903 = vmax.xlane.f32.xlu0 %v1902
    %v1904 = vpop.xlane.xlu0 %1903
    %v1905 = vsel %vm157, %v1897, -inf
    %1906 = vmax.xlane.f32.xlu0 %v1905
    %v1907 = vpop.xlane.xlu0 %1906
    %v1908 = vsub.f32 %v1846, %v1904
    %v1909 = vsub.f32 %v1897, %v1907
    %v1910 = vmul.f32 %v1908, 1.442695
    %v1911 = vpow.pop %v1910
    %v1912 = vmul.f32 %v1909, 1.442695
    %v1913 = vpow.pop %v1912
    %v1914 = vsel %vm157, %v1911, 0.0
    %1915 = vadd.xlane.f32.xlu0 %v1914
    %v1916 = vpop.xlane.xlu0 %1915
    %v1917 = vsel %vm157, %v1913, 0.0
    %1918 = vadd.xlane.f32.xlu0 %v1917
    %v1919 = vpop.xlane.xlu0 %1918
    %v1920 = vrcp.pop %v1916
    %v1921 = vrcp.pop %v1919
    %v1922 = vmul.f32 %v1911, %v1920
    %v1923 = vmul.f32 %v1913, %v1921
    %v1924 = vpack.c.bf16 %v1922, %v1922
    %v1925 = vpack.c.bf16 %v1923, %v1923
    %1926 = vrot.lane.b32.xlu0 %v1574, 56
    %v1927 = vpop.permute.xlu0 %1926
    %v1929 = vsel %vm157, %v1924, 0
    %v1932 = vsel %vm282, %v1927, 0
    %1934 = vmatprep.subr.bf16.mxu0 0
    %1935 = vmatpush1.bf16.msra.mxu0 %v1932
    %1936 = vmatprep.subr.bf16.mxu0 0
    %1937 = vmatpush1.bf16.msra.mxu0 0
    %1938 = vmatprep.subr.bf16.mxu0 0
    %1939 = vmatpush1.bf16.msra.mxu0 0
    %1940 = vmatprep.subr.bf16.mxu0 0
    %1941 = vmatpush1.bf16.msra.mxu0 0
    %1942 = vmatprep.subr.bf16.mxu0 0
    %1943 = vmatpush1.bf16.msra.mxu0 0
    %1944 = vmatprep.subr.bf16.mxu0 0
    %1945 = vmatpush1.bf16.msra.mxu0 0
    %1946 = vmatprep.subr.bf16.mxu0 0
    %1947 = vmatpush1.bf16.msra.mxu0 0
    %1948 = vmatprep.subr.bf16.mxu0 0
    %1949 = vmatpush1.bf16.msra.mxu0 0
    %1950 = vmatprep.subr.bf16.mxu0 0
    %1951 = vmatpush1.bf16.msra.mxu0 0
    %1952 = vmatprep.subr.bf16.mxu0 0
    %1953 = vmatpush1.bf16.msra.mxu0 0
    %1954 = vmatprep.subr.bf16.mxu0 0
    %1955 = vmatpush1.bf16.msra.mxu0 0
    %1956 = vmatprep.subr.bf16.mxu0 0
    %1957 = vmatpush1.bf16.msra.mxu0 0
    %1958 = vmatprep.subr.bf16.mxu0 0
    %1959 = vmatpush1.bf16.msra.mxu0 0
    %1960 = vmatprep.subr.bf16.mxu0 0
    %1961 = vmatpush1.bf16.msra.mxu0 0
    %1962 = vmatprep.subr.bf16.mxu0 0
    %1963 = vmatpush1.bf16.msra.mxu0 0
    %1964 = vmatprep.subr.bf16.mxu0 0
    %1965 = vmatpush1.bf16.msra.mxu0 0
    %1966 = vmatprep.mubr.bf16.mxu0 0
    %1967 = vmatmul.mubr.bf16.gmra.mrb[0].mxu0 %v1929
    %v1968 = vpop.f32.mrb[0].mxu0
    %v1969 = vadd.f32 0.0, %v1968
    %v1970 = vpop.f32.mrb[0].mxu0
    %v1971 = vpop.f32.mrb[0].mxu0
    %v1972 = vpop.f32.mrb[0].mxu0
    %1973 = vdwg.mxu0
    %1974 = vrot.lane.b32.xlu0 %v1575, 56
    %v1975 = vpop.permute.xlu0 %1974
    %v1977 = vsel %vm157, %v1925, 0
    %v1980 = vsel %vm282, %v1975, 0
    %1982 = vmatprep.subr.bf16.mxu0 0
    %1983 = vmatpush1.bf16.msra.mxu0 %v1980
    %1984 = vmatprep.subr.bf16.mxu0 0
    %1985 = vmatpush1.bf16.msra.mxu0 0
    %1986 = vmatprep.subr.bf16.mxu0 0
    %1987 = vmatpush1.bf16.msra.mxu0 0
    %1988 = vmatprep.subr.bf16.mxu0 0
    %1989 = vmatpush1.bf16.msra.mxu0 0
    %1990 = vmatprep.subr.bf16.mxu0 0
    %1991 = vmatpush1.bf16.msra.mxu0 0
    %1992 = vmatprep.subr.bf16.mxu0 0
    %1993 = vmatpush1.bf16.msra.mxu0 0
    %1994 = vmatprep.subr.bf16.mxu0 0
    %1995 = vmatpush1.bf16.msra.mxu0 0
    %1996 = vmatprep.subr.bf16.mxu0 0
    %1997 = vmatpush1.bf16.msra.mxu0 0
    %1998 = vmatprep.subr.bf16.mxu0 0
    %1999 = vmatpush1.bf16.msra.mxu0 0
    %2000 = vmatprep.subr.bf16.mxu0 0
    %2001 = vmatpush1.bf16.msra.mxu0 0
    %2002 = vmatprep.subr.bf16.mxu0 0
    %2003 = vmatpush1.bf16.msra.mxu0 0
    %2004 = vmatprep.subr.bf16.mxu0 0
    %2005 = vmatpush1.bf16.msra.mxu0 0
    %2006 = vmatprep.subr.bf16.mxu0 0
    %2007 = vmatpush1.bf16.msra.mxu0 0
    %2008 = vmatprep.subr.bf16.mxu0 0
    %2009 = vmatpush1.bf16.msra.mxu0 0
    %2010 = vmatprep.subr.bf16.mxu0 0
    %2011 = vmatpush1.bf16.msra.mxu0 0
    %2012 = vmatprep.subr.bf16.mxu0 0
    %2013 = vmatpush1.bf16.msra.mxu0 0
    %2014 = vmatprep.mubr.bf16.mxu0 0
    %2015 = vmatmul.mubr.bf16.gmra.mrb[0].mxu0 %v1977
    %v2016 = vpop.f32.mrb[0].mxu0
    %v2017 = vadd.f32 0.0, %v2016
    %v2018 = vpop.f32.mrb[0].mxu0
    %v2019 = vpop.f32.mrb[0].mxu0
    %v2020 = vpop.f32.mrb[0].mxu0
    %2021 = vdwg.mxu0
    %v2022 = vpack.c.bf16 %v2017, %v1969
    %v2024 = vsel %vm157, %v2022, 0
    %v2027 = vsel %vm282, %v1578, 0
    %2029 = vmatprep.subr.bf16.mxu0 0
    %2030 = vmatpush1.bf16.msra.mxu0 %v2027
    %2031 = vmatprep.subr.bf16.mxu0 0
    %2032 = vmatpush1.bf16.msra.mxu0 0
    %2033 = vmatprep.subr.bf16.mxu0 0
    %2034 = vmatpush1.bf16.msra.mxu0 0
    %2035 = vmatprep.subr.bf16.mxu0 0
    %2036 = vmatpush1.bf16.msra.mxu0 0
    %2037 = vmatprep.subr.bf16.mxu0 0
    %2038 = vmatpush1.bf16.msra.mxu0 0
    %2039 = vmatprep.subr.bf16.mxu0 0
    %2040 = vmatpush1.bf16.msra.mxu0 0
    %2041 = vmatprep.subr.bf16.mxu0 0
    %2042 = vmatpush1.bf16.msra.mxu0 0
    %2043 = vmatprep.subr.bf16.mxu0 0
    %2044 = vmatpush1.bf16.msra.mxu0 0
    %2045 = vmatprep.subr.bf16.mxu0 0
    %2046 = vmatpush1.bf16.msra.mxu0 0
    %2047 = vmatprep.subr.bf16.mxu0 0
    %2048 = vmatpush1.bf16.msra.mxu0 0
    %2049 = vmatprep.subr.bf16.mxu0 0
    %2050 = vmatpush1.bf16.msra.mxu0 0
    %2051 = vmatprep.subr.bf16.mxu0 0
    %2052 = vmatpush1.bf16.msra.mxu0 0
    %2053 = vmatprep.subr.bf16.mxu0 0
    %2054 = vmatpush1.bf16.msra.mxu0 0
    %2055 = vmatprep.subr.bf16.mxu0 0
    %2056 = vmatpush1.bf16.msra.mxu0 0
    %2057 = vmatprep.subr.bf16.mxu0 0
    %2058 = vmatpush1.bf16.msra.mxu0 0
    %2059 = vmatprep.subr.bf16.mxu0 0
    %2060 = vmatpush1.bf16.msra.mxu0 0
    %2061 = vmatprep.mubr.bf16.mxu0 0
    %2062 = vmatmul.mubr.bf16.gmra.mrb[0].mxu0 %v2024
    %v2063 = vpop.f32.mrb[0].mxu0
    %v2064 = vadd.f32 0.0, %v2063
    %v2065 = vpop.f32.mrb[0].mxu0
    %v2066 = vpop.f32.mrb[0].mxu0
    %v2067 = vadd.f32 0.0, %v2066
    %v2068 = vpop.f32.mrb[0].mxu0
    %2069 = vdwg.mxu0
    %v2071 = vsel %vm157, %v1799, 0
    %v2074 = vsel %vm282, %v1577, 0
    %2076 = vmatprep.subr.bf16.mxu0 0
    %2077 = vmatpush1.bf16.msra.mxu0 %v2074
    %2078 = vmatprep.subr.bf16.mxu0 0
    %2079 = vmatpush1.bf16.msra.mxu0 0
    %2080 = vmatprep.subr.bf16.mxu0 0
    %2081 = vmatpush1.bf16.msra.mxu0 0
    %2082 = vmatprep.subr.bf16.mxu0 0
    %2083 = vmatpush1.bf16.msra.mxu0 0
    %2084 = vmatprep.subr.bf16.mxu0 0
    %2085 = vmatpush1.bf16.msra.mxu0 0
    %2086 = vmatprep.subr.bf16.mxu0 0
    %2087 = vmatpush1.bf16.msra.mxu0 0
    %2088 = vmatprep.subr.bf16.mxu0 0
    %2089 = vmatpush1.bf16.msra.mxu0 0
    %2090 = vmatprep.subr.bf16.mxu0 0
    %2091 = vmatpush1.bf16.msra.mxu0 0
    %2092 = vmatprep.subr.bf16.mxu0 0
    %2093 = vmatpush1.bf16.msra.mxu0 0
    %2094 = vmatprep.subr.bf16.mxu0 0
    %2095 = vmatpush1.bf16.msra.mxu0 0
    %2096 = vmatprep.subr.bf16.mxu0 0
    %2097 = vmatpush1.bf16.msra.mxu0 0
    %2098 = vmatprep.subr.bf16.mxu0 0
    %2099 = vmatpush1.bf16.msra.mxu0 0
    %2100 = vmatprep.subr.bf16.mxu0 0
    %2101 = vmatpush1.bf16.msra.mxu0 0
    %2102 = vmatprep.subr.bf16.mxu0 0
    %2103 = vmatpush1.bf16.msra.mxu0 0
    %2104 = vmatprep.subr.bf16.mxu0 0
    %2105 = vmatpush1.bf16.msra.mxu0 0
    %2106 = vmatprep.subr.bf16.mxu0 0
    %2107 = vmatpush1.bf16.msra.mxu0 0
    %2108 = vmatprep.mubr.bf16.mxu0 0
    %2109 = vmatmul.mubr.bf16.gmra.mrb[0].mxu0 %v2071
    %v2110 = vpop.f32.mrb[0].mxu0
    %v2111 = vadd.f32 %v2064, %v2110
    %v2112 = vpop.f32.mrb[0].mxu0
    %v2113 = vpop.f32.mrb[0].mxu0
    %v2114 = vadd.f32 %v2067, %v2113
    %v2115 = vpop.f32.mrb[0].mxu0
    %2116 = vdwg.mxu0
    %2117 = vrot.lane.b32.xlu0 %v1572, 112
    %v2118 = vpop.permute.xlu0 %2117
    %2119 = vrot.lane.b32.xlu0 %v1574, 80
    %v2120 = vpop.permute.xlu0 %2119
    %v2122 = vsel %vm157, %v2118, 0
    %v2125 = vsel %vm157, %v2120, 0
    %2127 = vmatprep.subr.bf16.mxu0 0
    %2128 = vmatpush1.bf16.xpose.msra.mxu0 %v2125
    %2129 = vmatprep.subr.bf16.mxu0 0
    %2130 = vmatpush1.bf16.xpose.msra.mxu0 0
    %2131 = vmatprep.subr.bf16.mxu0 0
    %2132 = vmatpush1.bf16.xpose.msra.mxu0 0
    %2133 = vmatprep.subr.bf16.mxu0 0
    %2134 = vmatpush1.bf16.xpose.msra.mxu0 0
    %2135 = vmatprep.subr.bf16.mxu0 0
    %2136 = vmatpush1.bf16.xpose.msra.mxu0 0
    %2137 = vmatprep.subr.bf16.mxu0 0
    %2138 = vmatpush1.bf16.xpose.msra.mxu0 0
    %2139 = vmatprep.subr.bf16.mxu0 0
    %2140 = vmatpush1.bf16.xpose.msra.mxu0 0
    %2141 = vmatprep.subr.bf16.mxu0 0
    %2142 = vmatpush1.bf16.xpose.msra.mxu0 0
    %2143 = vmatprep.subr.bf16.mxu0 0
    %2144 = vmatpush1.bf16.xpose.msra.mxu0 0
    %2145 = vmatprep.subr.bf16.mxu0 0
    %2146 = vmatpush1.bf16.xpose.msra.mxu0 0
    %2147 = vmatprep.subr.bf16.mxu0 0
    %2148 = vmatpush1.bf16.xpose.msra.mxu0 0
    %2149 = vmatprep.subr.bf16.mxu0 0
    %2150 = vmatpush1.bf16.xpose.msra.mxu0 0
    %2151 = vmatprep.subr.bf16.mxu0 0
    %2152 = vmatpush1.bf16.xpose.msra.mxu0 0
    %2153 = vmatprep.subr.bf16.mxu0 0
    %2154 = vmatpush1.bf16.xpose.msra.mxu0 0
    %2155 = vmatprep.subr.bf16.mxu0 0
    %2156 = vmatpush1.bf16.xpose.msra.mxu0 0
    %2157 = vmatprep.subr.bf16.mxu0 0
    %2158 = vmatpush1.bf16.xpose.msra.mxu0 0
    %2159 = vmatprep.mubr.bf16.mxu0 0
    %2160 = vmatmul.mubr.bf16.gmra.mrb[0].mxu0 %v2122
    %v2161 = vpop.f32.mrb[0].mxu0
    %v2162 = vadd.f32 %v41, %v2161
    %v2163 = vpop.f32.mrb[0].mxu0
    %v2164 = vpop.f32.mrb[0].mxu0
    %v2165 = vpop.f32.mrb[0].mxu0
    %2166 = vdwg.mxu0
    %2167 = vrot.lane.b32.xlu0 %v1573, 112
    %v2168 = vpop.permute.xlu0 %2167
    %2169 = vrot.lane.b32.xlu0 %v1575, 80
    %v2170 = vpop.permute.xlu0 %2169
    %v2172 = vsel %vm157, %v2168, 0
    %v2175 = vsel %vm157, %v2170, 0
    %2177 = vmatprep.subr.bf16.mxu0 0
    %2178 = vmatpush1.bf16.xpose.msra.mxu0 %v2175
    %2179 = vmatprep.subr.bf16.mxu0 0
    %2180 = vmatpush1.bf16.xpose.msra.mxu0 0
    %2181 = vmatprep.subr.bf16.mxu0 0
    %2182 = vmatpush1.bf16.xpose.msra.mxu0 0
    %2183 = vmatprep.subr.bf16.mxu0 0
    %2184 = vmatpush1.bf16.xpose.msra.mxu0 0
    %2185 = vmatprep.subr.bf16.mxu0 0
    %2186 = vmatpush1.bf16.xpose.msra.mxu0 0
    %2187 = vmatprep.subr.bf16.mxu0 0
    %2188 = vmatpush1.bf16.xpose.msra.mxu0 0
    %2189 = vmatprep.subr.bf16.mxu0 0
    %2190 = vmatpush1.bf16.xpose.msra.mxu0 0
    %2191 = vmatprep.subr.bf16.mxu0 0
    %2192 = vmatpush1.bf16.xpose.msra.mxu0 0
    %2193 = vmatprep.subr.bf16.mxu0 0
    %2194 = vmatpush1.bf16.xpose.msra.mxu0 0
    %2195 = vmatprep.subr.bf16.mxu0 0
    %2196 = vmatpush1.bf16.xpose.msra.mxu0 0
    %2197 = vmatprep.subr.bf16.mxu0 0
    %2198 = vmatpush1.bf16.xpose.msra.mxu0 0
    %2199 = vmatprep.subr.bf16.mxu0 0
    %2200 = vmatpush1.bf16.xpose.msra.mxu0 0
    %2201 = vmatprep.subr.bf16.mxu0 0
    %2202 = vmatpush1.bf16.xpose.msra.mxu0 0
    %2203 = vmatprep.subr.bf16.mxu0 0
    %2204 = vmatpush1.bf16.xpose.msra.mxu0 0
    %2205 = vmatprep.subr.bf16.mxu0 0
    %2206 = vmatpush1.bf16.xpose.msra.mxu0 0
    %2207 = vmatprep.subr.bf16.mxu0 0
    %2208 = vmatpush1.bf16.xpose.msra.mxu0 0
    %2209 = vmatprep.mubr.bf16.mxu0 0
    %2210 = vmatmul.mubr.bf16.gmra.mrb[0].mxu0 %v2172
    %v2211 = vpop.f32.mrb[0].mxu0
    %v2212 = vadd.f32 %v41, %v2211
    %v2213 = vpop.f32.mrb[0].mxu0
    %v2214 = vpop.f32.mrb[0].mxu0
    %v2215 = vpop.f32.mrb[0].mxu0
    %2216 = vdwg.mxu0
    %v2217 = vsel %vm157, %v2162, -inf
    %2218 = vmax.xlane.f32.xlu0 %v2217
    %v2219 = vpop.xlane.xlu0 %2218
    %v2220 = vsel %vm157, %v2212, -inf
    %2221 = vmax.xlane.f32.xlu0 %v2220
    %v2222 = vpop.xlane.xlu0 %2221
    %v2223 = vsub.f32 %v2162, %v2219
    %v2224 = vsub.f32 %v2212, %v2222
    %v2225 = vmul.f32 %v2223, 1.442695
    %v2226 = vpow.pop %v2225
    %v2227 = vmul.f32 %v2224, 1.442695
    %v2228 = vpow.pop %v2227
    %v2229 = vsel %vm157, %v2226, 0.0
    %2230 = vadd.xlane.f32.xlu0 %v2229
    %v2231 = vpop.xlane.xlu0 %2230
    %v2232 = vsel %vm157, %v2228, 0.0
    %2233 = vadd.xlane.f32.xlu0 %v2232
    %v2234 = vpop.xlane.xlu0 %2233
    %v2235 = vrcp.pop %v2231
    %v2236 = vrcp.pop %v2234
    %v2237 = vmul.f32 %v2226, %v2235
    %v2238 = vmul.f32 %v2228, %v2236
    %v2239 = vpack.c.bf16 %v2237, %v2237
    %v2240 = vpack.c.bf16 %v2238, %v2238
    %2241 = vrot.lane.b32.xlu0 %v1574, 48
    %v2242 = vpop.permute.xlu0 %2241
    %v2244 = vsel %vm157, %v2239, 0
    %v2247 = vsel %vm282, %v2242, 0
    %2249 = vmatprep.subr.bf16.mxu0 0
    %2250 = vmatpush1.bf16.msra.mxu0 %v2247
    %2251 = vmatprep.subr.bf16.mxu0 0
    %2252 = vmatpush1.bf16.msra.mxu0 0
    %2253 = vmatprep.subr.bf16.mxu0 0
    %2254 = vmatpush1.bf16.msra.mxu0 0
    %2255 = vmatprep.subr.bf16.mxu0 0
    %2256 = vmatpush1.bf16.msra.mxu0 0
    %2257 = vmatprep.subr.bf16.mxu0 0
    %2258 = vmatpush1.bf16.msra.mxu0 0
    %2259 = vmatprep.subr.bf16.mxu0 0
    %2260 = vmatpush1.bf16.msra.mxu0 0
    %2261 = vmatprep.subr.bf16.mxu0 0
    %2262 = vmatpush1.bf16.msra.mxu0 0
    %2263 = vmatprep.subr.bf16.mxu0 0
    %2264 = vmatpush1.bf16.msra.mxu0 0
    %2265 = vmatprep.subr.bf16.mxu0 0
    %2266 = vmatpush1.bf16.msra.mxu0 0
    %2267 = vmatprep.subr.bf16.mxu0 0
    %2268 = vmatpush1.bf16.msra.mxu0 0
    %2269 = vmatprep.subr.bf16.mxu0 0
    %2270 = vmatpush1.bf16.msra.mxu0 0
    %2271 = vmatprep.subr.bf16.mxu0 0
    %2272 = vmatpush1.bf16.msra.mxu0 0
    %2273 = vmatprep.subr.bf16.mxu0 0
    %2274 = vmatpush1.bf16.msra.mxu0 0
    %2275 = vmatprep.subr.bf16.mxu0 0
    %2276 = vmatpush1.bf16.msra.mxu0 0
    %2277 = vmatprep.subr.bf16.mxu0 0
    %2278 = vmatpush1.bf16.msra.mxu0 0
    %2279 = vmatprep.subr.bf16.mxu0 0
    %2280 = vmatpush1.bf16.msra.mxu0 0
    %2281 = vmatprep.mubr.bf16.mxu0 0
    %2282 = vmatmul.mubr.bf16.gmra.mrb[0].mxu0 %v2244
    %v2283 = vpop.f32.mrb[0].mxu0
    %v2284 = vadd.f32 0.0, %v2283
    %v2285 = vpop.f32.mrb[0].mxu0
    %v2286 = vpop.f32.mrb[0].mxu0
    %v2287 = vpop.f32.mrb[0].mxu0
    %2288 = vdwg.mxu0
    %2289 = vrot.lane.b32.xlu0 %v1575, 48
    %v2290 = vpop.permute.xlu0 %2289
    %v2292 = vsel %vm157, %v2240, 0
    %v2295 = vsel %vm282, %v2290, 0
    %2297 = vmatprep.subr.bf16.mxu0 0
    %2298 = vmatpush1.bf16.msra.mxu0 %v2295
    %2299 = vmatprep.subr.bf16.mxu0 0
    %2300 = vmatpush1.bf16.msra.mxu0 0
    %2301 = vmatprep.subr.bf16.mxu0 0
    %2302 = vmatpush1.bf16.msra.mxu0 0
    %2303 = vmatprep.subr.bf16.mxu0 0
    %2304 = vmatpush1.bf16.msra.mxu0 0
    %2305 = vmatprep.subr.bf16.mxu0 0
    %2306 = vmatpush1.bf16.msra.mxu0 0
    %2307 = vmatprep.subr.bf16.mxu0 0
    %2308 = vmatpush1.bf16.msra.mxu0 0
    %2309 = vmatprep.subr.bf16.mxu0 0
    %2310 = vmatpush1.bf16.msra.mxu0 0
    %2311 = vmatprep.subr.bf16.mxu0 0
    %2312 = vmatpush1.bf16.msra.mxu0 0
    %2313 = vmatprep.subr.bf16.mxu0 0
    %2314 = vmatpush1.bf16.msra.mxu0 0
    %2315 = vmatprep.subr.bf16.mxu0 0
    %2316 = vmatpush1.bf16.msra.mxu0 0
    %2317 = vmatprep.subr.bf16.mxu0 0
    %2318 = vmatpush1.bf16.msra.mxu0 0
    %2319 = vmatprep.subr.bf16.mxu0 0
    %2320 = vmatpush1.bf16.msra.mxu0 0
    %2321 = vmatprep.subr.bf16.mxu0 0
    %2322 = vmatpush1.bf16.msra.mxu0 0
    %2323 = vmatprep.subr.bf16.mxu0 0
    %2324 = vmatpush1.bf16.msra.mxu0 0
    %2325 = vmatprep.subr.bf16.mxu0 0
    %2326 = vmatpush1.bf16.msra.mxu0 0
    %2327 = vmatprep.subr.bf16.mxu0 0
    %2328 = vmatpush1.bf16.msra.mxu0 0
    %2329 = vmatprep.mubr.bf16.mxu0 0
    %2330 = vmatmul.mubr.bf16.gmra.mrb[0].mxu0 %v2292
    %v2331 = vpop.f32.mrb[0].mxu0
    %v2332 = vadd.f32 0.0, %v2331
    %v2333 = vpop.f32.mrb[0].mxu0
    %v2334 = vpop.f32.mrb[0].mxu0
    %v2335 = vpop.f32.mrb[0].mxu0
    %2336 = vdwg.mxu0
    %v2337 = vpack.c.bf16 %v2332, %v2284
    %v2339 = vsel %vm157, %v2337, 0
    %v2342 = vsel %vm282, %v1579, 0
    %2344 = vmatprep.subr.bf16.mxu0 0
    %2345 = vmatpush1.bf16.msra.mxu0 %v2342
    %2346 = vmatprep.subr.bf16.mxu0 0
    %2347 = vmatpush1.bf16.msra.mxu0 0
    %2348 = vmatprep.subr.bf16.mxu0 0
    %2349 = vmatpush1.bf16.msra.mxu0 0
    %2350 = vmatprep.subr.bf16.mxu0 0
    %2351 = vmatpush1.bf16.msra.mxu0 0
    %2352 = vmatprep.subr.bf16.mxu0 0
    %2353 = vmatpush1.bf16.msra.mxu0 0
    %2354 = vmatprep.subr.bf16.mxu0 0
    %2355 = vmatpush1.bf16.msra.mxu0 0
    %2356 = vmatprep.subr.bf16.mxu0 0
    %2357 = vmatpush1.bf16.msra.mxu0 0
    %2358 = vmatprep.subr.bf16.mxu0 0
    %2359 = vmatpush1.bf16.msra.mxu0 0
    %2360 = vmatprep.subr.bf16.mxu0 0
    %2361 = vmatpush1.bf16.msra.mxu0 0
    %2362 = vmatprep.subr.bf16.mxu0 0
    %2363 = vmatpush1.bf16.msra.mxu0 0
    %2364 = vmatprep.subr.bf16.mxu0 0
    %2365 = vmatpush1.bf16.msra.mxu0 0
    %2366 = vmatprep.subr.bf16.mxu0 0
    %2367 = vmatpush1.bf16.msra.mxu0 0
    %2368 = vmatprep.subr.bf16.mxu0 0
    %2369 = vmatpush1.bf16.msra.mxu0 0
    %2370 = vmatprep.subr.bf16.mxu0 0
    %2371 = vmatpush1.bf16.msra.mxu0 0
    %2372 = vmatprep.subr.bf16.mxu0 0
    %2373 = vmatpush1.bf16.msra.mxu0 0
    %2374 = vmatprep.subr.bf16.mxu0 0
    %2375 = vmatpush1.bf16.msra.mxu0 0
    %2376 = vmatprep.mubr.bf16.mxu0 0
    %2377 = vmatmul.mubr.bf16.gmra.mrb[0].mxu0 %v2339
    %v2378 = vpop.f32.mrb[0].mxu0
    %v2379 = vadd.f32 0.0, %v2378
    %v2380 = vpop.f32.mrb[0].mxu0
    %v2381 = vpop.f32.mrb[0].mxu0
    %v2382 = vadd.f32 0.0, %v2381
    %v2383 = vpop.f32.mrb[0].mxu0
    %2384 = vdwg.mxu0
    %v2385 = vadd.f32 %v2111, %v2379
    %v2386 = vadd.f32 %v2114, %v2382
    %2387 = vrot.lane.b32.xlu0 %v1572, 104
    %v2388 = vpop.permute.xlu0 %2387
    %2389 = vrot.lane.b32.xlu0 %v1574, 72
    %v2390 = vpop.permute.xlu0 %2389
    %v2392 = vsel %vm157, %v2388, 0
    %v2395 = vsel %vm157, %v2390, 0
    %2397 = vmatprep.subr.bf16.mxu0 0
    %2398 = vmatpush1.bf16.xpose.msra.mxu0 %v2395
    %2399 = vmatprep.subr.bf16.mxu0 0
    %2400 = vmatpush1.bf16.xpose.msra.mxu0 0
    %2401 = vmatprep.subr.bf16.mxu0 0
    %2402 = vmatpush1.bf16.xpose.msra.mxu0 0
    %2403 = vmatprep.subr.bf16.mxu0 0
    %2404 = vmatpush1.bf16.xpose.msra.mxu0 0
    %2405 = vmatprep.subr.bf16.mxu0 0
    %2406 = vmatpush1.bf16.xpose.msra.mxu0 0
    %2407 = vmatprep.subr.bf16.mxu0 0
    %2408 = vmatpush1.bf16.xpose.msra.mxu0 0
    %2409 = vmatprep.subr.bf16.mxu0 0
    %2410 = vmatpush1.bf16.xpose.msra.mxu0 0
    %2411 = vmatprep.subr.bf16.mxu0 0
    %2412 = vmatpush1.bf16.xpose.msra.mxu0 0
    %2413 = vmatprep.subr.bf16.mxu0 0
    %2414 = vmatpush1.bf16.xpose.msra.mxu0 0
    %2415 = vmatprep.subr.bf16.mxu0 0
    %2416 = vmatpush1.bf16.xpose.msra.mxu0 0
    %2417 = vmatprep.subr.bf16.mxu0 0
    %2418 = vmatpush1.bf16.xpose.msra.mxu0 0
    %2419 = vmatprep.subr.bf16.mxu0 0
    %2420 = vmatpush1.bf16.xpose.msra.mxu0 0
    %2421 = vmatprep.subr.bf16.mxu0 0
    %2422 = vmatpush1.bf16.xpose.msra.mxu0 0
    %2423 = vmatprep.subr.bf16.mxu0 0
    %2424 = vmatpush1.bf16.xpose.msra.mxu0 0
    %2425 = vmatprep.subr.bf16.mxu0 0
    %2426 = vmatpush1.bf16.xpose.msra.mxu0 0
    %2427 = vmatprep.subr.bf16.mxu0 0
    %2428 = vmatpush1.bf16.xpose.msra.mxu0 0
    %2429 = vmatprep.mubr.bf16.mxu0 0
    %2430 = vmatmul.mubr.bf16.gmra.mrb[0].mxu0 %v2392
    %v2431 = vpop.f32.mrb[0].mxu0
    %v2432 = vadd.f32 %v41, %v2431
    %v2433 = vpop.f32.mrb[0].mxu0
    %v2434 = vpop.f32.mrb[0].mxu0
    %v2435 = vpop.f32.mrb[0].mxu0
    %2436 = vdwg.mxu0
    %2437 = vrot.lane.b32.xlu0 %v1573, 104
    %v2438 = vpop.permute.xlu0 %2437
    %2439 = vrot.lane.b32.xlu0 %v1575, 72
    %v2440 = vpop.permute.xlu0 %2439
    %v2442 = vsel %vm157, %v2438, 0
    %v2445 = vsel %vm157, %v2440, 0
    %2447 = vmatprep.subr.bf16.mxu0 0
    %2448 = vmatpush1.bf16.xpose.msra.mxu0 %v2445
    %2449 = vmatprep.subr.bf16.mxu0 0
    %2450 = vmatpush1.bf16.xpose.msra.mxu0 0
    %2451 = vmatprep.subr.bf16.mxu0 0
    %2452 = vmatpush1.bf16.xpose.msra.mxu0 0
    %2453 = vmatprep.subr.bf16.mxu0 0
    %2454 = vmatpush1.bf16.xpose.msra.mxu0 0
    %2455 = vmatprep.subr.bf16.mxu0 0
    %2456 = vmatpush1.bf16.xpose.msra.mxu0 0
    %2457 = vmatprep.subr.bf16.mxu0 0
    %2458 = vmatpush1.bf16.xpose.msra.mxu0 0
    %2459 = vmatprep.subr.bf16.mxu0 0
    %2460 = vmatpush1.bf16.xpose.msra.mxu0 0
    %2461 = vmatprep.subr.bf16.mxu0 0
    %2462 = vmatpush1.bf16.xpose.msra.mxu0 0
    %2463 = vmatprep.subr.bf16.mxu0 0
    %2464 = vmatpush1.bf16.xpose.msra.mxu0 0
    %2465 = vmatprep.subr.bf16.mxu0 0
    %2466 = vmatpush1.bf16.xpose.msra.mxu0 0
    %2467 = vmatprep.subr.bf16.mxu0 0
    %2468 = vmatpush1.bf16.xpose.msra.mxu0 0
    %2469 = vmatprep.subr.bf16.mxu0 0
    %2470 = vmatpush1.bf16.xpose.msra.mxu0 0
    %2471 = vmatprep.subr.bf16.mxu0 0
    %2472 = vmatpush1.bf16.xpose.msra.mxu0 0
    %2473 = vmatprep.subr.bf16.mxu0 0
    %2474 = vmatpush1.bf16.xpose.msra.mxu0 0
    %2475 = vmatprep.subr.bf16.mxu0 0
    %2476 = vmatpush1.bf16.xpose.msra.mxu0 0
    %2477 = vmatprep.subr.bf16.mxu0 0
    %2478 = vmatpush1.bf16.xpose.msra.mxu0 0
    %2479 = vmatprep.mubr.bf16.mxu0 0
    %2480 = vmatmul.mubr.bf16.gmra.mrb[0].mxu0 %v2442
    %v2481 = vpop.f32.mrb[0].mxu0
    %v2482 = vadd.f32 %v41, %v2481
    %v2483 = vpop.f32.mrb[0].mxu0
    %v2484 = vpop.f32.mrb[0].mxu0
    %v2485 = vpop.f32.mrb[0].mxu0
    %2486 = vdwg.mxu0
    %v2487 = vsel %vm157, %v2432, -inf
    %2488 = vmax.xlane.f32.xlu0 %v2487
    %v2489 = vpop.xlane.xlu0 %2488
    %v2490 = vsel %vm157, %v2482, -inf
    %2491 = vmax.xlane.f32.xlu0 %v2490
    %v2492 = vpop.xlane.xlu0 %2491
    %v2493 = vsub.f32 %v2432, %v2489
    %v2494 = vsub.f32 %v2482, %v2492
    %v2495 = vmul.f32 %v2493, 1.442695
    %v2496 = vpow.pop %v2495
    %v2497 = vmul.f32 %v2494, 1.442695
    %v2498 = vpow.pop %v2497
    %v2499 = vsel %vm157, %v2496, 0.0
    %2500 = vadd.xlane.f32.xlu0 %v2499
    %v2501 = vpop.xlane.xlu0 %2500
    %v2502 = vsel %vm157, %v2498, 0.0
    %2503 = vadd.xlane.f32.xlu0 %v2502
    %v2504 = vpop.xlane.xlu0 %2503
    %v2505 = vrcp.pop %v2501
    %v2506 = vrcp.pop %v2504
    %v2507 = vmul.f32 %v2496, %v2505
    %v2508 = vmul.f32 %v2498, %v2506
    %v2509 = vpack.c.bf16 %v2507, %v2507
    %v2510 = vpack.c.bf16 %v2508, %v2508
    %2511 = vrot.lane.b32.xlu0 %v1574, 40
    %v2512 = vpop.permute.xlu0 %2511
    %v2514 = vsel %vm157, %v2509, 0
    %v2517 = vsel %vm282, %v2512, 0
    %2519 = vmatprep.subr.bf16.mxu0 0
    %2520 = vmatpush1.bf16.msra.mxu0 %v2517
    %2521 = vmatprep.subr.bf16.mxu0 0
    %2522 = vmatpush1.bf16.msra.mxu0 0
    %2523 = vmatprep.subr.bf16.mxu0 0
    %2524 = vmatpush1.bf16.msra.mxu0 0
    %2525 = vmatprep.subr.bf16.mxu0 0
    %2526 = vmatpush1.bf16.msra.mxu0 0
    %2527 = vmatprep.subr.bf16.mxu0 0
    %2528 = vmatpush1.bf16.msra.mxu0 0
    %2529 = vmatprep.subr.bf16.mxu0 0
    %2530 = vmatpush1.bf16.msra.mxu0 0
    %2531 = vmatprep.subr.bf16.mxu0 0
    %2532 = vmatpush1.bf16.msra.mxu0 0
    %2533 = vmatprep.subr.bf16.mxu0 0
    %2534 = vmatpush1.bf16.msra.mxu0 0
    %2535 = vmatprep.subr.bf16.mxu0 0
    %2536 = vmatpush1.bf16.msra.mxu0 0
    %2537 = vmatprep.subr.bf16.mxu0 0
    %2538 = vmatpush1.bf16.msra.mxu0 0
    %2539 = vmatprep.subr.bf16.mxu0 0
    %2540 = vmatpush1.bf16.msra.mxu0 0
    %2541 = vmatprep.subr.bf16.mxu0 0
    %2542 = vmatpush1.bf16.msra.mxu0 0
    %2543 = vmatprep.subr.bf16.mxu0 0
    %2544 = vmatpush1.bf16.msra.mxu0 0
    %2545 = vmatprep.subr.bf16.mxu0 0
    %2546 = vmatpush1.bf16.msra.mxu0 0
    %2547 = vmatprep.subr.bf16.mxu0 0
    %2548 = vmatpush1.bf16.msra.mxu0 0
    %2549 = vmatprep.subr.bf16.mxu0 0
    %2550 = vmatpush1.bf16.msra.mxu0 0
    %2551 = vmatprep.mubr.bf16.mxu0 0
    %2552 = vmatmul.mubr.bf16.gmra.mrb[0].mxu0 %v2514
    %v2553 = vpop.f32.mrb[0].mxu0
    %v2554 = vadd.f32 0.0, %v2553
    %v2555 = vpop.f32.mrb[0].mxu0
    %v2556 = vpop.f32.mrb[0].mxu0
    %v2557 = vpop.f32.mrb[0].mxu0
    %2558 = vdwg.mxu0
    %2559 = vrot.lane.b32.xlu0 %v1575, 40
    %v2560 = vpop.permute.xlu0 %2559
    %v2562 = vsel %vm157, %v2510, 0
    %v2565 = vsel %vm282, %v2560, 0
    %2567 = vmatprep.subr.bf16.mxu0 0
    %2568 = vmatpush1.bf16.msra.mxu0 %v2565
    %2569 = vmatprep.subr.bf16.mxu0 0
    %2570 = vmatpush1.bf16.msra.mxu0 0
    %2571 = vmatprep.subr.bf16.mxu0 0
    %2572 = vmatpush1.bf16.msra.mxu0 0
    %2573 = vmatprep.subr.bf16.mxu0 0
    %2574 = vmatpush1.bf16.msra.mxu0 0
    %2575 = vmatprep.subr.bf16.mxu0 0
    %2576 = vmatpush1.bf16.msra.mxu0 0
    %2577 = vmatprep.subr.bf16.mxu0 0
    %2578 = vmatpush1.bf16.msra.mxu0 0
    %2579 = vmatprep.subr.bf16.mxu0 0
    %2580 = vmatpush1.bf16.msra.mxu0 0
    %2581 = vmatprep.subr.bf16.mxu0 0
    %2582 = vmatpush1.bf16.msra.mxu0 0
    %2583 = vmatprep.subr.bf16.mxu0 0
    %2584 = vmatpush1.bf16.msra.mxu0 0
    %2585 = vmatprep.subr.bf16.mxu0 0
    %2586 = vmatpush1.bf16.msra.mxu0 0
    %2587 = vmatprep.subr.bf16.mxu0 0
    %2588 = vmatpush1.bf16.msra.mxu0 0
    %2589 = vmatprep.subr.bf16.mxu0 0
    %2590 = vmatpush1.bf16.msra.mxu0 0
    %2591 = vmatprep.subr.bf16.mxu0 0
    %2592 = vmatpush1.bf16.msra.mxu0 0
    %2593 = vmatprep.subr.bf16.mxu0 0
    %2594 = vmatpush1.bf16.msra.mxu0 0
    %2595 = vmatprep.subr.bf16.mxu0 0
    %2596 = vmatpush1.bf16.msra.mxu0 0
    %2597 = vmatprep.subr.bf16.mxu0 0
    %2598 = vmatpush1.bf16.msra.mxu0 0
    %2599 = vmatprep.mubr.bf16.mxu0 0
    %2600 = vmatmul.mubr.bf16.gmra.mrb[0].mxu0 %v2562
    %v2601 = vpop.f32.mrb[0].mxu0
    %v2602 = vadd.f32 0.0, %v2601
    %v2603 = vpop.f32.mrb[0].mxu0
    %v2604 = vpop.f32.mrb[0].mxu0
    %v2605 = vpop.f32.mrb[0].mxu0
    %2606 = vdwg.mxu0
    %v2607 = vpack.c.bf16 %v2602, %v2554
    %v2609 = vsel %vm157, %v2607, 0
    %v2612 = vsel %vm282, %v1580, 0
    %2614 = vmatprep.subr.bf16.mxu0 0
    %2615 = vmatpush1.bf16.msra.mxu0 %v2612
    %2616 = vmatprep.subr.bf16.mxu0 0
    %2617 = vmatpush1.bf16.msra.mxu0 0
    %2618 = vmatprep.subr.bf16.mxu0 0
    %2619 = vmatpush1.bf16.msra.mxu0 0
    %2620 = vmatprep.subr.bf16.mxu0 0
    %2621 = vmatpush1.bf16.msra.mxu0 0
    %2622 = vmatprep.subr.bf16.mxu0 0
    %2623 = vmatpush1.bf16.msra.mxu0 0
    %2624 = vmatprep.subr.bf16.mxu0 0
    %2625 = vmatpush1.bf16.msra.mxu0 0
    %2626 = vmatprep.subr.bf16.mxu0 0
    %2627 = vmatpush1.bf16.msra.mxu0 0
    %2628 = vmatprep.subr.bf16.mxu0 0
    %2629 = vmatpush1.bf16.msra.mxu0 0
    %2630 = vmatprep.subr.bf16.mxu0 0
    %2631 = vmatpush1.bf16.msra.mxu0 0
    %2632 = vmatprep.subr.bf16.mxu0 0
    %2633 = vmatpush1.bf16.msra.mxu0 0
    %2634 = vmatprep.subr.bf16.mxu0 0
    %2635 = vmatpush1.bf16.msra.mxu0 0
    %2636 = vmatprep.subr.bf16.mxu0 0
    %2637 = vmatpush1.bf16.msra.mxu0 0
    %2638 = vmatprep.subr.bf16.mxu0 0
    %2639 = vmatpush1.bf16.msra.mxu0 0
    %2640 = vmatprep.subr.bf16.mxu0 0
    %2641 = vmatpush1.bf16.msra.mxu0 0
    %2642 = vmatprep.subr.bf16.mxu0 0
    %2643 = vmatpush1.bf16.msra.mxu0 0
    %2644 = vmatprep.subr.bf16.mxu0 0
    %2645 = vmatpush1.bf16.msra.mxu0 0
    %2646 = vmatprep.mubr.bf16.mxu0 0
    %2647 = vmatmul.mubr.bf16.gmra.mrb[0].mxu0 %v2609
    %v2648 = vpop.f32.mrb[0].mxu0
    %v2649 = vadd.f32 0.0, %v2648
    %v2650 = vpop.f32.mrb[0].mxu0
    %v2651 = vpop.f32.mrb[0].mxu0
    %v2652 = vadd.f32 0.0, %v2651
    %v2653 = vpop.f32.mrb[0].mxu0
    %2654 = vdwg.mxu0
    %v2655 = vadd.f32 %v2385, %v2649
    %v2656 = vadd.f32 %v2386, %v2652
    %v2657 = vadd.f32 %v1466, %v2655
    %v2658 = vadd.f32 %v1467, %v2656
    %v2659 = vlaneseq
    %v2660 = vshrl.u32 %v2659, 7
    %v2661 = vsub.s32 4, %v2660
    %v2662 = vrot.slane %v1469, %v2661
    %v2663 = vadd.f32 %v2657, %v2662
    %v2664 = vadd.f32 %v2658, %v2662
    %v2665 = vsel %vm43, %v2663, 0.0
    %2666 = vadd.xlane.f32.xlu0 %v2665
    %v2667 = vpop.xlane.xlu0 %2666
    %v2668 = vsel %vm43, %v2664, 0.0
    %2669 = vadd.xlane.f32.xlu0 %v2668
    %v2670 = vpop.xlane.xlu0 %2669
    %v2671 = vmul.f32 %v2667, %v50
    %v2672 = vmul.f32 %v2670, %v50
    %v2673 = vsub.f32 %v2663, %v2671
    %v2674 = vsub.f32 %v2664, %v2672
    %v2675 = vmul.f32 %v2673, %v2673
    %v2676 = vmul.f32 %v2674, %v2674
    %v2677 = vsel %vm43, %v2675, 0.0
    %2678 = vadd.xlane.f32.xlu0 %v2677
    %v2679 = vpop.xlane.xlu0 %2678
    %v2680 = vsel %vm43, %v2676, 0.0
    %2681 = vadd.xlane.f32.xlu0 %v2680
    %v2682 = vpop.xlane.xlu0 %2681
    %v2683 = vmul.f32 %v2679, %v50
    %v2684 = vmul.f32 %v2682, %v50
    %v2685 = vadd.f32 %v2683, 1e-05
    %v2686 = vadd.f32 %v2684, 1e-05
    %v2687 = vrsqrt.pop %v2685
    %v2688 = vrsqrt.pop %v2686
    %v2689 = vmul.f32 %v2673, %v2687
    %v2690 = vmul.f32 %v2674, %v2688
    %v2691 = vlaneseq
    %v2692 = vshrl.u32 %v2691, 7
    %v2693 = vsub.s32 2, %v2692
    %v2694 = vrot.slane %v1469, %v2693
    %v2695 = vmul.f32 %v2689, %v2694
    %v2696 = vmul.f32 %v2690, %v2694
    %v2697 = vlaneseq
    %v2698 = vshrl.u32 %v2697, 7
    %v2699 = vsub.s32 3, %v2698
    %v2700 = vrot.slane %v1469, %v2699
    %v2701 = vadd.f32 %v2695, %v2700
    %v2702 = vadd.f32 %v2696, %v2700
    %v2703 = vpack.c.bf16 %v2702, %v2701
    %s2704 = scalar_lea.vmem %s3, 16
    %v2705 = vld [vmem:[%s2704] sm:$0xf]
    %v2706 = vld [vmem:[%s2704 + $0x4] sm:$0xf]
    %v2707 = vld [vmem:[%s2704 + $0x8] sm:$0xf]
    %v2708 = vld [vmem:[%s2704 + $0xc] sm:$0xf]
    %s2709 = scalar_lea.vmem %s6, 1
    %v2710 = vld [vmem:[%s2709] sm:$0x1]
    %v2712 = vlaneseq
    %v2713 = vshrl.u32 %v2712, 7
    %v2714 = vsub.s32 0, %v2713
    %v2715 = vrot.slane %v2710, %v2714
    %v2721 = vunpack.c.l.b16 %v2705
    %v2722 = vunpack.c.l.b16 %v2706
    %v2723 = vunpack.c.l.b16 %v2707
    %v2724 = vunpack.c.l.b16 %v2708
    %v2725 = vpack.c.b16 %v2722, %v2721
    %v2726 = vpack.c.b16 %v2724, %v2723
    %v2730 = vsel %vm43, %v2703, 0
    %2732 = vmatprep.subr.bf16.mxu0 0
    %2733 = vmatpush1.bf16.msra.mxu0 %v2725
    %2734 = vmatprep.subr.bf16.mxu0 0
    %2735 = vmatpush1.bf16.msra.mxu0 %v2726
    %2736 = vmatprep.subr.bf16.mxu0 0
    %2737 = vmatpush1.bf16.msra.mxu0 0
    %2738 = vmatprep.subr.bf16.mxu0 0
    %2739 = vmatpush1.bf16.msra.mxu0 0
    %2740 = vmatprep.subr.bf16.mxu0 0
    %2741 = vmatpush1.bf16.msra.mxu0 0
    %2742 = vmatprep.subr.bf16.mxu0 0
    %2743 = vmatpush1.bf16.msra.mxu0 0
    %2744 = vmatprep.subr.bf16.mxu0 0
    %2745 = vmatpush1.bf16.msra.mxu0 0
    %2746 = vmatprep.subr.bf16.mxu0 0
    %2747 = vmatpush1.bf16.msra.mxu0 0
    %2748 = vmatprep.subr.bf16.mxu0 0
    %2749 = vmatpush1.bf16.msra.mxu0 0
    %2750 = vmatprep.subr.bf16.mxu0 0
    %2751 = vmatpush1.bf16.msra.mxu0 0
    %2752 = vmatprep.subr.bf16.mxu0 0
    %2753 = vmatpush1.bf16.msra.mxu0 0
    %2754 = vmatprep.subr.bf16.mxu0 0
    %2755 = vmatpush1.bf16.msra.mxu0 0
    %2756 = vmatprep.subr.bf16.mxu0 0
    %2757 = vmatpush1.bf16.msra.mxu0 0
    %2758 = vmatprep.subr.bf16.mxu0 0
    %2759 = vmatpush1.bf16.msra.mxu0 0
    %2760 = vmatprep.subr.bf16.mxu0 0
    %2761 = vmatpush1.bf16.msra.mxu0 0
    %2762 = vmatprep.subr.bf16.mxu0 0
    %2763 = vmatpush1.bf16.msra.mxu0 0
    %2764 = vmatprep.mubr.bf16.mxu0 0
    %2765 = vmatmul.mubr.bf16.gmra.mrb[0].mxu0 %v2730
    %v2766 = vpop.f32.mrb[0].mxu0
    %v2767 = vadd.f32 %v2715, %v2766
    %v2768 = vpop.f32.mrb[0].mxu0
    %v2769 = vpop.f32.mrb[0].mxu0
    %v2770 = vadd.f32 %v2715, %v2769
    %v2771 = vpop.f32.mrb[0].mxu0
    %2772 = vdwg.mxu0
    %v2773 = vmul.f32 %v2767, 0.5
    %v2774 = vmul.f32 %v2770, 0.5
    %v2775 = vmul.f32 %v2767, 0.70710677
    %v2776 = vmul.f32 %v2770, 0.70710677
    %v2777 = verf.f32.pop %v2775
    %v2778 = verf.f32.pop %v2776
    %v2779 = vadd.f32 %v2777, 1.0
    %v2780 = vadd.f32 %v2778, 1.0
    %v2781 = vmul.f32 %v2773, %v2779
    %v2782 = vmul.f32 %v2774, %v2780
    %v2783 = vpack.c.bf16 %v2782, %v2781
    %s2784 = scalar_lea.vmem %s4, 64
    %v2785 = vld [vmem:[%s2784] sm:$0xf]
    %v2786 = vld [vmem:[%s2784 + $0x4] sm:$0xf]
    %v2787 = vld [vmem:[%s2784 + $0x8] sm:$0xf]
    %v2788 = vld [vmem:[%s2784 + $0xc] sm:$0xf]
    %v2789 = vld [vmem:[%s2784 + $0x10] sm:$0xf]
    %v2790 = vld [vmem:[%s2784 + $0x14] sm:$0xf]
    %v2791 = vld [vmem:[%s2784 + $0x18] sm:$0xf]
    %v2792 = vld [vmem:[%s2784 + $0x1c] sm:$0xf]
    %v2793 = vld [vmem:[%s2784 + $0x20] sm:$0xf]
    %v2794 = vld [vmem:[%s2784 + $0x24] sm:$0xf]
    %v2795 = vld [vmem:[%s2784 + $0x28] sm:$0xf]
    %v2796 = vld [vmem:[%s2784 + $0x2c] sm:$0xf]
    %v2797 = vld [vmem:[%s2784 + $0x30] sm:$0xf]
    %v2798 = vld [vmem:[%s2784 + $0x34] sm:$0xf]
    %v2799 = vld [vmem:[%s2784 + $0x38] sm:$0xf]
    %v2800 = vld [vmem:[%s2784 + $0x3c] sm:$0xf]
    %v2801 = vlaneseq
    %v2802 = vshrl.u32 %v2801, 7
    %v2803 = vsub.s32 5, %v2802
    %v2804 = vrot.slane %v1469, %v2803
    %v2821 = vunpack.c.l.b16 %v2785
    %v2822 = vunpack.c.l.b16 %v2786
    %v2823 = vunpack.c.l.b16 %v2787
    %v2824 = vunpack.c.l.b16 %v2788
    %v2825 = vunpack.c.l.b16 %v2789
    %v2826 = vunpack.c.l.b16 %v2790
    %v2827 = vunpack.c.l.b16 %v2791
    %v2828 = vunpack.c.l.b16 %v2792
    %v2829 = vunpack.c.l.b16 %v2793
    %v2830 = vunpack.c.l.b16 %v2794
    %v2831 = vunpack.c.l.b16 %v2795
    %v2832 = vunpack.c.l.b16 %v2796
    %v2833 = vunpack.c.l.b16 %v2797
    %v2834 = vunpack.c.l.b16 %v2798
    %v2835 = vunpack.c.l.b16 %v2799
    %v2836 = vunpack.c.l.b16 %v2800
    %v2837 = vpack.c.b16 %v2822, %v2821
    %v2838 = vpack.c.b16 %v2824, %v2823
    %v2839 = vpack.c.b16 %v2826, %v2825
    %v2840 = vpack.c.b16 %v2828, %v2827
    %v2841 = vpack.c.b16 %v2830, %v2829
    %v2842 = vpack.c.b16 %v2832, %v2831
    %v2843 = vpack.c.b16 %v2834, %v2833
    %v2844 = vpack.c.b16 %v2836, %v2835
    %2853 = vmatprep.subr.bf16.mxu0 0
    %2854 = vmatpush1.bf16.msra.mxu0 %v2837
    %2855 = vmatprep.subr.bf16.mxu0 0
    %2856 = vmatpush1.bf16.msra.mxu0 %v2838
    %2857 = vmatprep.subr.bf16.mxu0 0
    %2858 = vmatpush1.bf16.msra.mxu0 %v2839
    %2859 = vmatprep.subr.bf16.mxu0 0
    %2860 = vmatpush1.bf16.msra.mxu0 %v2840
    %2861 = vmatprep.subr.bf16.mxu0 0
    %2862 = vmatpush1.bf16.msra.mxu0 %v2841
    %2863 = vmatprep.subr.bf16.mxu0 0
    %2864 = vmatpush1.bf16.msra.mxu0 %v2842
    %2865 = vmatprep.subr.bf16.mxu0 0
    %2866 = vmatpush1.bf16.msra.mxu0 %v2843
    %2867 = vmatprep.subr.bf16.mxu0 0
    %2868 = vmatpush1.bf16.msra.mxu0 %v2844
    %2869 = vmatprep.subr.bf16.mxu0 0
    %2870 = vmatpush1.bf16.msra.mxu0 0
    %2871 = vmatprep.subr.bf16.mxu0 0
    %2872 = vmatpush1.bf16.msra.mxu0 0
    %2873 = vmatprep.subr.bf16.mxu0 0
    %2874 = vmatpush1.bf16.msra.mxu0 0
    %2875 = vmatprep.subr.bf16.mxu0 0
    %2876 = vmatpush1.bf16.msra.mxu0 0
    %2877 = vmatprep.subr.bf16.mxu0 0
    %2878 = vmatpush1.bf16.msra.mxu0 0
    %2879 = vmatprep.subr.bf16.mxu0 0
    %2880 = vmatpush1.bf16.msra.mxu0 0
    %2881 = vmatprep.subr.bf16.mxu0 0
    %2882 = vmatpush1.bf16.msra.mxu0 0
    %2883 = vmatprep.subr.bf16.mxu0 0
    %2884 = vmatpush1.bf16.msra.mxu0 0
    %2885 = vmatprep.mubr.bf16.mxu0 0
    %2886 = vmatmul.mubr.bf16.gmra.mrb[0].mxu0 %v2783
    %v2887 = vpop.f32.mrb[0].mxu0
    %v2888 = vadd.f32 %v2804, %v2887
    %v2889 = vpop.f32.mrb[0].mxu0
    %v2890 = vpop.f32.mrb[0].mxu0
    %v2891 = vadd.f32 %v2804, %v2890
    %v2892 = vpop.f32.mrb[0].mxu0
    %2893 = vdwg.mxu0
    %v2894 = vadd.f32 %v2663, %v2888
    %v2895 = vadd.f32 %v2664, %v2891
    %v2896 = vld [vmem:[%s7] sm:$0x3]
    %v2897 = vsel %vm43, %v2894, 0.0
    %2898 = vadd.xlane.f32.xlu0 %v2897
    %v2899 = vpop.xlane.xlu0 %2898
    %v2900 = vsel %vm43, %v2895, 0.0
    %2901 = vadd.xlane.f32.xlu0 %v2900
    %v2902 = vpop.xlane.xlu0 %2901
    %v2903 = vmul.f32 %v2899, %v50
    %v2904 = vmul.f32 %v2902, %v50
    %v2905 = vsub.f32 %v2894, %v2903
    %v2906 = vsub.f32 %v2895, %v2904
    %v2907 = vmul.f32 %v2905, %v2905
    %v2908 = vmul.f32 %v2906, %v2906
    %v2909 = vsel %vm43, %v2907, 0.0
    %2910 = vadd.xlane.f32.xlu0 %v2909
    %v2911 = vpop.xlane.xlu0 %2910
    %v2912 = vsel %vm43, %v2908, 0.0
    %2913 = vadd.xlane.f32.xlu0 %v2912
    %v2914 = vpop.xlane.xlu0 %2913
    %v2915 = vmul.f32 %v2911, %v50
    %v2916 = vmul.f32 %v2914, %v50
    %v2917 = vadd.f32 %v2915, 1e-05
    %v2918 = vadd.f32 %v2916, 1e-05
    %v2919 = vrsqrt.pop %v2917
    %v2920 = vrsqrt.pop %v2918
    %v2921 = vmul.f32 %v2905, %v2919
    %v2922 = vmul.f32 %v2906, %v2920
    %v2923 = vlaneseq
    %v2924 = vshrl.u32 %v2923, 7
    %v2925 = vsub.s32 0, %v2924
    %v2926 = vrot.slane %v2896, %v2925
    %v2927 = vmul.f32 %v2921, %v2926
    %v2928 = vmul.f32 %v2922, %v2926
    %v2929 = vlaneseq
    %v2930 = vshrl.u32 %v2929, 7
    %v2931 = vsub.s32 1, %v2930
    %v2932 = vrot.slane %v2896, %v2931
    %v2933 = vadd.f32 %v2927, %v2932
    %v2934 = vadd.f32 %v2928, %v2932
    %v2935 = vpack.c.bf16 %v2934, %v2933
    %v2936 = vld [vmem:[%s8] sm:$0xf]
    %v2937 = vld [vmem:[%s8 + $0x4] sm:$0xf]
    %v2938 = vld [vmem:[%s8 + $0x8] sm:$0xf]
    %v2939 = vld [vmem:[%s8 + $0xc] sm:$0xf]
    %v2944 = vunpack.c.l.b16 %v2936
    %v2945 = vunpack.c.l.b16 %v2937
    %v2946 = vunpack.c.l.b16 %v2938
    %v2947 = vunpack.c.l.b16 %v2939
    %v2948 = vpack.c.b16 %v2945, %v2944
    %v2949 = vpack.c.b16 %v2947, %v2946
    %v2953 = vsel %vm43, %v2935, 0
    %2955 = vmatprep.subr.bf16.mxu0 0
    %2956 = vmatpush1.bf16.msra.mxu0 %v2948
    %2957 = vmatprep.subr.bf16.mxu0 0
    %2958 = vmatpush1.bf16.msra.mxu0 %v2949
    %2959 = vmatprep.subr.bf16.mxu0 0
    %2960 = vmatpush1.bf16.msra.mxu0 0
    %2961 = vmatprep.subr.bf16.mxu0 0
    %2962 = vmatpush1.bf16.msra.mxu0 0
    %2963 = vmatprep.subr.bf16.mxu0 0
    %2964 = vmatpush1.bf16.msra.mxu0 0
    %2965 = vmatprep.subr.bf16.mxu0 0
    %2966 = vmatpush1.bf16.msra.mxu0 0
    %2967 = vmatprep.subr.bf16.mxu0 0
    %2968 = vmatpush1.bf16.msra.mxu0 0
    %2969 = vmatprep.subr.bf16.mxu0 0
    %2970 = vmatpush1.bf16.msra.mxu0 0
    %2971 = vmatprep.subr.bf16.mxu0 0
    %2972 = vmatpush1.bf16.msra.mxu0 0
    %2973 = vmatprep.subr.bf16.mxu0 0
    %2974 = vmatpush1.bf16.msra.mxu0 0
    %2975 = vmatprep.subr.bf16.mxu0 0
    %2976 = vmatpush1.bf16.msra.mxu0 0
    %2977 = vmatprep.subr.bf16.mxu0 0
    %2978 = vmatpush1.bf16.msra.mxu0 0
    %2979 = vmatprep.subr.bf16.mxu0 0
    %2980 = vmatpush1.bf16.msra.mxu0 0
    %2981 = vmatprep.subr.bf16.mxu0 0
    %2982 = vmatpush1.bf16.msra.mxu0 0
    %2983 = vmatprep.subr.bf16.mxu0 0
    %2984 = vmatpush1.bf16.msra.mxu0 0
    %2985 = vmatprep.subr.bf16.mxu0 0
    %2986 = vmatpush1.bf16.msra.mxu0 0
    %2987 = vmatprep.mubr.bf16.mxu0 0
    %2988 = vmatmul.mubr.bf16.gmra.mrb[0].mxu0 %v2953
    %v2989 = vpop.f32.mrb[0].mxu0
    %v2990 = vadd.f32 0.0, %v2989
    %v2991 = vpop.f32.mrb[0].mxu0
    %v2992 = vpop.f32.mrb[0].mxu0
    %v2993 = vadd.f32 0.0, %v2992
    %v2994 = vpop.f32.mrb[0].mxu0
    %2995 = vdwg.mxu0
    %2996 = vst [vmem:[#allocation2] sm:$0xff] %v2990
    %2997 = vst [vmem:[#allocation2 + $0x8] sm:$0xff] %v2993
    // Predicated region
    $region38: #{gpt2_forward.1} parent=1 // pred_check
      _
    $region39: #{gpt2_forward.1} parent=1 // pred_check_branch
      %2999 = sbr.rel (0) target = $region41
    $region40: #{gpt2_forward.1} parent=1 // pred_region
      %s3001 = ssub.s32 256, 256
      %3002 = vsyncadd [#allocation3], %s3001
      %s3003 = sshll.u32 [#allocation2], 4
      %s3004 = int_to_ptr.vmem [resolvable:$true] %s3003
      %3009 = dma.vmem_to_hbm [thread:$0]  %s3004, 256, %s9, [#allocation3], 128, 128, 8
    $region41: #{gpt2_forward.1} parent=1 // pred_fallthru
      _
    // Predicated region
    $region42: #{gpt2_forward.1} parent=1 // pred_check
      _
    $region43: #{gpt2_forward.1} parent=1 // pred_check_branch
      %3011 = sbr.rel (0) target = $region45
    $region44: #{gpt2_forward.1} parent=1 // pred_region
      %3012 = dma.done [#allocation3], 256
    $region45: #{gpt2_forward.1} parent=1 // pred_fallthru
      _
    %3013 = vsyncpa [#allocation3], 1

</llo_original>
